<compile_context>
chip_gen: v6e
topology: v6e:2x2x1
jax: 0.10.0
libtpu: 0.0.40
codegen_flags: <defaults>
</compile_context>

<pallas_src>
import numpy as np
import jax
import jax.numpy as jnp
from jax.experimental import pallas as pl
from jax.experimental.pallas import tpu as pltpu


def _round_up(x, m):
    return (x + m - 1) // m * m


def _make_kernel(E, Dh, EDp, Tq, neg_big, use_bf16):
    """Build the GlobalPointer kernel closure (all shape constants are static)."""
    D = 2 * Dh
    two_EDp = 2 * EDp

    def mx(a):
        return a.astype(jnp.bfloat16) if use_bf16 else a

    def kernel(x_ref, w_ref, b_ref, cos_ref, sin_ref, padd_ref, out_ref, k_ref):
        # Block shapes:
        #   x_ref   (1, Sp, Hp)    w_ref (Hp, 4*EDp)    b_ref (1, 4*EDp)
        #   cos/sin (Sp, EDp)      padd  (1, 1, Sp)     out_ref (1, E, Tq, Sp)
        #   k_ref scratch (E*D, Sp): RoPE'd, pad-folded, TRANSPOSED K, per-entity
        #   contiguous [even|odd] row blocks — written once per batch.
        qt = pl.program_id(1)

        # ---- K path: projection + RoPE + key-pad fold + transpose, once per batch.
        # Relies on the q-tile axis being the innermost, sequential ("arbitrary") axis,
        # so qt == 0 runs before every other tile of the same batch on the same core.
        @pl.when(qt == 0)
        def _():
            x_all = x_ref[0]                                               # (Sp, Hp)
            pk = jnp.dot(mx(x_all), mx(w_ref[:, two_EDp:]),
                         preferred_element_type=jnp.float32) + b_ref[:, two_EDp:]
            ke, ko = pk[:, :EDp], pk[:, EDp:]                              # even / odd planes
            cos, sin = cos_ref[...], sin_ref[...]
            ke_r = ke * cos - ko * sin                                     # (Sp, EDp)
            ko_r = ko * cos + ke * sin
            # Fold the 0/1 key pad into K:  q·(k*pad) == (q·k)*pad exactly.
            padd = padd_ref[0]                                             # (1, Sp): 0 or -big
            padk = jnp.where(padd == 0.0, 1.0, 0.0)                        # (1, Sp)
            ke_t = ke_r.T * padk                                           # (EDp, Sp)
            ko_t = ko_r.T * padk
            for e in range(E):                                             # static, small
                k_ref[e * D:e * D + Dh, :] = ke_t[e * Dh:(e + 1) * Dh, :]
                k_ref[e * D + Dh:(e + 1) * D, :] = ko_t[e * Dh:(e + 1) * Dh, :]

        # ---- Q path: projection + RoPE for this q-tile, all entity types at once.
        row0 = pl.multiple_of(qt * Tq, Tq)
        xq = x_ref[0, pl.ds(row0, Tq), :]                                  # (Tq, Hp)
        pq = jnp.dot(mx(xq), mx(w_ref[:, :two_EDp]),
                     preferred_element_type=jnp.float32) + b_ref[:, :two_EDp]
        qe, qo = pq[:, :EDp], pq[:, EDp:]
        cq = cos_ref[pl.ds(row0, Tq), :]
        sq = sin_ref[pl.ds(row0, Tq), :]
        qe_r = qe * cq - qo * sq                                           # (Tq, EDp)
        qo_r = qo * cq + qe * sq

        # ---- additive mask: key padding + strict-lower triangular (iota, no HBM array)
        Sp = out_ref.shape[3]
        rows = jax.lax.broadcasted_iota(jnp.int32, (Tq, Sp), 0) + qt * Tq
        cols = jax.lax.broadcasted_iota(jnp.int32, (Tq, Sp), 1)
        add = padd_ref[0] + jnp.where(cols < rows, neg_big, 0.0)           # (Tq, Sp)

        # ---- scores: ONE K=D dot per entity against the pre-transposed K.
        dn = (((1,), (0,)), ((), ()))
        for e in range(E):                                                 # static, small
            q_cat = jnp.concatenate(                                       # (Tq, D)
                [qe_r[:, e * Dh:(e + 1) * Dh], qo_r[:, e * Dh:(e + 1) * Dh]], axis=1)
            s = jax.lax.dot_general(mx(q_cat), mx(k_ref[e * D:(e + 1) * D, :]), dn,
                                    preferred_element_type=jnp.float32)
            out_ref[0, e] = (s + add).astype(out_ref.dtype)                # lane-dense store

    return kernel


def global_pointer_pallas(x, w_t, bias, attention_mask, *, ent_type_size, inner_dim,
                          q_tile=None, use_bf16_mxu=False, out_dtype=jnp.float32):
    """x: (B,S,H) f32, w_t: (H, E*2*D) (transposed nn.Linear weight), bias: (E*2*D,),
    attention_mask: (B,S) 0/1.  Returns (B, E, S, S) logits matching the PyTorch module."""
    B, S, H = x.shape
    E, D = ent_type_size, inner_dim
    assert D % 2 == 0
    Dh = D // 2
    EDh = E * Dh
    EDp = max(128, _round_up(EDh, 128))            # plane width, 128-lane aligned
    assert w_t.shape == (H, E * 2 * D)

    Sp = max(128, _round_up(S, 128))
    Hp = max(128, _round_up(H, 128))

    # ---- VMEM-aware q-tile selection & limit (v5e/v6e: 128 MiB, v7x: 64 MiB) ----
    try:
        vmem_cap = int(pltpu.get_tpu_info().vmem_capacity_bytes)
    except Exception:
        vmem_cap = 64 * 1024 * 1024                # conservative fallback, safe on all chips
    budget = int(vmem_cap * 0.8)                   # headroom for Mosaic internal scratch

    def footprint(tq):
        # Conservative: double-buffered inputs + output, plus the K scratch.
        resident = Sp * Hp + Hp * 4 * EDp + 4 * EDp + 2 * Sp * EDp + Sp
        return 4 * (2 * resident + 2 * E * tq * Sp + E * D * Sp)

    if q_tile is None:
        q_tile = 128
        for cand in (512, 256):
            if Sp % cand == 0 and footprint(cand) <= budget:
                q_tile = cand
                break
    Tq = min(q_tile, Sp)
    assert Sp % Tq == 0
    n_qt = Sp // Tq
    vmem_limit = int(min(budget, footprint(Tq) + 32 * 1024 * 1024))

    # ---- one-time preprocessing (would live in __init__ in a real module) ----
    # Offline column permutation of the dense layer into four 128-aligned planes
    # [Q_even | Q_odd | K_even | K_odd] (entity-major, Dh per entity within a plane).
    cols = np.arange(E * 2 * D).reshape(E, 2, D)
    plane_idx = [cols[:, 0, 0::2].reshape(-1),     # Q even
                 cols[:, 0, 1::2].reshape(-1),     # Q odd
                 cols[:, 1, 0::2].reshape(-1),     # K even
                 cols[:, 1, 1::2].reshape(-1)]     # K odd
    w_f = w_t.astype(jnp.float32)
    b_f = bias.astype(jnp.float32).reshape(-1)
    w_p = jnp.zeros((Hp, 4 * EDp), jnp.float32)
    b_p = jnp.zeros((1, 4 * EDp), jnp.float32)
    for p, idx in enumerate(plane_idx):
        idx = jnp.asarray(idx)
        w_p = w_p.at[:H, p * EDp:p * EDp + EDh].set(jnp.take(w_f, idx, axis=1))
        b_p = b_p.at[0, p * EDp:p * EDp + EDh].set(jnp.take(b_f, idx, axis=0))

    # Zero-pad S and H (zero rows/cols contribute nothing to the projection).
    x_p = jnp.pad(x.astype(jnp.float32), ((0, 0), (0, Sp - S), (0, Hp - H)))

    # RoPE tables in rotate-half plane layout, tiled over entity types, with the
    # 1/sqrt(D) logits scale folded in (D**-0.25 on each of q and k).
    scale = jnp.float32(D) ** -0.25
    pos = jnp.arange(Sp, dtype=jnp.float32)[:, None]
    inv = jnp.power(10000.0, -2.0 * jnp.arange(Dh, dtype=jnp.float32) / D)
    ang = pos * inv                                                        # (Sp, Dh)
    cos_t = jnp.zeros((Sp, EDp), jnp.float32).at[:, :EDh].set(
        jnp.tile(jnp.cos(ang), (1, E)) * scale)
    sin_t = jnp.zeros((Sp, EDp), jnp.float32).at[:, :EDh].set(
        jnp.tile(jnp.sin(ang), (1, E)) * scale)

    # Additive key-pad mask, scaled by the folded 1/sqrt(D).  (The multiplicative 0/1
    # pad is re-derived from it inside the kernel and folded into K once per batch.)
    big = 1e12 / float(D) ** 0.5
    pad = jnp.zeros((B, Sp), jnp.float32).at[:, :S].set(attention_mask.astype(jnp.float32))
    padd3 = (-(1.0 - pad) * big).reshape(B, 1, Sp)

    kernel = _make_kernel(E, Dh, EDp, Tq, -big, use_bf16_mxu)

    flops = 8 * B * Sp * Hp * EDp + 2 * B * E * Sp * Sp * D
    bytes_accessed = (4 * (B * Sp * Hp + Hp * 4 * EDp + 4 * EDp + 2 * Sp * EDp + B * Sp)
                      + B * E * Sp * Sp * np.dtype(out_dtype).itemsize)
    cost = pl.CostEstimate(flops=int(flops), transcendentals=0,
                           bytes_accessed=int(bytes_accessed))

    def build(single_buffer_resident):
        def resident_spec(shape, imap):
            if single_buffer_resident:
                return pl.BlockSpec(shape, imap, pipeline_mode=pl.Buffered(1))
            return pl.BlockSpec(shape, imap)

        return pl.pallas_call(
            kernel,
            out_shape=jax.ShapeDtypeStruct((B, E, Sp, Sp), out_dtype),
            grid_spec=pltpu.PrefetchScalarGridSpec(
                num_scalar_prefetch=0,
                grid=(B, n_qt),
                in_specs=[
                    resident_spec((1, Sp, Hp), lambda b, t: (b, 0, 0)),    # x (per batch)
                    resident_spec((Hp, 4 * EDp), lambda b, t: (0, 0)),     # permuted weight
                    resident_spec((1, 4 * EDp), lambda b, t: (0, 0)),      # permuted bias
                    resident_spec((Sp, EDp), lambda b, t: (0, 0)),         # cos table
                    resident_spec((Sp, EDp), lambda b, t: (0, 0)),         # sin table
                    resident_spec((1, 1, Sp), lambda b, t: (b, 0, 0)),     # additive key pad
                ],
                out_specs=pl.BlockSpec((1, E, Tq, Sp), lambda b, t: (b, 0, t, 0)),
                scratch_shapes=[pltpu.VMEM((E * D, Sp), jnp.float32)],     # transposed RoPE'd K
            ),
            compiler_params=pltpu.CompilerParams(
                # Batch axis may shard across cores; the q-tile axis must stay sequential
                # ("arbitrary") because of the per-batch K scratch carry.
                dimension_semantics=("parallel", "arbitrary"),
                vmem_limit_bytes=vmem_limit),
            cost_estimate=cost,
        )(x_p, w_p, b_p, cos_t, sin_t, padd3)

    try:
        out = jax.block_until_ready(build(True))
    except Exception:
        # Fallback for JAX versions that reject BlockSpec(pipeline_mode=pl.Buffered(1)).
        out = jax.block_until_ready(build(False))

    if Sp != S:
        out = out[:, :, :S, :S]
    return out


def global_pointer_reference(x, w_t, bias, attention_mask, *, ent_type_size, inner_dim):
    # Pure-JAX mirror of the PyTorch forward, for correctness checking.
    B, S, H = x.shape
    E, D = ent_type_size, inner_dim
    out = x @ w_t + bias                                             # (B, S, E*2D)
    out = out.reshape(B, S, E, 2 * D)
    qw, kw = out[..., :D], out[..., D:]
    pos = jnp.arange(S, dtype=jnp.float32)[:, None]
    idx = jnp.power(10000.0, -2.0 * jnp.arange(D // 2, dtype=jnp.float32) / D)
    emb = pos * idx
    cos_pos = jnp.repeat(jnp.cos(emb), 2, axis=-1)[None, :, None, :]
    sin_pos = jnp.repeat(jnp.sin(emb), 2, axis=-1)[None, :, None, :]
    qw2 = jnp.stack([-qw[..., 1::2], qw[..., ::2]], -1).reshape(qw.shape)
    kw2 = jnp.stack([-kw[..., 1::2], kw[..., ::2]], -1).reshape(kw.shape)
    q = qw * cos_pos + qw2 * sin_pos
    k = kw * cos_pos + kw2 * sin_pos
    logits = jnp.einsum('bmhd,bnhd->bhmn', q, k)
    pad = attention_mask.astype(jnp.float32)[:, None, None, :]
    logits = logits * pad - (1.0 - pad) * 1e12
    tril = jnp.tril(jnp.ones((S, S), jnp.float32), -1)
    logits = logits - tril * 1e12
    return logits / (D ** 0.5)


if __name__ == "__main__":
    B, S, H = 2, 8, 32            # batch, seq, hidden
    E, D = 4, 64                  # ent_type_size, inner_dim (module default 64)

    key = jax.random.PRNGKey(0)
    k_x, k_w, k_b = jax.random.split(key, 3)

    x = jax.random.normal(k_x, (B, S, H), dtype=jnp.float32)
    # nn.Linear(H, E*2*D): weight is (out, in); we build the transposed (H, out) directly.
    w_t = jax.random.normal(k_w, (H, E * 2 * D), dtype=jnp.float32) * 0.02
    bias = jax.random.normal(k_b, (E * 2 * D,), dtype=jnp.float32) * 0.02
    # valid lengths 8 and 5
    attention_mask = (jnp.arange(S)[None, :] < jnp.array([[8], [5]])).astype(jnp.float32)

    out = global_pointer_pallas(x, w_t, bias, attention_mask,
                                ent_type_size=E, inner_dim=D)
    out = jax.block_until_ready(out)

    ref = global_pointer_reference(x, w_t, bias, attention_mask,
                                   ent_type_size=E, inner_dim=D)
    np.testing.assert_allclose(np.asarray(out), np.asarray(ref), rtol=1e-4, atol=1e-2)

    print("KERNEL_OK")
</pallas_src>

<mosaic_0001>
module attributes {stable_mosaic.version = 11 : i64} {
  func.func @kernel(%arg0: i32, %arg1: i32, %arg2: memref<1x128x128xf32, #tpu.memory_space<vmem>>, %arg3: memref<128x512xf32, #tpu.memory_space<vmem>>, %arg4: memref<1x512xf32, #tpu.memory_space<vmem>>, %arg5: memref<128x128xf32, #tpu.memory_space<vmem>>, %arg6: memref<128x128xf32, #tpu.memory_space<vmem>>, %arg7: memref<1x1x128xf32, #tpu.memory_space<vmem>>, %arg8: memref<1x4x128x128xf32, #tpu.memory_space<vmem>>, %arg9: memref<256x128xf32, #tpu.memory_space<vmem>>) attributes {dimension_semantics = [#tpu.dimension_semantics<parallel>, #tpu.dimension_semantics<arbitrary>], iteration_bounds = array<i64: 2, 1>, scalar_prefetch = 0 : i64, scratch_operands = 1 : i64, tpu.core_type = #tpu.core_type<tc>, window_params = [{pipeline_mode = #tpu.pipeline_mode<synchronous>, transform_indices = @transform_0, window_bounds = array<i64: 1, 128, 128>}, {pipeline_mode = #tpu.pipeline_mode<synchronous>, transform_indices = @transform_1, window_bounds = array<i64: 128, 512>}, {pipeline_mode = #tpu.pipeline_mode<synchronous>, transform_indices = @transform_2, window_bounds = array<i64: 1, 512>}, {pipeline_mode = #tpu.pipeline_mode<synchronous>, transform_indices = @transform_3, window_bounds = array<i64: 128, 128>}, {pipeline_mode = #tpu.pipeline_mode<synchronous>, transform_indices = @transform_4, window_bounds = array<i64: 128, 128>}, {pipeline_mode = #tpu.pipeline_mode<synchronous>, transform_indices = @transform_5, window_bounds = array<i64: 1, 1, 128>}, {transform_indices = @transform_6, window_bounds = array<i64: 1, 4, 128, 128>}]} {
    %c0_i32 = arith.constant 0 : i32
    %0 = arith.cmpi eq, %arg1, %c0_i32 : i32
    %1 = arith.extui %0 : i1 to i32
    %c0_i32_0 = arith.constant 0 : i32
    %2 = arith.cmpi ne, %1, %c0_i32_0 : i32
    scf.if %2 {
      %c0_36 = arith.constant 0 : index
      %c0_37 = arith.constant 0 : index
      %c0_38 = arith.constant 0 : index
      %74 = vector.load %arg2[%c0_36, %c0_37, %c0_38] : memref<1x128x128xf32, #tpu.memory_space<vmem>>, vector<1x128x128xf32>
      %75 = vector.shape_cast %74 : vector<1x128x128xf32> to vector<128x128xf32>
      %c0_39 = arith.constant 0 : index
      %c256 = arith.constant 256 : index
      %76 = vector.load %arg3[%c0_39, %c256] : memref<128x512xf32, #tpu.memory_space<vmem>>, vector<128x256xf32>
      %cst_40 = arith.constant dense<0.000000e+00> : vector<128x256xf32>
      %77 = tpu.matmul %75, %76, %cst_40 {dimension_numbers = #tpu.dot_dimension_numbers<[1], [0], [0], [1], [0, 0, 1, 1], [], []>} : vector<128x128xf32>, vector<128x256xf32>, vector<128x256xf32> -> vector<128x256xf32>
      %c0_41 = arith.constant 0 : index
      %c256_42 = arith.constant 256 : index
      %78 = vector.load %arg4[%c0_41, %c256_42] : memref<1x512xf32, #tpu.memory_space<vmem>>, vector<1x256xf32>
      %79 = vector.broadcast %78 : vector<1x256xf32> to vector<128x256xf32>
      %80 = arith.addf %77, %79 : vector<128x256xf32>
      %81 = vector.extract_strided_slice %80 {offsets = [0, 0], sizes = [128, 128], strides = [1, 1]} : vector<128x256xf32> to vector<128x128xf32>
      %82 = vector.extract_strided_slice %80 {offsets = [0, 128], sizes = [128, 128], strides = [1, 1]} : vector<128x256xf32> to vector<128x128xf32>
      %c0_43 = arith.constant 0 : index
      %c0_44 = arith.constant 0 : index
      %83 = vector.load %arg5[%c0_43, %c0_44] : memref<128x128xf32, #tpu.memory_space<vmem>>, vector<128x128xf32>
      %c0_45 = arith.constant 0 : index
      %c0_46 = arith.constant 0 : index
      %84 = vector.load %arg6[%c0_45, %c0_46] : memref<128x128xf32, #tpu.memory_space<vmem>>, vector<128x128xf32>
      %85 = arith.mulf %81, %83 : vector<128x128xf32>
      %86 = arith.mulf %82, %84 : vector<128x128xf32>
      %87 = arith.subf %85, %86 : vector<128x128xf32>
      %88 = arith.mulf %82, %83 : vector<128x128xf32>
      %89 = arith.mulf %81, %84 : vector<128x128xf32>
      %90 = arith.addf %88, %89 : vector<128x128xf32>
      %c0_47 = arith.constant 0 : index
      %c0_48 = arith.constant 0 : index
      %c0_49 = arith.constant 0 : index
      %91 = vector.load %arg7[%c0_47, %c0_48, %c0_49] : memref<1x1x128xf32, #tpu.memory_space<vmem>>, vector<1x1x128xf32>
      %92 = vector.shape_cast %91 : vector<1x1x128xf32> to vector<1x128xf32>
      %cst_50 = arith.constant 0.000000e+00 : f32
      %93 = vector.broadcast %cst_50 : f32 to vector<1x128xf32>
      %94 = arith.cmpf oeq, %92, %93 : vector<1x128xf32>
      %cst_51 = arith.constant 1.000000e+00 : f32
      %cst_52 = arith.constant 0.000000e+00 : f32
      %95 = vector.broadcast %cst_51 : f32 to vector<1x128xf32>
      %96 = vector.broadcast %cst_52 : f32 to vector<1x128xf32>
      %97 = arith.select %94, %95, %96 : vector<1x128xi1>, vector<1x128xf32>
      %98 = tpu.transpose %87, [1, 0] : vector<128x128xf32> -> vector<128x128xf32>
      %99 = vector.broadcast %97 : vector<1x128xf32> to vector<128x128xf32>
      %100 = arith.mulf %98, %99 : vector<128x128xf32>
      %101 = tpu.transpose %90, [1, 0] : vector<128x128xf32> -> vector<128x128xf32>
      %102 = vector.broadcast %97 : vector<1x128xf32> to vector<128x128xf32>
      %103 = arith.mulf %101, %102 : vector<128x128xf32>
      %104 = vector.extract_strided_slice %100 {offsets = [0, 0], sizes = [32, 128], strides = [1, 1]} : vector<128x128xf32> to vector<32x128xf32>
      %c0_53 = arith.constant 0 : index
      %c0_54 = arith.constant 0 : index
      %105 = vector.load %arg9[%c0_53, %c0_54] : memref<256x128xf32, #tpu.memory_space<vmem>>, vector<32x128xf32>
      tpu.vector_store %arg9[%c0_53, %c0_54], %104 {strides = array<i32>} : memref<256x128xf32, #tpu.memory_space<vmem>>, vector<32x128xf32>,
      %106 = vector.extract_strided_slice %103 {offsets = [0, 0], sizes = [32, 128], strides = [1, 1]} : vector<128x128xf32> to vector<32x128xf32>
      %c32 = arith.constant 32 : index
      %c0_55 = arith.constant 0 : index
      %107 = vector.load %arg9[%c32, %c0_55] : memref<256x128xf32, #tpu.memory_space<vmem>>, vector<32x128xf32>
      tpu.vector_store %arg9[%c32, %c0_55], %106 {strides = array<i32>} : memref<256x128xf32, #tpu.memory_space<vmem>>, vector<32x128xf32>,
      %108 = vector.extract_strided_slice %100 {offsets = [32, 0], sizes = [32, 128], strides = [1, 1]} : vector<128x128xf32> to vector<32x128xf32>
      %c64_56 = arith.constant 64 : index
      %c0_57 = arith.constant 0 : index
      %109 = vector.load %arg9[%c64_56, %c0_57] : memref<256x128xf32, #tpu.memory_space<vmem>>, vector<32x128xf32>
      tpu.vector_store %arg9[%c64_56, %c0_57], %108 {strides = array<i32>} : memref<256x128xf32, #tpu.memory_space<vmem>>, vector<32x128xf32>,
      %110 = vector.extract_strided_slice %103 {offsets = [32, 0], sizes = [32, 128], strides = [1, 1]} : vector<128x128xf32> to vector<32x128xf32>
      %c96 = arith.constant 96 : index
      %c0_58 = arith.constant 0 : index
      %111 = vector.load %arg9[%c96, %c0_58] : memref<256x128xf32, #tpu.memory_space<vmem>>, vector<32x128xf32>
      tpu.vector_store %arg9[%c96, %c0_58], %110 {strides = array<i32>} : memref<256x128xf32, #tpu.memory_space<vmem>>, vector<32x128xf32>,
      %112 = vector.extract_strided_slice %100 {offsets = [64, 0], sizes = [32, 128], strides = [1, 1]} : vector<128x128xf32> to vector<32x128xf32>
      %c128_59 = arith.constant 128 : index
      %c0_60 = arith.constant 0 : index
      %113 = vector.load %arg9[%c128_59, %c0_60] : memref<256x128xf32, #tpu.memory_space<vmem>>, vector<32x128xf32>
      tpu.vector_store %arg9[%c128_59, %c0_60], %112 {strides = array<i32>} : memref<256x128xf32, #tpu.memory_space<vmem>>, vector<32x128xf32>,
      %114 = vector.extract_strided_slice %103 {offsets = [64, 0], sizes = [32, 128], strides = [1, 1]} : vector<128x128xf32> to vector<32x128xf32>
      %c160 = arith.constant 160 : index
      %c0_61 = arith.constant 0 : index
      %115 = vector.load %arg9[%c160, %c0_61] : memref<256x128xf32, #tpu.memory_space<vmem>>, vector<32x128xf32>
      tpu.vector_store %arg9[%c160, %c0_61], %114 {strides = array<i32>} : memref<256x128xf32, #tpu.memory_space<vmem>>, vector<32x128xf32>,
      %116 = vector.extract_strided_slice %100 {offsets = [96, 0], sizes = [32, 128], strides = [1, 1]} : vector<128x128xf32> to vector<32x128xf32>
      %c192_62 = arith.constant 192 : index
      %c0_63 = arith.constant 0 : index
      %117 = vector.load %arg9[%c192_62, %c0_63] : memref<256x128xf32, #tpu.memory_space<vmem>>, vector<32x128xf32>
      tpu.vector_store %arg9[%c192_62, %c0_63], %116 {strides = array<i32>} : memref<256x128xf32, #tpu.memory_space<vmem>>, vector<32x128xf32>,
      %118 = vector.extract_strided_slice %103 {offsets = [96, 0], sizes = [32, 128], strides = [1, 1]} : vector<128x128xf32> to vector<32x128xf32>
      %c224 = arith.constant 224 : index
      %c0_64 = arith.constant 0 : index
      %119 = vector.load %arg9[%c224, %c0_64] : memref<256x128xf32, #tpu.memory_space<vmem>>, vector<32x128xf32>
      tpu.vector_store %arg9[%c224, %c0_64], %118 {strides = array<i32>} : memref<256x128xf32, #tpu.memory_space<vmem>>, vector<32x128xf32>,
    } else {
    }
    %c128_i32 = arith.constant 128 : i32
    %3 = arith.muli %arg1, %c128_i32 : i32
    %4 = tpu.assume_multiple %3, 128 : i32
    %c0 = arith.constant 0 : index
    %5 = arith.index_cast %4 : i32 to index
    %c0_1 = arith.constant 0 : index
    %6 = vector.load %arg2[%c0, %5, %c0_1] : memref<1x128x128xf32, #tpu.memory_space<vmem>>, vector<1x128x128xf32>
    %7 = vector.shape_cast %6 : vector<1x128x128xf32> to vector<128x128xf32>
    %c0_2 = arith.constant 0 : index
    %c0_3 = arith.constant 0 : index
    %8 = vector.load %arg3[%c0_2, %c0_3] : memref<128x512xf32, #tpu.memory_space<vmem>>, vector<128x256xf32>
    %cst = arith.constant dense<0.000000e+00> : vector<128x256xf32>
    %9 = tpu.matmul %7, %8, %cst {dimension_numbers = #tpu.dot_dimension_numbers<[1], [0], [0], [1], [0, 0, 1, 1], [], []>} : vector<128x128xf32>, vector<128x256xf32>, vector<128x256xf32> -> vector<128x256xf32>
    %c0_4 = arith.constant 0 : index
    %c0_5 = arith.constant 0 : index
    %10 = vector.load %arg4[%c0_4, %c0_5] : memref<1x512xf32, #tpu.memory_space<vmem>>, vector<1x256xf32>
    %11 = vector.broadcast %10 : vector<1x256xf32> to vector<128x256xf32>
    %12 = arith.addf %9, %11 : vector<128x256xf32>
    %13 = vector.extract_strided_slice %12 {offsets = [0, 0], sizes = [128, 128], strides = [1, 1]} : vector<128x256xf32> to vector<128x128xf32>
    %14 = vector.extract_strided_slice %12 {offsets = [0, 128], sizes = [128, 128], strides = [1, 1]} : vector<128x256xf32> to vector<128x128xf32>
    %15 = arith.index_cast %4 : i32 to index
    %c0_6 = arith.constant 0 : index
    %16 = vector.load %arg5[%15, %c0_6] : memref<128x128xf32, #tpu.memory_space<vmem>>, vector<128x128xf32>
    %17 = arith.index_cast %4 : i32 to index
    %c0_7 = arith.constant 0 : index
    %18 = vector.load %arg6[%17, %c0_7] : memref<128x128xf32, #tpu.memory_space<vmem>>, vector<128x128xf32>
    %19 = arith.mulf %13, %16 : vector<128x128xf32>
    %20 = arith.mulf %14, %18 : vector<128x128xf32>
    %21 = arith.subf %19, %20 : vector<128x128xf32>
    %22 = arith.mulf %14, %16 : vector<128x128xf32>
    %23 = arith.mulf %13, %18 : vector<128x128xf32>
    %24 = arith.addf %22, %23 : vector<128x128xf32>
    %25 = tpu.iota {dimensions = array<i32: 0>} : vector<128x128xi32>
    %c128_i32_8 = arith.constant 128 : i32
    %26 = arith.muli %arg1, %c128_i32_8 : i32
    %27 = vector.broadcast %26 : i32 to vector<128x128xi32>
    %28 = arith.addi %25, %27 : vector<128x128xi32>
    %29 = tpu.iota {dimensions = array<i32: 1>} : vector<128x128xi32>
    %c0_9 = arith.constant 0 : index
    %c0_10 = arith.constant 0 : index
    %c0_11 = arith.constant 0 : index
    %30 = vector.load %arg7[%c0_9, %c0_10, %c0_11] : memref<1x1x128xf32, #tpu.memory_space<vmem>>, vector<1x1x128xf32>
    %31 = vector.shape_cast %30 : vector<1x1x128xf32> to vector<1x128xf32>
    %32 = arith.cmpi slt, %29, %28 : vector<128x128xi32>
    %cst_12 = arith.constant -1.250000e+11 : f32
    %cst_13 = arith.constant 0.000000e+00 : f32
    %33 = vector.broadcast %cst_12 : f32 to vector<128x128xf32>
    %34 = vector.broadcast %cst_13 : f32 to vector<128x128xf32>
    %35 = arith.select %32, %33, %34 : vector<128x128xi1>, vector<128x128xf32>
    %36 = vector.broadcast %31 : vector<1x128xf32> to vector<128x128xf32>
    %37 = arith.addf %36, %35 : vector<128x128xf32>
    %38 = vector.extract_strided_slice %21 {offsets = [0, 0], sizes = [128, 32], strides = [1, 1]} : vector<128x128xf32> to vector<128x32xf32>
    %39 = vector.extract_strided_slice %24 {offsets = [0, 0], sizes = [128, 32], strides = [1, 1]} : vector<128x128xf32> to vector<128x32xf32>
    %40 = tpu.concatenate %38, %39 in 1 : vector<128x32xf32>, vector<128x32xf32> -> vector<128x64xf32>
    %c0_14 = arith.constant 0 : index
    %c0_15 = arith.constant 0 : index
    %41 = vector.load %arg9[%c0_14, %c0_15] : memref<256x128xf32, #tpu.memory_space<vmem>>, vector<64x128xf32>
    %cst_16 = arith.constant dense<0.000000e+00> : vector<128x128xf32>
    %42 = tpu.matmul %40, %41, %cst_16 {dimension_numbers = #tpu.dot_dimension_numbers<[1], [0], [0], [1], [0, 0, 1, 1], [], []>} : vector<128x64xf32>, vector<64x128xf32>, vector<128x128xf32> -> vector<128x128xf32>
    %43 = arith.addf %42, %37 : vector<128x128xf32>
    %c0_17 = arith.constant 0 : index
    %c0_18 = arith.constant 0 : index
    %c0_19 = arith.constant 0 : index
    %c0_20 = arith.constant 0 : index
    %44 = vector.load %arg8[%c0_17, %c0_18, %c0_19, %c0_20] : memref<1x4x128x128xf32, #tpu.memory_space<vmem>>, vector<1x1x128x128xf32>
    %45 = vector.shape_cast %44 : vector<1x1x128x128xf32> to vector<128x128xf32>
    %46 = vector.shape_cast %43 : vector<128x128xf32> to vector<1x1x128x128xf32>
    tpu.vector_store %arg8[%c0_17, %c0_18, %c0_19, %c0_20], %46 {strides = array<i32>} : memref<1x4x128x128xf32, #tpu.memory_space<vmem>>, vector<1x1x128x128xf32>,
    %47 = vector.extract_strided_slice %21 {offsets = [0, 32], sizes = [128, 32], strides = [1, 1]} : vector<128x128xf32> to vector<128x32xf32>
    %48 = vector.extract_strided_slice %24 {offsets = [0, 32], sizes = [128, 32], strides = [1, 1]} : vector<128x128xf32> to vector<128x32xf32>
    %49 = tpu.concatenate %47, %48 in 1 : vector<128x32xf32>, vector<128x32xf32> -> vector<128x64xf32>
    %c64 = arith.constant 64 : index
    %c0_21 = arith.constant 0 : index
    %50 = vector.load %arg9[%c64, %c0_21] : memref<256x128xf32, #tpu.memory_space<vmem>>, vector<64x128xf32>
    %cst_22 = arith.constant dense<0.000000e+00> : vector<128x128xf32>
    %51 = tpu.matmul %49, %50, %cst_22 {dimension_numbers = #tpu.dot_dimension_numbers<[1], [0], [0], [1], [0, 0, 1, 1], [], []>} : vector<128x64xf32>, vector<64x128xf32>, vector<128x128xf32> -> vector<128x128xf32>
    %52 = arith.addf %51, %37 : vector<128x128xf32>
    %c0_23 = arith.constant 0 : index
    %c1 = arith.constant 1 : index
    %c0_24 = arith.constant 0 : index
    %c0_25 = arith.constant 0 : index
    %53 = vector.load %arg8[%c0_23, %c1, %c0_24, %c0_25] : memref<1x4x128x128xf32, #tpu.memory_space<vmem>>, vector<1x1x128x128xf32>
    %54 = vector.shape_cast %53 : vector<1x1x128x128xf32> to vector<128x128xf32>
    %55 = vector.shape_cast %52 : vector<128x128xf32> to vector<1x1x128x128xf32>
    tpu.vector_store %arg8[%c0_23, %c1, %c0_24, %c0_25], %55 {strides = array<i32>} : memref<1x4x128x128xf32, #tpu.memory_space<vmem>>, vector<1x1x128x128xf32>,
    %56 = vector.extract_strided_slice %21 {offsets = [0, 64], sizes = [128, 32], strides = [1, 1]} : vector<128x128xf32> to vector<128x32xf32>
    %57 = vector.extract_strided_slice %24 {offsets = [0, 64], sizes = [128, 32], strides = [1, 1]} : vector<128x128xf32> to vector<128x32xf32>
    %58 = tpu.concatenate %56, %57 in 1 : vector<128x32xf32>, vector<128x32xf32> -> vector<128x64xf32>
    %c128 = arith.constant 128 : index
    %c0_26 = arith.constant 0 : index
    %59 = vector.load %arg9[%c128, %c0_26] : memref<256x128xf32, #tpu.memory_space<vmem>>, vector<64x128xf32>
    %cst_27 = arith.constant dense<0.000000e+00> : vector<128x128xf32>
    %60 = tpu.matmul %58, %59, %cst_27 {dimension_numbers = #tpu.dot_dimension_numbers<[1], [0], [0], [1], [0, 0, 1, 1], [], []>} : vector<128x64xf32>, vector<64x128xf32>, vector<128x128xf32> -> vector<128x128xf32>
    %61 = arith.addf %60, %37 : vector<128x128xf32>
    %c0_28 = arith.constant 0 : index
    %c2 = arith.constant 2 : index
    %c0_29 = arith.constant 0 : index
    %c0_30 = arith.constant 0 : index
    %62 = vector.load %arg8[%c0_28, %c2, %c0_29, %c0_30] : memref<1x4x128x128xf32, #tpu.memory_space<vmem>>, vector<1x1x128x128xf32>
    %63 = vector.shape_cast %62 : vector<1x1x128x128xf32> to vector<128x128xf32>
    %64 = vector.shape_cast %61 : vector<128x128xf32> to vector<1x1x128x128xf32>
    tpu.vector_store %arg8[%c0_28, %c2, %c0_29, %c0_30], %64 {strides = array<i32>} : memref<1x4x128x128xf32, #tpu.memory_space<vmem>>, vector<1x1x128x128xf32>,
    %65 = vector.extract_strided_slice %21 {offsets = [0, 96], sizes = [128, 32], strides = [1, 1]} : vector<128x128xf32> to vector<128x32xf32>
    %66 = vector.extract_strided_slice %24 {offsets = [0, 96], sizes = [128, 32], strides = [1, 1]} : vector<128x128xf32> to vector<128x32xf32>
    %67 = tpu.concatenate %65, %66 in 1 : vector<128x32xf32>, vector<128x32xf32> -> vector<128x64xf32>
    %c192 = arith.constant 192 : index
    %c0_31 = arith.constant 0 : index
    %68 = vector.load %arg9[%c192, %c0_31] : memref<256x128xf32, #tpu.memory_space<vmem>>, vector<64x128xf32>
    %cst_32 = arith.constant dense<0.000000e+00> : vector<128x128xf32>
    %69 = tpu.matmul %67, %68, %cst_32 {dimension_numbers = #tpu.dot_dimension_numbers<[1], [0], [0], [1], [0, 0, 1, 1], [], []>} : vector<128x64xf32>, vector<64x128xf32>, vector<128x128xf32> -> vector<128x128xf32>
    %70 = arith.addf %69, %37 : vector<128x128xf32>
    %c0_33 = arith.constant 0 : index
    %c3 = arith.constant 3 : index
    %c0_34 = arith.constant 0 : index
    %c0_35 = arith.constant 0 : index
    %71 = vector.load %arg8[%c0_33, %c3, %c0_34, %c0_35] : memref<1x4x128x128xf32, #tpu.memory_space<vmem>>, vector<1x1x128x128xf32>
    %72 = vector.shape_cast %71 : vector<1x1x128x128xf32> to vector<128x128xf32>
    %73 = vector.shape_cast %70 : vector<128x128xf32> to vector<1x1x128x128xf32>
    tpu.vector_store %arg8[%c0_33, %c3, %c0_34, %c0_35], %73 {strides = array<i32>} : memref<1x4x128x128xf32, #tpu.memory_space<vmem>>, vector<1x1x128x128xf32>,
    return
  }
  func.func @transform_0(%arg0: i32, %arg1: i32) -> (i32, i32, i32) {
    %c0_i32 = arith.constant 0 : i32
    %c0_i32_0 = arith.constant 0 : i32
    %c0_i32_1 = arith.constant 0 : i32
    return %arg0, %c0_i32, %c0_i32_0 : i32, i32, i32
  }
  func.func @transform_1(%arg0: i32, %arg1: i32) -> (i32, i32) {
    %c0_i32 = arith.constant 0 : i32
    %c0_i32_0 = arith.constant 0 : i32
    %c0_i32_1 = arith.constant 0 : i32
    return %c0_i32, %c0_i32_0 : i32, i32
  }
  func.func @transform_2(%arg0: i32, %arg1: i32) -> (i32, i32) {
    %c0_i32 = arith.constant 0 : i32
    %c0_i32_0 = arith.constant 0 : i32
    %c0_i32_1 = arith.constant 0 : i32
    return %c0_i32, %c0_i32_0 : i32, i32
  }
  func.func @transform_3(%arg0: i32, %arg1: i32) -> (i32, i32) {
    %c0_i32 = arith.constant 0 : i32
    %c0_i32_0 = arith.constant 0 : i32
    %c0_i32_1 = arith.constant 0 : i32
    return %c0_i32, %c0_i32_0 : i32, i32
  }
  func.func @transform_4(%arg0: i32, %arg1: i32) -> (i32, i32) {
    %c0_i32 = arith.constant 0 : i32
    %c0_i32_0 = arith.constant 0 : i32
    %c0_i32_1 = arith.constant 0 : i32
    return %c0_i32, %c0_i32_0 : i32, i32
  }
  func.func @transform_5(%arg0: i32, %arg1: i32) -> (i32, i32, i32) {
    %c0_i32 = arith.constant 0 : i32
    %c0_i32_0 = arith.constant 0 : i32
    %c0_i32_1 = arith.constant 0 : i32
    return %arg0, %c0_i32, %c0_i32_0 : i32, i32, i32
  }
  func.func @transform_6(%arg0: i32, %arg1: i32) -> (i32, i32, i32, i32) {
    %c0_i32 = arith.constant 0 : i32
    %c0_i32_0 = arith.constant 0 : i32
    %c0_i32_1 = arith.constant 0 : i32
    return %arg0, %c0_i32, %arg1, %c0_i32_0 : i32, i32, i32, i32
  }
}

module attributes {stable_mosaic.version = 11 : i64} {
  func.func @kernel(%arg0: i32, %arg1: i32, %arg2: memref<1x128x128xf32, #tpu.memory_space<vmem>>, %arg3: memref<128x512xf32, #tpu.memory_space<vmem>>, %arg4: memref<1x512xf32, #tpu.memory_space<vmem>>, %arg5: memref<128x128xf32, #tpu.memory_space<vmem>>, %arg6: memref<128x128xf32, #tpu.memory_space<vmem>>, %arg7: memref<1x1x128xf32, #tpu.memory_space<vmem>>, %arg8: memref<1x4x128x128xf32, #tpu.memory_space<vmem>>, %arg9: memref<256x128xf32, #tpu.memory_space<vmem>>) attributes {dimension_semantics = [#tpu.dimension_semantics<parallel>, #tpu.dimension_semantics<arbitrary>], iteration_bounds = array<i64: 2, 1>, scalar_prefetch = 0 : i64, scratch_operands = 1 : i64, tpu.core_type = #tpu.core_type<tc>, window_params = [{transform_indices = @transform_0, window_bounds = array<i64: 1, 128, 128>}, {pipeline_mode = #tpu.pipeline_mode<synchronous>, transform_indices = @transform_1, window_bounds = array<i64: 128, 512>}, {pipeline_mode = #tpu.pipeline_mode<synchronous>, transform_indices = @transform_2, window_bounds = array<i64: 1, 512>}, {pipeline_mode = #tpu.pipeline_mode<synchronous>, transform_indices = @transform_3, window_bounds = array<i64: 128, 128>}, {pipeline_mode = #tpu.pipeline_mode<synchronous>, transform_indices = @transform_4, window_bounds = array<i64: 128, 128>}, {transform_indices = @transform_5, window_bounds = array<i64: 1, 1, 128>}, {transform_indices = @transform_6, window_bounds = array<i64: 1, 4, 128, 128>}]} {
    %c0_i32 = arith.constant 0 : i32
    %0 = arith.cmpi eq, %arg1, %c0_i32 : i32
    %1 = arith.extui %0 : i1 to i32
    %c0_i32_0 = arith.constant 0 : i32
    %2 = arith.cmpi ne, %1, %c0_i32_0 : i32
    scf.if %2 {
      %c0_36 = arith.constant 0 : index
      %c0_37 = arith.constant 0 : index
      %c0_38 = arith.constant 0 : index
      %74 = vector.load %arg2[%c0_36, %c0_37, %c0_38] : memref<1x128x128xf32, #tpu.memory_space<vmem>>, vector<1x128x128xf32>
      %75 = vector.shape_cast %74 : vector<1x128x128xf32> to vector<128x128xf32>
      %c0_39 = arith.constant 0 : index
      %c256 = arith.constant 256 : index
      %76 = vector.load %arg3[%c0_39, %c256] : memref<128x512xf32, #tpu.memory_space<vmem>>, vector<128x256xf32>
      %cst_40 = arith.constant dense<0.000000e+00> : vector<128x256xf32>
      %77 = tpu.matmul %75, %76, %cst_40 {dimension_numbers = #tpu.dot_dimension_numbers<[1], [0], [0], [1], [0, 0, 1, 1], [], []>} : vector<128x128xf32>, vector<128x256xf32>, vector<128x256xf32> -> vector<128x256xf32>
      %c0_41 = arith.constant 0 : index
      %c256_42 = arith.constant 256 : index
      %78 = vector.load %arg4[%c0_41, %c256_42] : memref<1x512xf32, #tpu.memory_space<vmem>>, vector<1x256xf32>
      %79 = vector.broadcast %78 : vector<1x256xf32> to vector<128x256xf32>
      %80 = arith.addf %77, %79 : vector<128x256xf32>
      %81 = vector.extract_strided_slice %80 {offsets = [0, 0], sizes = [128, 128], strides = [1, 1]} : vector<128x256xf32> to vector<128x128xf32>
      %82 = vector.extract_strided_slice %80 {offsets = [0, 128], sizes = [128, 128], strides = [1, 1]} : vector<128x256xf32> to vector<128x128xf32>
      %c0_43 = arith.constant 0 : index
      %c0_44 = arith.constant 0 : index
      %83 = vector.load %arg5[%c0_43, %c0_44] : memref<128x128xf32, #tpu.memory_space<vmem>>, vector<128x128xf32>
      %c0_45 = arith.constant 0 : index
      %c0_46 = arith.constant 0 : index
      %84 = vector.load %arg6[%c0_45, %c0_46] : memref<128x128xf32, #tpu.memory_space<vmem>>, vector<128x128xf32>
      %85 = arith.mulf %81, %83 : vector<128x128xf32>
      %86 = arith.mulf %82, %84 : vector<128x128xf32>
      %87 = arith.subf %85, %86 : vector<128x128xf32>
      %88 = arith.mulf %82, %83 : vector<128x128xf32>
      %89 = arith.mulf %81, %84 : vector<128x128xf32>
      %90 = arith.addf %88, %89 : vector<128x128xf32>
      %c0_47 = arith.constant 0 : index
      %c0_48 = arith.constant 0 : index
      %c0_49 = arith.constant 0 : index
      %91 = vector.load %arg7[%c0_47, %c0_48, %c0_49] : memref<1x1x128xf32, #tpu.memory_space<vmem>>, vector<1x1x128xf32>
      %92 = vector.shape_cast %91 : vector<1x1x128xf32> to vector<1x128xf32>
      %cst_50 = arith.constant 0.000000e+00 : f32
      %93 = vector.broadcast %cst_50 : f32 to vector<1x128xf32>
      %94 = arith.cmpf oeq, %92, %93 : vector<1x128xf32>
      %cst_51 = arith.constant 1.000000e+00 : f32
      %cst_52 = arith.constant 0.000000e+00 : f32
      %95 = vector.broadcast %cst_51 : f32 to vector<1x128xf32>
      %96 = vector.broadcast %cst_52 : f32 to vector<1x128xf32>
      %97 = arith.select %94, %95, %96 : vector<1x128xi1>, vector<1x128xf32>
      %98 = tpu.transpose %87, [1, 0] : vector<128x128xf32> -> vector<128x128xf32>
      %99 = vector.broadcast %97 : vector<1x128xf32> to vector<128x128xf32>
      %100 = arith.mulf %98, %99 : vector<128x128xf32>
      %101 = tpu.transpose %90, [1, 0] : vector<128x128xf32> -> vector<128x128xf32>
      %102 = vector.broadcast %97 : vector<1x128xf32> to vector<128x128xf32>
      %103 = arith.mulf %101, %102 : vector<128x128xf32>
      %104 = vector.extract_strided_slice %100 {offsets = [0, 0], sizes = [32, 128], strides = [1, 1]} : vector<128x128xf32> to vector<32x128xf32>
      %c0_53 = arith.constant 0 : index
      %c0_54 = arith.constant 0 : index
      %105 = vector.load %arg9[%c0_53, %c0_54] : memref<256x128xf32, #tpu.memory_space<vmem>>, vector<32x128xf32>
      tpu.vector_store %arg9[%c0_53, %c0_54], %104 {strides = array<i32>} : memref<256x128xf32, #tpu.memory_space<vmem>>, vector<32x128xf32>,
      %106 = vector.extract_strided_slice %103 {offsets = [0, 0], sizes = [32, 128], strides = [1, 1]} : vector<128x128xf32> to vector<32x128xf32>
      %c32 = arith.constant 32 : index
      %c0_55 = arith.constant 0 : index
      %107 = vector.load %arg9[%c32, %c0_55] : memref<256x128xf32, #tpu.memory_space<vmem>>, vector<32x128xf32>
      tpu.vector_store %arg9[%c32, %c0_55], %106 {strides = array<i32>} : memref<256x128xf32, #tpu.memory_space<vmem>>, vector<32x128xf32>,
      %108 = vector.extract_strided_slice %100 {offsets = [32, 0], sizes = [32, 128], strides = [1, 1]} : vector<128x128xf32> to vector<32x128xf32>
      %c64_56 = arith.constant 64 : index
      %c0_57 = arith.constant 0 : index
      %109 = vector.load %arg9[%c64_56, %c0_57] : memref<256x128xf32, #tpu.memory_space<vmem>>, vector<32x128xf32>
      tpu.vector_store %arg9[%c64_56, %c0_57], %108 {strides = array<i32>} : memref<256x128xf32, #tpu.memory_space<vmem>>, vector<32x128xf32>,
      %110 = vector.extract_strided_slice %103 {offsets = [32, 0], sizes = [32, 128], strides = [1, 1]} : vector<128x128xf32> to vector<32x128xf32>
      %c96 = arith.constant 96 : index
      %c0_58 = arith.constant 0 : index
      %111 = vector.load %arg9[%c96, %c0_58] : memref<256x128xf32, #tpu.memory_space<vmem>>, vector<32x128xf32>
      tpu.vector_store %arg9[%c96, %c0_58], %110 {strides = array<i32>} : memref<256x128xf32, #tpu.memory_space<vmem>>, vector<32x128xf32>,
      %112 = vector.extract_strided_slice %100 {offsets = [64, 0], sizes = [32, 128], strides = [1, 1]} : vector<128x128xf32> to vector<32x128xf32>
      %c128_59 = arith.constant 128 : index
      %c0_60 = arith.constant 0 : index
      %113 = vector.load %arg9[%c128_59, %c0_60] : memref<256x128xf32, #tpu.memory_space<vmem>>, vector<32x128xf32>
      tpu.vector_store %arg9[%c128_59, %c0_60], %112 {strides = array<i32>} : memref<256x128xf32, #tpu.memory_space<vmem>>, vector<32x128xf32>,
      %114 = vector.extract_strided_slice %103 {offsets = [64, 0], sizes = [32, 128], strides = [1, 1]} : vector<128x128xf32> to vector<32x128xf32>
      %c160 = arith.constant 160 : index
      %c0_61 = arith.constant 0 : index
      %115 = vector.load %arg9[%c160, %c0_61] : memref<256x128xf32, #tpu.memory_space<vmem>>, vector<32x128xf32>
      tpu.vector_store %arg9[%c160, %c0_61], %114 {strides = array<i32>} : memref<256x128xf32, #tpu.memory_space<vmem>>, vector<32x128xf32>,
      %116 = vector.extract_strided_slice %100 {offsets = [96, 0], sizes = [32, 128], strides = [1, 1]} : vector<128x128xf32> to vector<32x128xf32>
      %c192_62 = arith.constant 192 : index
      %c0_63 = arith.constant 0 : index
      %117 = vector.load %arg9[%c192_62, %c0_63] : memref<256x128xf32, #tpu.memory_space<vmem>>, vector<32x128xf32>
      tpu.vector_store %arg9[%c192_62, %c0_63], %116 {strides = array<i32>} : memref<256x128xf32, #tpu.memory_space<vmem>>, vector<32x128xf32>,
      %118 = vector.extract_strided_slice %103 {offsets = [96, 0], sizes = [32, 128], strides = [1, 1]} : vector<128x128xf32> to vector<32x128xf32>
      %c224 = arith.constant 224 : index
      %c0_64 = arith.constant 0 : index
      %119 = vector.load %arg9[%c224, %c0_64] : memref<256x128xf32, #tpu.memory_space<vmem>>, vector<32x128xf32>
      tpu.vector_store %arg9[%c224, %c0_64], %118 {strides = array<i32>} : memref<256x128xf32, #tpu.memory_space<vmem>>, vector<32x128xf32>,
    } else {
    }
    %c128_i32 = arith.constant 128 : i32
    %3 = arith.muli %arg1, %c128_i32 : i32
    %4 = tpu.assume_multiple %3, 128 : i32
    %c0 = arith.constant 0 : index
    %5 = arith.index_cast %4 : i32 to index
    %c0_1 = arith.constant 0 : index
    %6 = vector.load %arg2[%c0, %5, %c0_1] : memref<1x128x128xf32, #tpu.memory_space<vmem>>, vector<1x128x128xf32>
    %7 = vector.shape_cast %6 : vector<1x128x128xf32> to vector<128x128xf32>
    %c0_2 = arith.constant 0 : index
    %c0_3 = arith.constant 0 : index
    %8 = vector.load %arg3[%c0_2, %c0_3] : memref<128x512xf32, #tpu.memory_space<vmem>>, vector<128x256xf32>
    %cst = arith.constant dense<0.000000e+00> : vector<128x256xf32>
    %9 = tpu.matmul %7, %8, %cst {dimension_numbers = #tpu.dot_dimension_numbers<[1], [0], [0], [1], [0, 0, 1, 1], [], []>} : vector<128x128xf32>, vector<128x256xf32>, vector<128x256xf32> -> vector<128x256xf32>
    %c0_4 = arith.constant 0 : index
    %c0_5 = arith.constant 0 : index
    %10 = vector.load %arg4[%c0_4, %c0_5] : memref<1x512xf32, #tpu.memory_space<vmem>>, vector<1x256xf32>
    %11 = vector.broadcast %10 : vector<1x256xf32> to vector<128x256xf32>
    %12 = arith.addf %9, %11 : vector<128x256xf32>
    %13 = vector.extract_strided_slice %12 {offsets = [0, 0], sizes = [128, 128], strides = [1, 1]} : vector<128x256xf32> to vector<128x128xf32>
    %14 = vector.extract_strided_slice %12 {offsets = [0, 128], sizes = [128, 128], strides = [1, 1]} : vector<128x256xf32> to vector<128x128xf32>
    %15 = arith.index_cast %4 : i32 to index
    %c0_6 = arith.constant 0 : index
    %16 = vector.load %arg5[%15, %c0_6] : memref<128x128xf32, #tpu.memory_space<vmem>>, vector<128x128xf32>
    %17 = arith.index_cast %4 : i32 to index
    %c0_7 = arith.constant 0 : index
    %18 = vector.load %arg6[%17, %c0_7] : memref<128x128xf32, #tpu.memory_space<vmem>>, vector<128x128xf32>
    %19 = arith.mulf %13, %16 : vector<128x128xf32>
    %20 = arith.mulf %14, %18 : vector<128x128xf32>
    %21 = arith.subf %19, %20 : vector<128x128xf32>
    %22 = arith.mulf %14, %16 : vector<128x128xf32>
    %23 = arith.mulf %13, %18 : vector<128x128xf32>
    %24 = arith.addf %22, %23 : vector<128x128xf32>
    %25 = tpu.iota {dimensions = array<i32: 0>} : vector<128x128xi32>
    %c128_i32_8 = arith.constant 128 : i32
    %26 = arith.muli %arg1, %c128_i32_8 : i32
    %27 = vector.broadcast %26 : i32 to vector<128x128xi32>
    %28 = arith.addi %25, %27 : vector<128x128xi32>
    %29 = tpu.iota {dimensions = array<i32: 1>} : vector<128x128xi32>
    %c0_9 = arith.constant 0 : index
    %c0_10 = arith.constant 0 : index
    %c0_11 = arith.constant 0 : index
    %30 = vector.load %arg7[%c0_9, %c0_10, %c0_11] : memref<1x1x128xf32, #tpu.memory_space<vmem>>, vector<1x1x128xf32>
    %31 = vector.shape_cast %30 : vector<1x1x128xf32> to vector<1x128xf32>
    %32 = arith.cmpi slt, %29, %28 : vector<128x128xi32>
    %cst_12 = arith.constant -1.250000e+11 : f32
    %cst_13 = arith.constant 0.000000e+00 : f32
    %33 = vector.broadcast %cst_12 : f32 to vector<128x128xf32>
    %34 = vector.broadcast %cst_13 : f32 to vector<128x128xf32>
    %35 = arith.select %32, %33, %34 : vector<128x128xi1>, vector<128x128xf32>
    %36 = vector.broadcast %31 : vector<1x128xf32> to vector<128x128xf32>
    %37 = arith.addf %36, %35 : vector<128x128xf32>
    %38 = vector.extract_strided_slice %21 {offsets = [0, 0], sizes = [128, 32], strides = [1, 1]} : vector<128x128xf32> to vector<128x32xf32>
    %39 = vector.extract_strided_slice %24 {offsets = [0, 0], sizes = [128, 32], strides = [1, 1]} : vector<128x128xf32> to vector<128x32xf32>
    %40 = tpu.concatenate %38, %39 in 1 : vector<128x32xf32>, vector<128x32xf32> -> vector<128x64xf32>
    %c0_14 = arith.constant 0 : index
    %c0_15 = arith.constant 0 : index
    %41 = vector.load %arg9[%c0_14, %c0_15] : memref<256x128xf32, #tpu.memory_space<vmem>>, vector<64x128xf32>
    %cst_16 = arith.constant dense<0.000000e+00> : vector<128x128xf32>
    %42 = tpu.matmul %40, %41, %cst_16 {dimension_numbers = #tpu.dot_dimension_numbers<[1], [0], [0], [1], [0, 0, 1, 1], [], []>} : vector<128x64xf32>, vector<64x128xf32>, vector<128x128xf32> -> vector<128x128xf32>
    %43 = arith.addf %42, %37 : vector<128x128xf32>
    %c0_17 = arith.constant 0 : index
    %c0_18 = arith.constant 0 : index
    %c0_19 = arith.constant 0 : index
    %c0_20 = arith.constant 0 : index
    %44 = vector.load %arg8[%c0_17, %c0_18, %c0_19, %c0_20] : memref<1x4x128x128xf32, #tpu.memory_space<vmem>>, vector<1x1x128x128xf32>
    %45 = vector.shape_cast %44 : vector<1x1x128x128xf32> to vector<128x128xf32>
    %46 = vector.shape_cast %43 : vector<128x128xf32> to vector<1x1x128x128xf32>
    tpu.vector_store %arg8[%c0_17, %c0_18, %c0_19, %c0_20], %46 {strides = array<i32>} : memref<1x4x128x128xf32, #tpu.memory_space<vmem>>, vector<1x1x128x128xf32>,
    %47 = vector.extract_strided_slice %21 {offsets = [0, 32], sizes = [128, 32], strides = [1, 1]} : vector<128x128xf32> to vector<128x32xf32>
    %48 = vector.extract_strided_slice %24 {offsets = [0, 32], sizes = [128, 32], strides = [1, 1]} : vector<128x128xf32> to vector<128x32xf32>
    %49 = tpu.concatenate %47, %48 in 1 : vector<128x32xf32>, vector<128x32xf32> -> vector<128x64xf32>
    %c64 = arith.constant 64 : index
    %c0_21 = arith.constant 0 : index
    %50 = vector.load %arg9[%c64, %c0_21] : memref<256x128xf32, #tpu.memory_space<vmem>>, vector<64x128xf32>
    %cst_22 = arith.constant dense<0.000000e+00> : vector<128x128xf32>
    %51 = tpu.matmul %49, %50, %cst_22 {dimension_numbers = #tpu.dot_dimension_numbers<[1], [0], [0], [1], [0, 0, 1, 1], [], []>} : vector<128x64xf32>, vector<64x128xf32>, vector<128x128xf32> -> vector<128x128xf32>
    %52 = arith.addf %51, %37 : vector<128x128xf32>
    %c0_23 = arith.constant 0 : index
    %c1 = arith.constant 1 : index
    %c0_24 = arith.constant 0 : index
    %c0_25 = arith.constant 0 : index
    %53 = vector.load %arg8[%c0_23, %c1, %c0_24, %c0_25] : memref<1x4x128x128xf32, #tpu.memory_space<vmem>>, vector<1x1x128x128xf32>
    %54 = vector.shape_cast %53 : vector<1x1x128x128xf32> to vector<128x128xf32>
    %55 = vector.shape_cast %52 : vector<128x128xf32> to vector<1x1x128x128xf32>
    tpu.vector_store %arg8[%c0_23, %c1, %c0_24, %c0_25], %55 {strides = array<i32>} : memref<1x4x128x128xf32, #tpu.memory_space<vmem>>, vector<1x1x128x128xf32>,
    %56 = vector.extract_strided_slice %21 {offsets = [0, 64], sizes = [128, 32], strides = [1, 1]} : vector<128x128xf32> to vector<128x32xf32>
    %57 = vector.extract_strided_slice %24 {offsets = [0, 64], sizes = [128, 32], strides = [1, 1]} : vector<128x128xf32> to vector<128x32xf32>
    %58 = tpu.concatenate %56, %57 in 1 : vector<128x32xf32>, vector<128x32xf32> -> vector<128x64xf32>
    %c128 = arith.constant 128 : index
    %c0_26 = arith.constant 0 : index
    %59 = vector.load %arg9[%c128, %c0_26] : memref<256x128xf32, #tpu.memory_space<vmem>>, vector<64x128xf32>
    %cst_27 = arith.constant dense<0.000000e+00> : vector<128x128xf32>
    %60 = tpu.matmul %58, %59, %cst_27 {dimension_numbers = #tpu.dot_dimension_numbers<[1], [0], [0], [1], [0, 0, 1, 1], [], []>} : vector<128x64xf32>, vector<64x128xf32>, vector<128x128xf32> -> vector<128x128xf32>
    %61 = arith.addf %60, %37 : vector<128x128xf32>
    %c0_28 = arith.constant 0 : index
    %c2 = arith.constant 2 : index
    %c0_29 = arith.constant 0 : index
    %c0_30 = arith.constant 0 : index
    %62 = vector.load %arg8[%c0_28, %c2, %c0_29, %c0_30] : memref<1x4x128x128xf32, #tpu.memory_space<vmem>>, vector<1x1x128x128xf32>
    %63 = vector.shape_cast %62 : vector<1x1x128x128xf32> to vector<128x128xf32>
    %64 = vector.shape_cast %61 : vector<128x128xf32> to vector<1x1x128x128xf32>
    tpu.vector_store %arg8[%c0_28, %c2, %c0_29, %c0_30], %64 {strides = array<i32>} : memref<1x4x128x128xf32, #tpu.memory_space<vmem>>, vector<1x1x128x128xf32>,
    %65 = vector.extract_strided_slice %21 {offsets = [0, 96], sizes = [128, 32], strides = [1, 1]} : vector<128x128xf32> to vector<128x32xf32>
    %66 = vector.extract_strided_slice %24 {offsets = [0, 96], sizes = [128, 32], strides = [1, 1]} : vector<128x128xf32> to vector<128x32xf32>
    %67 = tpu.concatenate %65, %66 in 1 : vector<128x32xf32>, vector<128x32xf32> -> vector<128x64xf32>
    %c192 = arith.constant 192 : index
    %c0_31 = arith.constant 0 : index
    %68 = vector.load %arg9[%c192, %c0_31] : memref<256x128xf32, #tpu.memory_space<vmem>>, vector<64x128xf32>
    %cst_32 = arith.constant dense<0.000000e+00> : vector<128x128xf32>
    %69 = tpu.matmul %67, %68, %cst_32 {dimension_numbers = #tpu.dot_dimension_numbers<[1], [0], [0], [1], [0, 0, 1, 1], [], []>} : vector<128x64xf32>, vector<64x128xf32>, vector<128x128xf32> -> vector<128x128xf32>
    %70 = arith.addf %69, %37 : vector<128x128xf32>
    %c0_33 = arith.constant 0 : index
    %c3 = arith.constant 3 : index
    %c0_34 = arith.constant 0 : index
    %c0_35 = arith.constant 0 : index
    %71 = vector.load %arg8[%c0_33, %c3, %c0_34, %c0_35] : memref<1x4x128x128xf32, #tpu.memory_space<vmem>>, vector<1x1x128x128xf32>
    %72 = vector.shape_cast %71 : vector<1x1x128x128xf32> to vector<128x128xf32>
    %73 = vector.shape_cast %70 : vector<128x128xf32> to vector<1x1x128x128xf32>
    tpu.vector_store %arg8[%c0_33, %c3, %c0_34, %c0_35], %73 {strides = array<i32>} : memref<1x4x128x128xf32, #tpu.memory_space<vmem>>, vector<1x1x128x128xf32>,
    return
  }
  func.func @transform_0(%arg0: i32, %arg1: i32) -> (i32, i32, i32) {
    %c0_i32 = arith.constant 0 : i32
    %c0_i32_0 = arith.constant 0 : i32
    %c0_i32_1 = arith.constant 0 : i32
    return %arg0, %c0_i32, %c0_i32_0 : i32, i32, i32
  }
  func.func @transform_1(%arg0: i32, %arg1: i32) -> (i32, i32) {
    %c0_i32 = arith.constant 0 : i32
    %c0_i32_0 = arith.constant 0 : i32
    %c0_i32_1 = arith.constant 0 : i32
    return %c0_i32, %c0_i32_0 : i32, i32
  }
  func.func @transform_2(%arg0: i32, %arg1: i32) -> (i32, i32) {
    %c0_i32 = arith.constant 0 : i32
    %c0_i32_0 = arith.constant 0 : i32
    %c0_i32_1 = arith.constant 0 : i32
    return %c0_i32, %c0_i32_0 : i32, i32
  }
  func.func @transform_3(%arg0: i32, %arg1: i32) -> (i32, i32) {
    %c0_i32 = arith.constant 0 : i32
    %c0_i32_0 = arith.constant 0 : i32
    %c0_i32_1 = arith.constant 0 : i32
    return %c0_i32, %c0_i32_0 : i32, i32
  }
  func.func @transform_4(%arg0: i32, %arg1: i32) -> (i32, i32) {
    %c0_i32 = arith.constant 0 : i32
    %c0_i32_0 = arith.constant 0 : i32
    %c0_i32_1 = arith.constant 0 : i32
    return %c0_i32, %c0_i32_0 : i32, i32
  }
  func.func @transform_5(%arg0: i32, %arg1: i32) -> (i32, i32, i32) {
    %c0_i32 = arith.constant 0 : i32
    %c0_i32_0 = arith.constant 0 : i32
    %c0_i32_1 = arith.constant 0 : i32
    return %arg0, %c0_i32, %c0_i32_0 : i32, i32, i32
  }
  func.func @transform_6(%arg0: i32, %arg1: i32) -> (i32, i32, i32, i32) {
    %c0_i32 = arith.constant 0 : i32
    %c0_i32_0 = arith.constant 0 : i32
    %c0_i32_1 = arith.constant 0 : i32
    return %arg0, %c0_i32, %arg1, %c0_i32_0 : i32, i32, i32, i32
  }
}

</mosaic_0001>

<llo_original>
// kernel: tpu_custom_call.1
$region0: #{tpu_custom_call.1}
  #allocation0 [shape = 'u32[]', space=smem, size = 0x4, offset = 0x4, fixed_abs, tag = 'smem constant byte address 0x4 - core index']
  #allocation1 [shape = 'u32[144,128]{1,0:T(1,128)}', space=vmem, size = 0x12000, scoped, tag = 'internal scratch']
  #allocation2 [shape = 'f32[256,128]{1,0:T(8,128)}', space=vmem, size = 0x20000, scoped, tag = 'scratch operand']
  %s0 = inlined_call_operand.hbm [shape: f32[2,128,128], index: 0, kind: input, shape index: {}]
  %s1 = inlined_call_operand.hbm [shape: f32[128,512], index: 1, kind: input, shape index: {}]
  %s2 = inlined_call_operand.hbm [shape: f32[1,512], index: 2, kind: input, shape index: {}]
  %s3 = inlined_call_operand.hbm [shape: f32[128,128], index: 3, kind: input, shape index: {}]
  %s4 = inlined_call_operand.hbm [shape: f32[128,128], index: 4, kind: input, shape index: {}]
  %s5 = inlined_call_operand.vmem [shape: f32[2,1,128], index: 5, kind: input, shape index: {}]
  %s6 = inlined_call_operand.hbm [shape: f32[2,4,128,128], index: 6, kind: output, shape index: {}]
  %s7 = sld [smem:[#allocation0]]
  $region81: #{tpu_custom_call.1} parent=0
    _
  %s9 = ssub.s32 1, %s7
  %s10 = scalar_select 0, %s9, %s7
  $region1: #{tpu_custom_call.1} parent=0
    #allocation3 [shape = 'u8[65536]{0}', space=vmem, size = 0x10000, scoped, tag = 'input window, operand 0, single buffered']
    #allocation4 [shape = 's32[2]{0}', space=sflag, size = 0x8, scoped, tag = 'scoped memory for tpu_custom_call.1']
    #allocation5 [shape = 's32[2]{0}', space=sflag, size = 0x8, scoped, tag = 'scoped memory for tpu_custom_call.1']
    #allocation6 [shape = 'u8[262144]{0}', space=vmem, size = 0x40000, scoped, tag = 'input window, operand 1, single buffered']
    #allocation7 [shape = 's32[1]{0}', space=sflag, size = 0x4, scoped, tag = 'scoped memory for tpu_custom_call.1']
    #allocation8 [shape = 'u8[2048]{0}', space=vmem, size = 0x800, scoped, tag = 'input window, operand 2, single buffered']
    #allocation9 [shape = 'u8[65536]{0}', space=vmem, size = 0x10000, scoped, tag = 'input window, operand 3, single buffered']
    #allocation10 [shape = 's32[1]{0}', space=sflag, size = 0x4, scoped, tag = 'scoped memory for tpu_custom_call.1']
    #allocation11 [shape = 'u8[65536]{0}', space=vmem, size = 0x10000, scoped, tag = 'input window, operand 4, single buffered']
    #allocation12 [shape = 'u8[524288]{0}', space=vmem, size = 0x80000, scoped, tag = 'output window, operand 0']
    %11 = vsyncpa [#allocation4], 0
    %12 = vsyncpa [#allocation7], 0
    %13 = vsyncpa [#allocation10], 0
    %14 = vsyncpa [#allocation5], 0
    %s15 = scalar_lea.sflag [#allocation5], 1
    %16 = vsyncpa %s15, 0
    loop: start=0, step=1, limit=4
    $region2: #{tpu_custom_call.1} parent=1 // loop_pre_header
      _
    $region3: #{tpu_custom_call.1} parent=1 // loop_header
      %s18 = sphi 0, %s22
      %p19 = scmp.ge.s32.totalorder %s18, 4
      %s25 = sphi 0, %s37
      %s26 = sphi 0, %s33
      %s27 = sphi 0, %s25
      %s28 = sphi 0, %s26
      %s29 = sphi 0, %s27
      %s30 = sphi 0, %s28
      %s40 = sphi 0, %s42
      %s43 = sphi 0, %s40
      %s44 = sphi 0, %s43
      %s60 = sphi 0, %s44
      %s64 = sphi 0, %s64
      %s66 = sphi 0, %s64
      %s67 = sphi 0, %s66
      %s81 = sphi 0, %s67
      %s85 = sphi 0, %s85
      %s87 = sphi 0, %s85
      %s88 = sphi 0, %s87
      %s102 = sphi 0, %s88
      %s106 = sphi 0, %s106
      %s108 = sphi 0, %s106
      %s109 = sphi 0, %s108
      %s123 = sphi 0, %s109
      %s127 = sphi 0, %s127
      %s129 = sphi 0, %s127
      %s130 = sphi 0, %s129
      %s144 = sphi 0, %s130
      %s150 = sphi 0, %s152
      %s153 = sphi 0, %s150
      %s154 = sphi 0, %s153
      %s170 = sphi 0, %s154
      %s178 = sphi 0, %s180
      %s181 = sphi 0, %s178
      %s182 = sphi 0, %s181
      %s198 = sphi 0, %s182
    $region4: #{tpu_custom_call.1} parent=1 // loop_header_branch
      %21 = sbr.rel (%p19) target = $region8
    $region5: #{tpu_custom_call.1} parent=1 // loop_body
      %s23 = ssub.s32 %s18, 1
      %s24 = ssub.s32 %s18, 2
      %s31 = sadd.s32 1, %s26
      %p32 = scmp.ge.s32.totalorder %s31, 1
      %s33 = scalar_select %p32, 0, %s31
      %s34 = sadd.s32 1, %s25
      %s35 = scalar_select %p32, %s34, %s25
      %p36 = scmp.ge.s32.totalorder %s35, 2
      %s37 = scalar_select %p36, 0, %s35
      %s38 = ssub.s32 %s25, %s37
      %p39 = scmp.eq.s32.totalorder %s38, 0
      %s41 = sadd.s32 %s40, 1
      %s42 = scalar_select %p39, %s40, %s41
      %p45 = pneg %p39
      %p46 = scmp.eq.s32.totalorder %s18, 1
      %p47 = por %p45, %p46
      %p48 = scmp.ne.s32.totalorder %s40, %s43
      %p49 = scmp.eq.s32.totalorder %s18, 0
      %p50 = por %p48, %p49
      %p51 = scmp.ne.s32.totalorder %s40, %s43
      %p52 = scmp.eq.s32.totalorder %s23, 1
      %p53 = por %p51, %p52
      %p54 = scmp.ne.s32.totalorder %s43, %s44
      %p55 = scmp.eq.s32.totalorder %s23, 0
      %p56 = por %p54, %p55
      %p57 = scmp.ne.s32.totalorder %s43, %s44
      %p58 = scmp.eq.s32.totalorder %s24, 1
      %p59 = por %p57, %p58
      %p61 = scmp.ne.s32.totalorder %s44, %s60
      %p62 = scmp.eq.s32.totalorder %s24, 0
      %p63 = por %p61, %p62
      %s65 = sadd.s32 %s64, 1
      %p68 = scmp.eq.s32.totalorder %s18, 1
      %p69 = scmp.ne.s32.totalorder %s64, %s66
      %p70 = scmp.eq.s32.totalorder %s18, 0
      %p71 = por %p69, %p70
      %p72 = scmp.ne.s32.totalorder %s64, %s66
      %p73 = scmp.eq.s32.totalorder %s23, 1
      %p74 = por %p72, %p73
      %p75 = scmp.ne.s32.totalorder %s66, %s67
      %p76 = scmp.eq.s32.totalorder %s23, 0
      %p77 = por %p75, %p76
      %p78 = scmp.ne.s32.totalorder %s66, %s67
      %p79 = scmp.eq.s32.totalorder %s24, 1
      %p80 = por %p78, %p79
      %p82 = scmp.ne.s32.totalorder %s67, %s81
      %p83 = scmp.eq.s32.totalorder %s24, 0
      %p84 = por %p82, %p83
      %s86 = sadd.s32 %s85, 1
      %p89 = scmp.eq.s32.totalorder %s18, 1
      %p90 = scmp.ne.s32.totalorder %s85, %s87
      %p91 = scmp.eq.s32.totalorder %s18, 0
      %p92 = por %p90, %p91
      %p93 = scmp.ne.s32.totalorder %s85, %s87
      %p94 = scmp.eq.s32.totalorder %s23, 1
      %p95 = por %p93, %p94
      %p96 = scmp.ne.s32.totalorder %s87, %s88
      %p97 = scmp.eq.s32.totalorder %s23, 0
      %p98 = por %p96, %p97
      %p99 = scmp.ne.s32.totalorder %s87, %s88
      %p100 = scmp.eq.s32.totalorder %s24, 1
      %p101 = por %p99, %p100
      %p103 = scmp.ne.s32.totalorder %s88, %s102
      %p104 = scmp.eq.s32.totalorder %s24, 0
      %p105 = por %p103, %p104
      %s107 = sadd.s32 %s106, 1
      %p110 = scmp.eq.s32.totalorder %s18, 1
      %p111 = scmp.ne.s32.totalorder %s106, %s108
      %p112 = scmp.eq.s32.totalorder %s18, 0
      %p113 = por %p111, %p112
      %p114 = scmp.ne.s32.totalorder %s106, %s108
      %p115 = scmp.eq.s32.totalorder %s23, 1
      %p116 = por %p114, %p115
      %p117 = scmp.ne.s32.totalorder %s108, %s109
      %p118 = scmp.eq.s32.totalorder %s23, 0
      %p119 = por %p117, %p118
      %p120 = scmp.ne.s32.totalorder %s108, %s109
      %p121 = scmp.eq.s32.totalorder %s24, 1
      %p122 = por %p120, %p121
      %p124 = scmp.ne.s32.totalorder %s109, %s123
      %p125 = scmp.eq.s32.totalorder %s24, 0
      %p126 = por %p124, %p125
      %s128 = sadd.s32 %s127, 1
      %p131 = scmp.eq.s32.totalorder %s18, 1
      %p132 = scmp.ne.s32.totalorder %s127, %s129
      %p133 = scmp.eq.s32.totalorder %s18, 0
      %p134 = por %p132, %p133
      %p135 = scmp.ne.s32.totalorder %s127, %s129
      %p136 = scmp.eq.s32.totalorder %s23, 1
      %p137 = por %p135, %p136
      %p138 = scmp.ne.s32.totalorder %s129, %s130
      %p139 = scmp.eq.s32.totalorder %s23, 0
      %p140 = por %p138, %p139
      %p141 = scmp.ne.s32.totalorder %s129, %s130
      %p142 = scmp.eq.s32.totalorder %s24, 1
      %p143 = por %p141, %p142
      %p145 = scmp.ne.s32.totalorder %s130, %s144
      %p146 = scmp.eq.s32.totalorder %s24, 0
      %p147 = por %p145, %p146
      %s148 = ssub.s32 %s25, %s37
      %p149 = scmp.eq.s32.totalorder %s148, 0
      %s151 = sadd.s32 %s150, 1
      %s152 = scalar_select %p149, %s150, %s151
      %p155 = pneg %p149
      %p156 = scmp.eq.s32.totalorder %s18, 1
      %p157 = por %p155, %p156
      %p158 = scmp.ne.s32.totalorder %s150, %s153
      %p159 = scmp.eq.s32.totalorder %s18, 0
      %p160 = por %p158, %p159
      %p161 = scmp.ne.s32.totalorder %s150, %s153
      %p162 = scmp.eq.s32.totalorder %s23, 1
      %p163 = por %p161, %p162
      %p164 = scmp.ne.s32.totalorder %s153, %s154
      %p165 = scmp.eq.s32.totalorder %s23, 0
      %p166 = por %p164, %p165
      %p167 = scmp.ne.s32.totalorder %s153, %s154
      %p168 = scmp.eq.s32.totalorder %s24, 1
      %p169 = por %p167, %p168
      %p171 = scmp.ne.s32.totalorder %s154, %s170
      %p172 = scmp.eq.s32.totalorder %s24, 0
      %p173 = por %p171, %p172
      %s174 = ssub.s32 %s25, %s37
      %s175 = ssub.s32 %s26, %s33
      %s176 = sor.u32 %s174, %s175
      %p177 = scmp.eq.s32.totalorder %s176, 0
      %s179 = sadd.s32 %s178, 1
      %s180 = scalar_select %p177, %s178, %s179
      %p183 = pneg %p177
      %p184 = scmp.eq.s32.totalorder %s18, 1
      %p185 = por %p183, %p184
      %p186 = scmp.ne.s32.totalorder %s178, %s181
      %p187 = scmp.eq.s32.totalorder %s18, 0
      %p188 = por %p186, %p187
      %p189 = scmp.ne.s32.totalorder %s178, %s181
      %p190 = scmp.eq.s32.totalorder %s23, 1
      %p191 = por %p189, %p190
      %p192 = scmp.ne.s32.totalorder %s181, %s182
      %p193 = scmp.eq.s32.totalorder %s23, 0
      %p194 = por %p192, %p193
      %p195 = scmp.ne.s32.totalorder %s181, %s182
      %p196 = scmp.eq.s32.totalorder %s24, 1
      %p197 = por %p195, %p196
      %p199 = scmp.ne.s32.totalorder %s182, %s198
      %p200 = scmp.eq.s32.totalorder %s24, 0
      %p201 = por %p199, %p200
      %p202 = scmp.le.s32.totalorder 1, %s18
      %p203 = scmp.lt.s32.totalorder %s18, 3
      %p204 = pnand %p202, %p203
      %p205 = pneg %p204
      // Predicated region
      $region9: #{tpu_custom_call.1} parent=5 // pred_check
        _
      $region10: #{tpu_custom_call.1} parent=5 // pred_check_branch
        %207 = sbr.rel (%p204) target = $region12
      $region11: #{tpu_custom_call.1} parent=5 // pred_region
        %s208 = ssub.s32 %s18, 1
        // Predicated region
        $region13: #{tpu_custom_call.1} parent=11 // pred_check
          %p209 = pneg %p56
        $region14: #{tpu_custom_call.1} parent=11 // pred_check_branch
          %211 = sbr.rel (%p209) target = $region16
        $region15: #{tpu_custom_call.1} parent=11 // pred_region
          %s213 = ssub.s32 2048, 2048
          %214 = vsyncadd [#allocation4], %s213
          %s215 = smul.addr %s27, 16
          %s216 = smul.addr %s215, 128
          %s217 = scalar_lea.hbm %s0, %s216
          %s218 = sshll.u32 [#allocation3], 4
          %s219 = int_to_ptr.vmem [resolvable:$true] %s218
          %224 = dma.hbm_to_vmem [thread:$0]  %s217, 2048, %s219, [#allocation4], 128, 128, 8
        $region16: #{tpu_custom_call.1} parent=11 // pred_fallthru
          _
        // Predicated region
        $region17: #{tpu_custom_call.1} parent=11 // pred_check
          %p225 = pneg %p77
        $region18: #{tpu_custom_call.1} parent=11 // pred_check_branch
          %227 = sbr.rel (%p225) target = $region20
        $region19: #{tpu_custom_call.1} parent=11 // pred_region
          %s229 = ssub.s32 8192, 8192
          %230 = vsyncadd [#allocation7], %s229
          %s231 = sshll.u32 [#allocation6], 4
          %s232 = int_to_ptr.vmem [resolvable:$true] %s231
          %237 = dma.hbm_to_vmem [thread:$0]  %s1, 8192, %s232, [#allocation7], 512, 512, 32
        $region20: #{tpu_custom_call.1} parent=11 // pred_fallthru
          _
        // Predicated region
        $region21: #{tpu_custom_call.1} parent=11 // pred_check
          %p238 = pneg %p98
        $region22: #{tpu_custom_call.1} parent=11 // pred_check_branch
          %240 = sbr.rel (%p238) target = $region24
        $region23: #{tpu_custom_call.1} parent=11 // pred_region
          %s242 = ssub.s32 64, 64
          %243 = vsyncadd [#allocation7], %s242
          %s245 = sshll.u32 [#allocation8], 4
          %s246 = int_to_ptr.vmem [resolvable:$true] %s245
          %248 = dma.hbm_to_vmem [thread:$0]  %s2, 64, %s246, [#allocation7]
        $region24: #{tpu_custom_call.1} parent=11 // pred_fallthru
          _
        // Predicated region
        $region25: #{tpu_custom_call.1} parent=11 // pred_check
          %p249 = pneg %p119
        $region26: #{tpu_custom_call.1} parent=11 // pred_check_branch
          %251 = sbr.rel (%p249) target = $region28
        $region27: #{tpu_custom_call.1} parent=11 // pred_region
          %s253 = ssub.s32 2048, 2048
          %254 = vsyncadd [#allocation10], %s253
          %s255 = sshll.u32 [#allocation9], 4
          %s256 = int_to_ptr.vmem [resolvable:$true] %s255
          %261 = dma.hbm_to_vmem [thread:$0]  %s3, 2048, %s256, [#allocation10], 128, 128, 8
        $region28: #{tpu_custom_call.1} parent=11 // pred_fallthru
          _
        // Predicated region
        $region29: #{tpu_custom_call.1} parent=11 // pred_check
          %p262 = pneg %p140
        $region30: #{tpu_custom_call.1} parent=11 // pred_check_branch
          %264 = sbr.rel (%p262) target = $region32
        $region31: #{tpu_custom_call.1} parent=11 // pred_region
          %s266 = ssub.s32 2048, 2048
          %267 = vsyncadd [#allocation10], %s266
          %s268 = sshll.u32 [#allocation11], 4
          %s269 = int_to_ptr.vmem [resolvable:$true] %s268
          %274 = dma.hbm_to_vmem [thread:$0]  %s4, 2048, %s269, [#allocation10], 128, 128, 8
        $region32: #{tpu_custom_call.1} parent=11 // pred_fallthru
          _
        // Predicated region
        $region33: #{tpu_custom_call.1} parent=11 // pred_check
          %p275 = pneg %p166
        $region34: #{tpu_custom_call.1} parent=11 // pred_check_branch
          %277 = sbr.rel (%p275) target = $region36
        $region35: #{tpu_custom_call.1} parent=11 // pred_region
          %p278 = scmp.lt.s32.totalorder %s27, 1
          %s279 = scalar_select %p278, %s27, 1
          %s280 = scalar_lea.vmem %s5, %s279
        $region36: #{tpu_custom_call.1} parent=11 // pred_fallthru
          _
      $region12: #{tpu_custom_call.1} parent=5 // pred_fallthru
        _
      %p281 = scmp.lt.s32.totalorder %s18, 2
      // Predicated region
      $region37: #{tpu_custom_call.1} parent=5 // pred_check
        %p282 = pneg %p281
      $region38: #{tpu_custom_call.1} parent=5 // pred_check_branch
        %284 = sbr.rel (%p282) target = $region40
      $region39: #{tpu_custom_call.1} parent=5 // pred_region
        _
      $region40: #{tpu_custom_call.1} parent=5 // pred_fallthru
        _
      %p285 = scmp.le.s32.totalorder 1, %s18
      %p286 = scmp.lt.s32.totalorder %s18, 3
      %p287 = pnand %p285, %p286
      %p288 = pneg %p287
      // Predicated region
      $region41: #{tpu_custom_call.1} parent=5 // pred_check
        _
      $region42: #{tpu_custom_call.1} parent=5 // pred_check_branch
        %290 = sbr.rel (%p287) target = $region44
      $region43: #{tpu_custom_call.1} parent=5 // pred_region
        %s291 = ssub.s32 %s18, 1
        // Predicated region
        $region45: #{tpu_custom_call.1} parent=43 // pred_check
          %p292 = pneg %p56
        $region46: #{tpu_custom_call.1} parent=43 // pred_check_branch
          %294 = sbr.rel (%p292) target = $region48
        $region47: #{tpu_custom_call.1} parent=43 // pred_region
          %295 = dma.done [#allocation4], 2048
        $region48: #{tpu_custom_call.1} parent=43 // pred_fallthru
          _
        // Predicated region
        $region49: #{tpu_custom_call.1} parent=43 // pred_check
          %p296 = pneg %p77
        $region50: #{tpu_custom_call.1} parent=43 // pred_check_branch
          %298 = sbr.rel (%p296) target = $region52
        $region51: #{tpu_custom_call.1} parent=43 // pred_region
          %299 = dma.done [#allocation7], 8192
        $region52: #{tpu_custom_call.1} parent=43 // pred_fallthru
          _
        // Predicated region
        $region53: #{tpu_custom_call.1} parent=43 // pred_check
          %p300 = pneg %p98
        $region54: #{tpu_custom_call.1} parent=43 // pred_check_branch
          %302 = sbr.rel (%p300) target = $region56
        $region55: #{tpu_custom_call.1} parent=43 // pred_region
          %303 = dma.done [#allocation7], 64
        $region56: #{tpu_custom_call.1} parent=43 // pred_fallthru
          _
        // Predicated region
        $region57: #{tpu_custom_call.1} parent=43 // pred_check
          %p304 = pneg %p119
        $region58: #{tpu_custom_call.1} parent=43 // pred_check_branch
          %306 = sbr.rel (%p304) target = $region60
        $region59: #{tpu_custom_call.1} parent=43 // pred_region
          %307 = dma.done [#allocation10], 2048
        $region60: #{tpu_custom_call.1} parent=43 // pred_fallthru
          _
        // Predicated region
        $region61: #{tpu_custom_call.1} parent=43 // pred_check
          %p308 = pneg %p140
        $region62: #{tpu_custom_call.1} parent=43 // pred_check_branch
          %310 = sbr.rel (%p308) target = $region64
        $region63: #{tpu_custom_call.1} parent=43 // pred_region
          %311 = dma.done [#allocation10], 2048
        $region64: #{tpu_custom_call.1} parent=43 // pred_fallthru
          _
        %p312 = pneg %p56
        %p313 = pneg %p53
        %p314 = pneg %p77
        %p315 = pneg %p74
        %p316 = pneg %p98
        %p317 = pneg %p95
        %p318 = pneg %p119
        %p319 = pneg %p116
        %p320 = pneg %p140
        %p321 = pneg %p137
        %p322 = scmp.lt.s32.totalorder %s27, 1
        %s323 = scalar_select %p322, %s27, 1
        %s324 = scalar_lea.vmem %s5, %s323
        %p325 = pneg %p166
        %p326 = pneg %p163
        %p327 = pneg %p194
        %p328 = pneg %p191
        %s329 = sand.u32 %s181, 1
        %s330 = scalar_lea.sflag [#allocation5], %s329
        %s331 = sand.u32 %s181, 1
        %s332 = smul.addr %s331, 512
        %s333 = scalar_lea.vmem [#allocation12], %s332
        %p334 = scmp.lt.s32.totalorder %s27, 1
        %s335 = scalar_select %p334, %s27, 1
        %s336 = scalar_lea.vmem %s5, %s335
        %s337 = smul.u32 16, %s28
        %p338 = scmp.eq.s32.totalorder %s28, 0
        // Predicated region
        $region65: #{tpu_custom_call.1} parent=43 // pred_check
          %p339 = pneg %p338
        $region66: #{tpu_custom_call.1} parent=43 // pred_check_branch
          %341 = sbr.rel (%p339) target = $region68
        $region67: #{tpu_custom_call.1} parent=43 // pred_region
          %v342 = vld [vmem:[#allocation3] sm:$0xff]
          %v343 = vld [vmem:[#allocation3 + $0x8] sm:$0xff]
          %v344 = vld [vmem:[#allocation3 + $0x10] sm:$0xff]
          %v345 = vld [vmem:[#allocation3 + $0x18] sm:$0xff]
          %v346 = vld [vmem:[#allocation3 + $0x20] sm:$0xff]
          %v347 = vld [vmem:[#allocation3 + $0x28] sm:$0xff]
          %v348 = vld [vmem:[#allocation3 + $0x30] sm:$0xff]
          %v349 = vld [vmem:[#allocation3 + $0x38] sm:$0xff]
          %v350 = vld [vmem:[#allocation3 + $0x40] sm:$0xff]
          %v351 = vld [vmem:[#allocation3 + $0x48] sm:$0xff]
          %v352 = vld [vmem:[#allocation3 + $0x50] sm:$0xff]
          %v353 = vld [vmem:[#allocation3 + $0x58] sm:$0xff]
          %v354 = vld [vmem:[#allocation3 + $0x60] sm:$0xff]
          %v355 = vld [vmem:[#allocation3 + $0x68] sm:$0xff]
          %v356 = vld [vmem:[#allocation3 + $0x70] sm:$0xff]
          %v357 = vld [vmem:[#allocation3 + $0x78] sm:$0xff]
          %v358 = vld [vmem:[#allocation6 + $0x10] sm:$0xff]
          %v359 = vld [vmem:[#allocation6 + $0x18] sm:$0xff]
          %v360 = vld [vmem:[#allocation6 + $0x30] sm:$0xff]
          %v361 = vld [vmem:[#allocation6 + $0x38] sm:$0xff]
          %v362 = vld [vmem:[#allocation6 + $0x50] sm:$0xff]
          %v363 = vld [vmem:[#allocation6 + $0x58] sm:$0xff]
          %v364 = vld [vmem:[#allocation6 + $0x70] sm:$0xff]
          %v365 = vld [vmem:[#allocation6 + $0x78] sm:$0xff]
          %v366 = vld [vmem:[#allocation6 + $0x90] sm:$0xff]
          %v367 = vld [vmem:[#allocation6 + $0x98] sm:$0xff]
          %v368 = vld [vmem:[#allocation6 + $0xb0] sm:$0xff]
          %v369 = vld [vmem:[#allocation6 + $0xb8] sm:$0xff]
          %v370 = vld [vmem:[#allocation6 + $0xd0] sm:$0xff]
          %v371 = vld [vmem:[#allocation6 + $0xd8] sm:$0xff]
          %v372 = vld [vmem:[#allocation6 + $0xf0] sm:$0xff]
          %v373 = vld [vmem:[#allocation6 + $0xf8] sm:$0xff]
          %v374 = vld [vmem:[#allocation6 + $0x110] sm:$0xff]
          %v375 = vld [vmem:[#allocation6 + $0x118] sm:$0xff]
          %v376 = vld [vmem:[#allocation6 + $0x130] sm:$0xff]
          %v377 = vld [vmem:[#allocation6 + $0x138] sm:$0xff]
          %v378 = vld [vmem:[#allocation6 + $0x150] sm:$0xff]
          %v379 = vld [vmem:[#allocation6 + $0x158] sm:$0xff]
          %v380 = vld [vmem:[#allocation6 + $0x170] sm:$0xff]
          %v381 = vld [vmem:[#allocation6 + $0x178] sm:$0xff]
          %v382 = vld [vmem:[#allocation6 + $0x190] sm:$0xff]
          %v383 = vld [vmem:[#allocation6 + $0x198] sm:$0xff]
          %v384 = vld [vmem:[#allocation6 + $0x1b0] sm:$0xff]
          %v385 = vld [vmem:[#allocation6 + $0x1b8] sm:$0xff]
          %v386 = vld [vmem:[#allocation6 + $0x1d0] sm:$0xff]
          %v387 = vld [vmem:[#allocation6 + $0x1d8] sm:$0xff]
          %v388 = vld [vmem:[#allocation6 + $0x1f0] sm:$0xff]
          %v389 = vld [vmem:[#allocation6 + $0x1f8] sm:$0xff]
          %v390 = vld [vmem:[#allocation8 + $0x2] sm:$0x3]
          %v392 = vlaneseq
          %v393 = vshrl.u32 %v392, 7
          %v394 = vsub.s32 0, %v393
          %v395 = vrot.slane %v390, %v394
          %v396 = vlaneseq
          %v397 = vshrl.u32 %v396, 7
          %v398 = vsub.s32 1, %v397
          %v399 = vrot.slane %v390, %v398
          %402 = vmatprep.subr.mxu0 %v389
          %403 = vmatpush1.msra.mxu0 %v388
          %404 = vmatprep.subr.mxu0 %v387
          %405 = vmatpush1.msra.mxu0 %v386
          %406 = vmatprep.subr.mxu0 %v385
          %407 = vmatpush1.msra.mxu0 %v384
          %408 = vmatprep.subr.mxu0 %v383
          %409 = vmatpush1.msra.mxu0 %v382
          %410 = vmatprep.subr.mxu0 %v381
          %411 = vmatpush1.msra.mxu0 %v380
          %412 = vmatprep.subr.mxu0 %v379
          %413 = vmatpush1.msra.mxu0 %v378
          %414 = vmatprep.subr.mxu0 %v377
          %415 = vmatpush1.msra.mxu0 %v376
          %416 = vmatprep.subr.mxu0 %v375
          %417 = vmatpush1.msra.mxu0 %v374
          %418 = vmatprep.subr.mxu0 %v373
          %419 = vmatpush1.msra.mxu0 %v372
          %420 = vmatprep.subr.mxu0 %v371
          %421 = vmatpush1.msra.mxu0 %v370
          %422 = vmatprep.subr.mxu0 %v369
          %423 = vmatpush1.msra.mxu0 %v368
          %424 = vmatprep.subr.mxu0 %v367
          %425 = vmatpush1.msra.mxu0 %v366
          %426 = vmatprep.subr.mxu0 %v365
          %427 = vmatpush1.msra.mxu0 %v364
          %428 = vmatprep.subr.mxu0 %v363
          %429 = vmatpush1.msra.mxu0 %v362
          %430 = vmatprep.subr.mxu0 %v361
          %431 = vmatpush1.msra.mxu0 %v360
          %432 = vmatprep.subr.mxu0 %v359
          %433 = vmatpush1.msra.mxu0 %v358
          %434 = vmatprep.subr.mxu0 0.0
          %435 = vmatpush2.msra.mxu0 0.0
          %436 = vmatprep.subr.mxu0 0.0
          %437 = vmatpush2.msra.mxu0 0.0
          %438 = vmatprep.subr.mxu0 0.0
          %439 = vmatpush2.msra.mxu0 0.0
          %440 = vmatprep.subr.mxu0 0.0
          %441 = vmatpush2.msra.mxu0 0.0
          %442 = vmatprep.subr.mxu0 0.0
          %443 = vmatpush2.msra.mxu0 0.0
          %444 = vmatprep.subr.mxu0 0.0
          %445 = vmatpush2.msra.mxu0 0.0
          %446 = vmatprep.subr.mxu0 0.0
          %447 = vmatpush2.msra.mxu0 0.0
          %448 = vmatprep.subr.mxu0 0.0
          %449 = vmatpush2.msra.mxu0 0.0
          %450 = vmatprep.subr.mxu0 0.0
          %451 = vmatpush2.msra.mxu0 0.0
          %452 = vmatprep.subr.mxu0 0.0
          %453 = vmatpush2.msra.mxu0 0.0
          %454 = vmatprep.subr.mxu0 0.0
          %455 = vmatpush2.msra.mxu0 0.0
          %456 = vmatprep.subr.mxu0 0.0
          %457 = vmatpush2.msra.mxu0 0.0
          %458 = vmatprep.subr.mxu0 0.0
          %459 = vmatpush2.msra.mxu0 0.0
          %460 = vmatprep.subr.mxu0 0.0
          %461 = vmatpush2.msra.mxu0 0.0
          %462 = vmatprep.subr.mxu0 0.0
          %463 = vmatpush2.msra.mxu0 0.0
          %464 = vmatprep.subr.mxu0 0.0
          %465 = vmatpush2.msra.mxu0 0.0
          %466 = vmatprep.mubr.f32.mxu0 0.0
          %467 = vmatmul.mubr.f32.gmra.mxu0 %v342
          %v468 = vpop.f32.mrf.mxu0
          %v469 = vadd.f32 %v395, %v468
          %v470 = vpop.f32.mrf.mxu0
          %v471 = vadd.f32 %v399, %v470
          %472 = vmatprep.mubr.f32.mxu0 0.0
          %473 = vmatmul.mubr.f32.gmra.mxu0 %v343
          %v474 = vpop.f32.mrf.mxu0
          %v475 = vadd.f32 %v395, %v474
          %v476 = vpop.f32.mrf.mxu0
          %v477 = vadd.f32 %v399, %v476
          %478 = vmatprep.mubr.f32.mxu0 0.0
          %479 = vmatmul.mubr.f32.gmra.mxu0 %v344
          %v480 = vpop.f32.mrf.mxu0
          %v481 = vadd.f32 %v395, %v480
          %v482 = vpop.f32.mrf.mxu0
          %v483 = vadd.f32 %v399, %v482
          %484 = vmatprep.mubr.f32.mxu0 0.0
          %485 = vmatmul.mubr.f32.gmra.mxu0 %v345
          %v486 = vpop.f32.mrf.mxu0
          %v487 = vadd.f32 %v395, %v486
          %v488 = vpop.f32.mrf.mxu0
          %v489 = vadd.f32 %v399, %v488
          %490 = vmatprep.mubr.f32.mxu0 0.0
          %491 = vmatmul.mubr.f32.gmra.mxu0 %v346
          %v492 = vpop.f32.mrf.mxu0
          %v493 = vadd.f32 %v395, %v492
          %v494 = vpop.f32.mrf.mxu0
          %v495 = vadd.f32 %v399, %v494
          %496 = vmatprep.mubr.f32.mxu0 0.0
          %497 = vmatmul.mubr.f32.gmra.mxu0 %v347
          %v498 = vpop.f32.mrf.mxu0
          %v499 = vadd.f32 %v395, %v498
          %v500 = vpop.f32.mrf.mxu0
          %v501 = vadd.f32 %v399, %v500
          %502 = vmatprep.mubr.f32.mxu0 0.0
          %503 = vmatmul.mubr.f32.gmra.mxu0 %v348
          %v504 = vpop.f32.mrf.mxu0
          %v505 = vadd.f32 %v395, %v504
          %v506 = vpop.f32.mrf.mxu0
          %v507 = vadd.f32 %v399, %v506
          %508 = vmatprep.mubr.f32.mxu0 0.0
          %509 = vmatmul.mubr.f32.gmra.mxu0 %v349
          %v510 = vpop.f32.mrf.mxu0
          %v511 = vadd.f32 %v395, %v510
          %v512 = vpop.f32.mrf.mxu0
          %v513 = vadd.f32 %v399, %v512
          %514 = vmatprep.mubr.f32.mxu0 0.0
          %515 = vmatmul.mubr.f32.gmra.mxu0 %v350
          %v516 = vpop.f32.mrf.mxu0
          %v517 = vadd.f32 %v395, %v516
          %v518 = vpop.f32.mrf.mxu0
          %v519 = vadd.f32 %v399, %v518
          %520 = vmatprep.mubr.f32.mxu0 0.0
          %521 = vmatmul.mubr.f32.gmra.mxu0 %v351
          %v522 = vpop.f32.mrf.mxu0
          %v523 = vadd.f32 %v395, %v522
          %v524 = vpop.f32.mrf.mxu0
          %v525 = vadd.f32 %v399, %v524
          %526 = vmatprep.mubr.f32.mxu0 0.0
          %527 = vmatmul.mubr.f32.gmra.mxu0 %v352
          %v528 = vpop.f32.mrf.mxu0
          %v529 = vadd.f32 %v395, %v528
          %v530 = vpop.f32.mrf.mxu0
          %v531 = vadd.f32 %v399, %v530
          %532 = vmatprep.mubr.f32.mxu0 0.0
          %533 = vmatmul.mubr.f32.gmra.mxu0 %v353
          %v534 = vpop.f32.mrf.mxu0
          %v535 = vadd.f32 %v395, %v534
          %v536 = vpop.f32.mrf.mxu0
          %v537 = vadd.f32 %v399, %v536
          %538 = vmatprep.mubr.f32.mxu0 0.0
          %539 = vmatmul.mubr.f32.gmra.mxu0 %v354
          %v540 = vpop.f32.mrf.mxu0
          %v541 = vadd.f32 %v395, %v540
          %v542 = vpop.f32.mrf.mxu0
          %v543 = vadd.f32 %v399, %v542
          %544 = vmatprep.mubr.f32.mxu0 0.0
          %545 = vmatmul.mubr.f32.gmra.mxu0 %v355
          %v546 = vpop.f32.mrf.mxu0
          %v547 = vadd.f32 %v395, %v546
          %v548 = vpop.f32.mrf.mxu0
          %v549 = vadd.f32 %v399, %v548
          %550 = vmatprep.mubr.f32.mxu0 0.0
          %551 = vmatmul.mubr.f32.gmra.mxu0 %v356
          %v552 = vpop.f32.mrf.mxu0
          %v553 = vadd.f32 %v395, %v552
          %v554 = vpop.f32.mrf.mxu0
          %v555 = vadd.f32 %v399, %v554
          %556 = vmatprep.mubr.f32.mxu0 0.0
          %557 = vmatmul.mubr.f32.gmra.mxu0 %v357
          %v558 = vpop.f32.mrf.mxu0
          %v559 = vadd.f32 %v395, %v558
          %v560 = vpop.f32.mrf.mxu0
          %v561 = vadd.f32 %v399, %v560
          %562 = vdwg.mxu0
          %v563 = vld [vmem:[#allocation9] sm:$0xff]
          %v564 = vld [vmem:[#allocation9 + $0x8] sm:$0xff]
          %v565 = vld [vmem:[#allocation9 + $0x10] sm:$0xff]
          %v566 = vld [vmem:[#allocation9 + $0x18] sm:$0xff]
          %v567 = vld [vmem:[#allocation9 + $0x20] sm:$0xff]
          %v568 = vld [vmem:[#allocation9 + $0x28] sm:$0xff]
          %v569 = vld [vmem:[#allocation9 + $0x30] sm:$0xff]
          %v570 = vld [vmem:[#allocation9 + $0x38] sm:$0xff]
          %v571 = vld [vmem:[#allocation9 + $0x40] sm:$0xff]
          %v572 = vld [vmem:[#allocation9 + $0x48] sm:$0xff]
          %v573 = vld [vmem:[#allocation9 + $0x50] sm:$0xff]
          %v574 = vld [vmem:[#allocation9 + $0x58] sm:$0xff]
          %v575 = vld [vmem:[#allocation9 + $0x60] sm:$0xff]
          %v576 = vld [vmem:[#allocation9 + $0x68] sm:$0xff]
          %v577 = vld [vmem:[#allocation9 + $0x70] sm:$0xff]
          %v578 = vld [vmem:[#allocation9 + $0x78] sm:$0xff]
          %v579 = vld [vmem:[#allocation11] sm:$0xff]
          %v580 = vld [vmem:[#allocation11 + $0x8] sm:$0xff]
          %v581 = vld [vmem:[#allocation11 + $0x10] sm:$0xff]
          %v582 = vld [vmem:[#allocation11 + $0x18] sm:$0xff]
          %v583 = vld [vmem:[#allocation11 + $0x20] sm:$0xff]
          %v584 = vld [vmem:[#allocation11 + $0x28] sm:$0xff]
          %v585 = vld [vmem:[#allocation11 + $0x30] sm:$0xff]
          %v586 = vld [vmem:[#allocation11 + $0x38] sm:$0xff]
          %v587 = vld [vmem:[#allocation11 + $0x40] sm:$0xff]
          %v588 = vld [vmem:[#allocation11 + $0x48] sm:$0xff]
          %v589 = vld [vmem:[#allocation11 + $0x50] sm:$0xff]
          %v590 = vld [vmem:[#allocation11 + $0x58] sm:$0xff]
          %v591 = vld [vmem:[#allocation11 + $0x60] sm:$0xff]
          %v592 = vld [vmem:[#allocation11 + $0x68] sm:$0xff]
          %v593 = vld [vmem:[#allocation11 + $0x70] sm:$0xff]
          %v594 = vld [vmem:[#allocation11 + $0x78] sm:$0xff]
          %v595 = vmul.f32 %v469, %v563
          %v596 = vmul.f32 %v475, %v564
          %v597 = vmul.f32 %v481, %v565
          %v598 = vmul.f32 %v487, %v566
          %v599 = vmul.f32 %v493, %v567
          %v600 = vmul.f32 %v499, %v568
          %v601 = vmul.f32 %v505, %v569
          %v602 = vmul.f32 %v511, %v570
          %v603 = vmul.f32 %v517, %v571
          %v604 = vmul.f32 %v523, %v572
          %v605 = vmul.f32 %v529, %v573
          %v606 = vmul.f32 %v535, %v574
          %v607 = vmul.f32 %v541, %v575
          %v608 = vmul.f32 %v547, %v576
          %v609 = vmul.f32 %v553, %v577
          %v610 = vmul.f32 %v559, %v578
          %v611 = vmul.f32 %v471, %v579
          %v612 = vmul.f32 %v477, %v580
          %v613 = vmul.f32 %v483, %v581
          %v614 = vmul.f32 %v489, %v582
          %v615 = vmul.f32 %v495, %v583
          %v616 = vmul.f32 %v501, %v584
          %v617 = vmul.f32 %v507, %v585
          %v618 = vmul.f32 %v513, %v586
          %v619 = vmul.f32 %v519, %v587
          %v620 = vmul.f32 %v525, %v588
          %v621 = vmul.f32 %v531, %v589
          %v622 = vmul.f32 %v537, %v590
          %v623 = vmul.f32 %v543, %v591
          %v624 = vmul.f32 %v549, %v592
          %v625 = vmul.f32 %v555, %v593
          %v626 = vmul.f32 %v561, %v594
          %v627 = vsub.f32 %v595, %v611
          %v628 = vsub.f32 %v596, %v612
          %v629 = vsub.f32 %v597, %v613
          %v630 = vsub.f32 %v598, %v614
          %v631 = vsub.f32 %v599, %v615
          %v632 = vsub.f32 %v600, %v616
          %v633 = vsub.f32 %v601, %v617
          %v634 = vsub.f32 %v602, %v618
          %v635 = vsub.f32 %v603, %v619
          %v636 = vsub.f32 %v604, %v620
          %v637 = vsub.f32 %v605, %v621
          %v638 = vsub.f32 %v606, %v622
          %v639 = vsub.f32 %v607, %v623
          %v640 = vsub.f32 %v608, %v624
          %v641 = vsub.f32 %v609, %v625
          %v642 = vsub.f32 %v610, %v626
          %v643 = vmul.f32 %v471, %v563
          %v644 = vmul.f32 %v477, %v564
          %v645 = vmul.f32 %v483, %v565
          %v646 = vmul.f32 %v489, %v566
          %v647 = vmul.f32 %v495, %v567
          %v648 = vmul.f32 %v501, %v568
          %v649 = vmul.f32 %v507, %v569
          %v650 = vmul.f32 %v513, %v570
          %v651 = vmul.f32 %v519, %v571
          %v652 = vmul.f32 %v525, %v572
          %v653 = vmul.f32 %v531, %v573
          %v654 = vmul.f32 %v537, %v574
          %v655 = vmul.f32 %v543, %v575
          %v656 = vmul.f32 %v549, %v576
          %v657 = vmul.f32 %v555, %v577
          %v658 = vmul.f32 %v561, %v578
          %v659 = vmul.f32 %v469, %v579
          %v660 = vmul.f32 %v475, %v580
          %v661 = vmul.f32 %v481, %v581
          %v662 = vmul.f32 %v487, %v582
          %v663 = vmul.f32 %v493, %v583
          %v664 = vmul.f32 %v499, %v584
          %v665 = vmul.f32 %v505, %v585
          %v666 = vmul.f32 %v511, %v586
          %v667 = vmul.f32 %v517, %v587
          %v668 = vmul.f32 %v523, %v588
          %v669 = vmul.f32 %v529, %v589
          %v670 = vmul.f32 %v535, %v590
          %v671 = vmul.f32 %v541, %v591
          %v672 = vmul.f32 %v547, %v592
          %v673 = vmul.f32 %v553, %v593
          %v674 = vmul.f32 %v559, %v594
          %v675 = vadd.f32 %v643, %v659
          %v676 = vadd.f32 %v644, %v660
          %v677 = vadd.f32 %v645, %v661
          %v678 = vadd.f32 %v646, %v662
          %v679 = vadd.f32 %v647, %v663
          %v680 = vadd.f32 %v648, %v664
          %v681 = vadd.f32 %v649, %v665
          %v682 = vadd.f32 %v650, %v666
          %v683 = vadd.f32 %v651, %v667
          %v684 = vadd.f32 %v652, %v668
          %v685 = vadd.f32 %v653, %v669
          %v686 = vadd.f32 %v654, %v670
          %v687 = vadd.f32 %v655, %v671
          %v688 = vadd.f32 %v656, %v672
          %v689 = vadd.f32 %v657, %v673
          %v690 = vadd.f32 %v658, %v674
          %v691 = vld [vmem:[%s336] sm:$0x1]
          %vm692 = vcmp.eq.f32.partialorder %v691, 0.0
          %v693 = vsel %vm692, 1.0, 0.0
          %694 = vxpose.xlu0.b32.start [1/16] %v627, 128
          %695 = vxpose.xlu0.b32.cont [2/16] %v628, 128
          %696 = vxpose.xlu0.b32.cont [3/16] %v629, 128
          %697 = vxpose.xlu0.b32.cont [4/16] %v630, 128
          %698 = vxpose.xlu0.b32.cont [5/16] %v631, 128
          %699 = vxpose.xlu0.b32.cont [6/16] %v632, 128
          %700 = vxpose.xlu0.b32.cont [7/16] %v633, 128
          %701 = vxpose.xlu0.b32.cont [8/16] %v634, 128
          %702 = vxpose.xlu0.b32.cont [9/16] %v635, 128
          %703 = vxpose.xlu0.b32.cont [10/16] %v636, 128
          %704 = vxpose.xlu0.b32.cont [11/16] %v637, 128
          %705 = vxpose.xlu0.b32.cont [12/16] %v638, 128
          %706 = vxpose.xlu0.b32.cont [13/16] %v639, 128
          %707 = vxpose.xlu0.b32.cont [14/16] %v640, 128
          %708 = vxpose.xlu0.b32.cont [15/16] %v641, 128
          %709 = vxpose.xlu0.b32.end [16/16] %v642, 128
          %v710 = vpop.trf.xlu0
          %v711 = vpop.trf.xlu0
          %v712 = vpop.trf.xlu0
          %v713 = vpop.trf.xlu0
          %v714 = vpop.trf.xlu0
          %v715 = vpop.trf.xlu0
          %v716 = vpop.trf.xlu0
          %v717 = vpop.trf.xlu0
          %v718 = vpop.trf.xlu0
          %v719 = vpop.trf.xlu0
          %v720 = vpop.trf.xlu0
          %v721 = vpop.trf.xlu0
          %v722 = vpop.trf.xlu0
          %v723 = vpop.trf.xlu0
          %v724 = vpop.trf.xlu0
          %v725 = vpop.trf.xlu0
          %v727 = vlaneseq
          %v728 = vshrl.u32 %v727, 7
          %v729 = vsub.s32 0, %v728
          %v730 = vrot.slane %v693, %v729
          %v732 = vmul.f32 %v710, %v730
          %v733 = vmul.f32 %v711, %v730
          %v734 = vmul.f32 %v712, %v730
          %v735 = vmul.f32 %v713, %v730
          %v736 = vmul.f32 %v714, %v730
          %v737 = vmul.f32 %v715, %v730
          %v738 = vmul.f32 %v716, %v730
          %v739 = vmul.f32 %v717, %v730
          %v740 = vmul.f32 %v718, %v730
          %v741 = vmul.f32 %v719, %v730
          %v742 = vmul.f32 %v720, %v730
          %v743 = vmul.f32 %v721, %v730
          %v744 = vmul.f32 %v722, %v730
          %v745 = vmul.f32 %v723, %v730
          %v746 = vmul.f32 %v724, %v730
          %v747 = vmul.f32 %v725, %v730
          %748 = vxpose.xlu0.b32.start [1/16] %v675, 128
          %749 = vxpose.xlu0.b32.cont [2/16] %v676, 128
          %750 = vxpose.xlu0.b32.cont [3/16] %v677, 128
          %751 = vxpose.xlu0.b32.cont [4/16] %v678, 128
          %752 = vxpose.xlu0.b32.cont [5/16] %v679, 128
          %753 = vxpose.xlu0.b32.cont [6/16] %v680, 128
          %754 = vxpose.xlu0.b32.cont [7/16] %v681, 128
          %755 = vxpose.xlu0.b32.cont [8/16] %v682, 128
          %756 = vxpose.xlu0.b32.cont [9/16] %v683, 128
          %757 = vxpose.xlu0.b32.cont [10/16] %v684, 128
          %758 = vxpose.xlu0.b32.cont [11/16] %v685, 128
          %759 = vxpose.xlu0.b32.cont [12/16] %v686, 128
          %760 = vxpose.xlu0.b32.cont [13/16] %v687, 128
          %761 = vxpose.xlu0.b32.cont [14/16] %v688, 128
          %762 = vxpose.xlu0.b32.cont [15/16] %v689, 128
          %763 = vxpose.xlu0.b32.end [16/16] %v690, 128
          %v764 = vpop.trf.xlu0
          %v765 = vpop.trf.xlu0
          %v766 = vpop.trf.xlu0
          %v767 = vpop.trf.xlu0
          %v768 = vpop.trf.xlu0
          %v769 = vpop.trf.xlu0
          %v770 = vpop.trf.xlu0
          %v771 = vpop.trf.xlu0
          %v772 = vpop.trf.xlu0
          %v773 = vpop.trf.xlu0
          %v774 = vpop.trf.xlu0
          %v775 = vpop.trf.xlu0
          %v776 = vpop.trf.xlu0
          %v777 = vpop.trf.xlu0
          %v778 = vpop.trf.xlu0
          %v779 = vpop.trf.xlu0
          %v780 = vmul.f32 %v764, %v730
          %v781 = vmul.f32 %v765, %v730
          %v782 = vmul.f32 %v766, %v730
          %v783 = vmul.f32 %v767, %v730
          %v784 = vmul.f32 %v768, %v730
          %v785 = vmul.f32 %v769, %v730
          %v786 = vmul.f32 %v770, %v730
          %v787 = vmul.f32 %v771, %v730
          %v788 = vmul.f32 %v772, %v730
          %v789 = vmul.f32 %v773, %v730
          %v790 = vmul.f32 %v774, %v730
          %v791 = vmul.f32 %v775, %v730
          %v792 = vmul.f32 %v776, %v730
          %v793 = vmul.f32 %v777, %v730
          %v794 = vmul.f32 %v778, %v730
          %v795 = vmul.f32 %v779, %v730
          %796 = vst [vmem:[#allocation2] sm:$0xff] %v732
          %797 = vst [vmem:[#allocation2 + $0x8] sm:$0xff] %v733
          %798 = vst [vmem:[#allocation2 + $0x10] sm:$0xff] %v734
          %799 = vst [vmem:[#allocation2 + $0x18] sm:$0xff] %v735
          %800 = vst [vmem:[#allocation2 + $0x20] sm:$0xff] %v780
          %801 = vst [vmem:[#allocation2 + $0x28] sm:$0xff] %v781
          %802 = vst [vmem:[#allocation2 + $0x30] sm:$0xff] %v782
          %803 = vst [vmem:[#allocation2 + $0x38] sm:$0xff] %v783
          %804 = vst [vmem:[#allocation2 + $0x40] sm:$0xff] %v736
          %805 = vst [vmem:[#allocation2 + $0x48] sm:$0xff] %v737
          %806 = vst [vmem:[#allocation2 + $0x50] sm:$0xff] %v738
          %807 = vst [vmem:[#allocation2 + $0x58] sm:$0xff] %v739
          %808 = vst [vmem:[#allocation2 + $0x60] sm:$0xff] %v784
          %809 = vst [vmem:[#allocation2 + $0x68] sm:$0xff] %v785
          %810 = vst [vmem:[#allocation2 + $0x70] sm:$0xff] %v786
          %811 = vst [vmem:[#allocation2 + $0x78] sm:$0xff] %v787
          %812 = vst [vmem:[#allocation2 + $0x80] sm:$0xff] %v740
          %813 = vst [vmem:[#allocation2 + $0x88] sm:$0xff] %v741
          %814 = vst [vmem:[#allocation2 + $0x90] sm:$0xff] %v742
          %815 = vst [vmem:[#allocation2 + $0x98] sm:$0xff] %v743
          %816 = vst [vmem:[#allocation2 + $0xa0] sm:$0xff] %v788
          %817 = vst [vmem:[#allocation2 + $0xa8] sm:$0xff] %v789
          %818 = vst [vmem:[#allocation2 + $0xb0] sm:$0xff] %v790
          %819 = vst [vmem:[#allocation2 + $0xb8] sm:$0xff] %v791
          %820 = vst [vmem:[#allocation2 + $0xc0] sm:$0xff] %v744
          %821 = vst [vmem:[#allocation2 + $0xc8] sm:$0xff] %v745
          %822 = vst [vmem:[#allocation2 + $0xd0] sm:$0xff] %v746
          %823 = vst [vmem:[#allocation2 + $0xd8] sm:$0xff] %v747
          %824 = vst [vmem:[#allocation2 + $0xe0] sm:$0xff] %v792
          %825 = vst [vmem:[#allocation2 + $0xe8] sm:$0xff] %v793
          %826 = vst [vmem:[#allocation2 + $0xf0] sm:$0xff] %v794
          %827 = vst [vmem:[#allocation2 + $0xf8] sm:$0xff] %v795
        $region68: #{tpu_custom_call.1} parent=43 // pred_fallthru
          _
        %s828 = smul.u32 %s28, 128
        %s829 = scalar_lea.vmem [#allocation3], %s828
        %v830 = vld [vmem:[%s829] sm:$0xff]
        %v831 = vld [vmem:[%s829 + $0x8] sm:$0xff]
        %v832 = vld [vmem:[%s829 + $0x10] sm:$0xff]
        %v833 = vld [vmem:[%s829 + $0x18] sm:$0xff]
        %v834 = vld [vmem:[%s829 + $0x20] sm:$0xff]
        %v835 = vld [vmem:[%s829 + $0x28] sm:$0xff]
        %v836 = vld [vmem:[%s829 + $0x30] sm:$0xff]
        %v837 = vld [vmem:[%s829 + $0x38] sm:$0xff]
        %v838 = vld [vmem:[%s829 + $0x40] sm:$0xff]
        %v839 = vld [vmem:[%s829 + $0x48] sm:$0xff]
        %v840 = vld [vmem:[%s829 + $0x50] sm:$0xff]
        %v841 = vld [vmem:[%s829 + $0x58] sm:$0xff]
        %v842 = vld [vmem:[%s829 + $0x60] sm:$0xff]
        %v843 = vld [vmem:[%s829 + $0x68] sm:$0xff]
        %v844 = vld [vmem:[%s829 + $0x70] sm:$0xff]
        %v845 = vld [vmem:[%s829 + $0x78] sm:$0xff]
        %v846 = vld [vmem:[#allocation6] sm:$0xff]
        %v847 = vld [vmem:[#allocation6 + $0x8] sm:$0xff]
        %v848 = vld [vmem:[#allocation6 + $0x20] sm:$0xff]
        %v849 = vld [vmem:[#allocation6 + $0x28] sm:$0xff]
        %v850 = vld [vmem:[#allocation6 + $0x40] sm:$0xff]
        %v851 = vld [vmem:[#allocation6 + $0x48] sm:$0xff]
        %v852 = vld [vmem:[#allocation6 + $0x60] sm:$0xff]
        %v853 = vld [vmem:[#allocation6 + $0x68] sm:$0xff]
        %v854 = vld [vmem:[#allocation6 + $0x80] sm:$0xff]
        %v855 = vld [vmem:[#allocation6 + $0x88] sm:$0xff]
        %v856 = vld [vmem:[#allocation6 + $0xa0] sm:$0xff]
        %v857 = vld [vmem:[#allocation6 + $0xa8] sm:$0xff]
        %v858 = vld [vmem:[#allocation6 + $0xc0] sm:$0xff]
        %v859 = vld [vmem:[#allocation6 + $0xc8] sm:$0xff]
        %v860 = vld [vmem:[#allocation6 + $0xe0] sm:$0xff]
        %v861 = vld [vmem:[#allocation6 + $0xe8] sm:$0xff]
        %v862 = vld [vmem:[#allocation6 + $0x100] sm:$0xff]
        %v863 = vld [vmem:[#allocation6 + $0x108] sm:$0xff]
        %v864 = vld [vmem:[#allocation6 + $0x120] sm:$0xff]
        %v865 = vld [vmem:[#allocation6 + $0x128] sm:$0xff]
        %v866 = vld [vmem:[#allocation6 + $0x140] sm:$0xff]
        %v867 = vld [vmem:[#allocation6 + $0x148] sm:$0xff]
        %v868 = vld [vmem:[#allocation6 + $0x160] sm:$0xff]
        %v869 = vld [vmem:[#allocation6 + $0x168] sm:$0xff]
        %v870 = vld [vmem:[#allocation6 + $0x180] sm:$0xff]
        %v871 = vld [vmem:[#allocation6 + $0x188] sm:$0xff]
        %v872 = vld [vmem:[#allocation6 + $0x1a0] sm:$0xff]
        %v873 = vld [vmem:[#allocation6 + $0x1a8] sm:$0xff]
        %v874 = vld [vmem:[#allocation6 + $0x1c0] sm:$0xff]
        %v875 = vld [vmem:[#allocation6 + $0x1c8] sm:$0xff]
        %v876 = vld [vmem:[#allocation6 + $0x1e0] sm:$0xff]
        %v877 = vld [vmem:[#allocation6 + $0x1e8] sm:$0xff]
        %v878 = vld [vmem:[#allocation8] sm:$0x3]
        %v880 = vlaneseq
        %v881 = vshrl.u32 %v880, 7
        %v882 = vsub.s32 0, %v881
        %v883 = vrot.slane %v878, %v882
        %v884 = vlaneseq
        %v885 = vshrl.u32 %v884, 7
        %v886 = vsub.s32 1, %v885
        %v887 = vrot.slane %v878, %v886
        %890 = vmatprep.subr.mxu0 %v877
        %891 = vmatpush1.msra.mxu0 %v876
        %892 = vmatprep.subr.mxu0 %v875
        %893 = vmatpush1.msra.mxu0 %v874
        %894 = vmatprep.subr.mxu0 %v873
        %895 = vmatpush1.msra.mxu0 %v872
        %896 = vmatprep.subr.mxu0 %v871
        %897 = vmatpush1.msra.mxu0 %v870
        %898 = vmatprep.subr.mxu0 %v869
        %899 = vmatpush1.msra.mxu0 %v868
        %900 = vmatprep.subr.mxu0 %v867
        %901 = vmatpush1.msra.mxu0 %v866
        %902 = vmatprep.subr.mxu0 %v865
        %903 = vmatpush1.msra.mxu0 %v864
        %904 = vmatprep.subr.mxu0 %v863
        %905 = vmatpush1.msra.mxu0 %v862
        %906 = vmatprep.subr.mxu0 %v861
        %907 = vmatpush1.msra.mxu0 %v860
        %908 = vmatprep.subr.mxu0 %v859
        %909 = vmatpush1.msra.mxu0 %v858
        %910 = vmatprep.subr.mxu0 %v857
        %911 = vmatpush1.msra.mxu0 %v856
        %912 = vmatprep.subr.mxu0 %v855
        %913 = vmatpush1.msra.mxu0 %v854
        %914 = vmatprep.subr.mxu0 %v853
        %915 = vmatpush1.msra.mxu0 %v852
        %916 = vmatprep.subr.mxu0 %v851
        %917 = vmatpush1.msra.mxu0 %v850
        %918 = vmatprep.subr.mxu0 %v849
        %919 = vmatpush1.msra.mxu0 %v848
        %920 = vmatprep.subr.mxu0 %v847
        %921 = vmatpush1.msra.mxu0 %v846
        %922 = vmatprep.subr.mxu0 0.0
        %923 = vmatpush2.msra.mxu0 0.0
        %924 = vmatprep.subr.mxu0 0.0
        %925 = vmatpush2.msra.mxu0 0.0
        %926 = vmatprep.subr.mxu0 0.0
        %927 = vmatpush2.msra.mxu0 0.0
        %928 = vmatprep.subr.mxu0 0.0
        %929 = vmatpush2.msra.mxu0 0.0
        %930 = vmatprep.subr.mxu0 0.0
        %931 = vmatpush2.msra.mxu0 0.0
        %932 = vmatprep.subr.mxu0 0.0
        %933 = vmatpush2.msra.mxu0 0.0
        %934 = vmatprep.subr.mxu0 0.0
        %935 = vmatpush2.msra.mxu0 0.0
        %936 = vmatprep.subr.mxu0 0.0
        %937 = vmatpush2.msra.mxu0 0.0
        %938 = vmatprep.subr.mxu0 0.0
        %939 = vmatpush2.msra.mxu0 0.0
        %940 = vmatprep.subr.mxu0 0.0
        %941 = vmatpush2.msra.mxu0 0.0
        %942 = vmatprep.subr.mxu0 0.0
        %943 = vmatpush2.msra.mxu0 0.0
        %944 = vmatprep.subr.mxu0 0.0
        %945 = vmatpush2.msra.mxu0 0.0
        %946 = vmatprep.subr.mxu0 0.0
        %947 = vmatpush2.msra.mxu0 0.0
        %948 = vmatprep.subr.mxu0 0.0
        %949 = vmatpush2.msra.mxu0 0.0
        %950 = vmatprep.subr.mxu0 0.0
        %951 = vmatpush2.msra.mxu0 0.0
        %952 = vmatprep.subr.mxu0 0.0
        %953 = vmatpush2.msra.mxu0 0.0
        %954 = vmatprep.mubr.f32.mxu0 0.0
        %955 = vmatmul.mubr.f32.gmra.mxu0 %v830
        %v956 = vpop.f32.mrf.mxu0
        %v957 = vadd.f32 %v883, %v956
        %v958 = vpop.f32.mrf.mxu0
        %v959 = vadd.f32 %v887, %v958
        %960 = vmatprep.mubr.f32.mxu0 0.0
        %961 = vmatmul.mubr.f32.gmra.mxu0 %v831
        %v962 = vpop.f32.mrf.mxu0
        %v963 = vadd.f32 %v883, %v962
        %v964 = vpop.f32.mrf.mxu0
        %v965 = vadd.f32 %v887, %v964
        %966 = vmatprep.mubr.f32.mxu0 0.0
        %967 = vmatmul.mubr.f32.gmra.mxu0 %v832
        %v968 = vpop.f32.mrf.mxu0
        %v969 = vadd.f32 %v883, %v968
        %v970 = vpop.f32.mrf.mxu0
        %v971 = vadd.f32 %v887, %v970
        %972 = vmatprep.mubr.f32.mxu0 0.0
        %973 = vmatmul.mubr.f32.gmra.mxu0 %v833
        %v974 = vpop.f32.mrf.mxu0
        %v975 = vadd.f32 %v883, %v974
        %v976 = vpop.f32.mrf.mxu0
        %v977 = vadd.f32 %v887, %v976
        %978 = vmatprep.mubr.f32.mxu0 0.0
        %979 = vmatmul.mubr.f32.gmra.mxu0 %v834
        %v980 = vpop.f32.mrf.mxu0
        %v981 = vadd.f32 %v883, %v980
        %v982 = vpop.f32.mrf.mxu0
        %v983 = vadd.f32 %v887, %v982
        %984 = vmatprep.mubr.f32.mxu0 0.0
        %985 = vmatmul.mubr.f32.gmra.mxu0 %v835
        %v986 = vpop.f32.mrf.mxu0
        %v987 = vadd.f32 %v883, %v986
        %v988 = vpop.f32.mrf.mxu0
        %v989 = vadd.f32 %v887, %v988
        %990 = vmatprep.mubr.f32.mxu0 0.0
        %991 = vmatmul.mubr.f32.gmra.mxu0 %v836
        %v992 = vpop.f32.mrf.mxu0
        %v993 = vadd.f32 %v883, %v992
        %v994 = vpop.f32.mrf.mxu0
        %v995 = vadd.f32 %v887, %v994
        %996 = vmatprep.mubr.f32.mxu0 0.0
        %997 = vmatmul.mubr.f32.gmra.mxu0 %v837
        %v998 = vpop.f32.mrf.mxu0
        %v999 = vadd.f32 %v883, %v998
        %v1000 = vpop.f32.mrf.mxu0
        %v1001 = vadd.f32 %v887, %v1000
        %1002 = vmatprep.mubr.f32.mxu0 0.0
        %1003 = vmatmul.mubr.f32.gmra.mxu0 %v838
        %v1004 = vpop.f32.mrf.mxu0
        %v1005 = vadd.f32 %v883, %v1004
        %v1006 = vpop.f32.mrf.mxu0
        %v1007 = vadd.f32 %v887, %v1006
        %1008 = vmatprep.mubr.f32.mxu0 0.0
        %1009 = vmatmul.mubr.f32.gmra.mxu0 %v839
        %v1010 = vpop.f32.mrf.mxu0
        %v1011 = vadd.f32 %v883, %v1010
        %v1012 = vpop.f32.mrf.mxu0
        %v1013 = vadd.f32 %v887, %v1012
        %1014 = vmatprep.mubr.f32.mxu0 0.0
        %1015 = vmatmul.mubr.f32.gmra.mxu0 %v840
        %v1016 = vpop.f32.mrf.mxu0
        %v1017 = vadd.f32 %v883, %v1016
        %v1018 = vpop.f32.mrf.mxu0
        %v1019 = vadd.f32 %v887, %v1018
        %1020 = vmatprep.mubr.f32.mxu0 0.0
        %1021 = vmatmul.mubr.f32.gmra.mxu0 %v841
        %v1022 = vpop.f32.mrf.mxu0
        %v1023 = vadd.f32 %v883, %v1022
        %v1024 = vpop.f32.mrf.mxu0
        %v1025 = vadd.f32 %v887, %v1024
        %1026 = vmatprep.mubr.f32.mxu0 0.0
        %1027 = vmatmul.mubr.f32.gmra.mxu0 %v842
        %v1028 = vpop.f32.mrf.mxu0
        %v1029 = vadd.f32 %v883, %v1028
        %v1030 = vpop.f32.mrf.mxu0
        %v1031 = vadd.f32 %v887, %v1030
        %1032 = vmatprep.mubr.f32.mxu0 0.0
        %1033 = vmatmul.mubr.f32.gmra.mxu0 %v843
        %v1034 = vpop.f32.mrf.mxu0
        %v1035 = vadd.f32 %v883, %v1034
        %v1036 = vpop.f32.mrf.mxu0
        %v1037 = vadd.f32 %v887, %v1036
        %1038 = vmatprep.mubr.f32.mxu0 0.0
        %1039 = vmatmul.mubr.f32.gmra.mxu0 %v844
        %v1040 = vpop.f32.mrf.mxu0
        %v1041 = vadd.f32 %v883, %v1040
        %v1042 = vpop.f32.mrf.mxu0
        %v1043 = vadd.f32 %v887, %v1042
        %1044 = vmatprep.mubr.f32.mxu0 0.0
        %1045 = vmatmul.mubr.f32.gmra.mxu0 %v845
        %v1046 = vpop.f32.mrf.mxu0
        %v1047 = vadd.f32 %v883, %v1046
        %v1048 = vpop.f32.mrf.mxu0
        %v1049 = vadd.f32 %v887, %v1048
        %1050 = vdwg.mxu0
        %s1051 = scalar_lea.vmem [#allocation9], %s828
        %v1052 = vld [vmem:[%s1051] sm:$0xff]
        %v1053 = vld [vmem:[%s1051 + $0x8] sm:$0xff]
        %v1054 = vld [vmem:[%s1051 + $0x10] sm:$0xff]
        %v1055 = vld [vmem:[%s1051 + $0x18] sm:$0xff]
        %v1056 = vld [vmem:[%s1051 + $0x20] sm:$0xff]
        %v1057 = vld [vmem:[%s1051 + $0x28] sm:$0xff]
        %v1058 = vld [vmem:[%s1051 + $0x30] sm:$0xff]
        %v1059 = vld [vmem:[%s1051 + $0x38] sm:$0xff]
        %v1060 = vld [vmem:[%s1051 + $0x40] sm:$0xff]
        %v1061 = vld [vmem:[%s1051 + $0x48] sm:$0xff]
        %v1062 = vld [vmem:[%s1051 + $0x50] sm:$0xff]
        %v1063 = vld [vmem:[%s1051 + $0x58] sm:$0xff]
        %v1064 = vld [vmem:[%s1051 + $0x60] sm:$0xff]
        %v1065 = vld [vmem:[%s1051 + $0x68] sm:$0xff]
        %v1066 = vld [vmem:[%s1051 + $0x70] sm:$0xff]
        %v1067 = vld [vmem:[%s1051 + $0x78] sm:$0xff]
        %s1068 = scalar_lea.vmem [#allocation11], %s828
        %v1069 = vld [vmem:[%s1068] sm:$0xff]
        %v1070 = vld [vmem:[%s1068 + $0x8] sm:$0xff]
        %v1071 = vld [vmem:[%s1068 + $0x10] sm:$0xff]
        %v1072 = vld [vmem:[%s1068 + $0x18] sm:$0xff]
        %v1073 = vld [vmem:[%s1068 + $0x20] sm:$0xff]
        %v1074 = vld [vmem:[%s1068 + $0x28] sm:$0xff]
        %v1075 = vld [vmem:[%s1068 + $0x30] sm:$0xff]
        %v1076 = vld [vmem:[%s1068 + $0x38] sm:$0xff]
        %v1077 = vld [vmem:[%s1068 + $0x40] sm:$0xff]
        %v1078 = vld [vmem:[%s1068 + $0x48] sm:$0xff]
        %v1079 = vld [vmem:[%s1068 + $0x50] sm:$0xff]
        %v1080 = vld [vmem:[%s1068 + $0x58] sm:$0xff]
        %v1081 = vld [vmem:[%s1068 + $0x60] sm:$0xff]
        %v1082 = vld [vmem:[%s1068 + $0x68] sm:$0xff]
        %v1083 = vld [vmem:[%s1068 + $0x70] sm:$0xff]
        %v1084 = vld [vmem:[%s1068 + $0x78] sm:$0xff]
        %v1085 = vmul.f32 %v957, %v1052
        %v1086 = vmul.f32 %v963, %v1053
        %v1087 = vmul.f32 %v969, %v1054
        %v1088 = vmul.f32 %v975, %v1055
        %v1089 = vmul.f32 %v981, %v1056
        %v1090 = vmul.f32 %v987, %v1057
        %v1091 = vmul.f32 %v993, %v1058
        %v1092 = vmul.f32 %v999, %v1059
        %v1093 = vmul.f32 %v1005, %v1060
        %v1094 = vmul.f32 %v1011, %v1061
        %v1095 = vmul.f32 %v1017, %v1062
        %v1096 = vmul.f32 %v1023, %v1063
        %v1097 = vmul.f32 %v1029, %v1064
        %v1098 = vmul.f32 %v1035, %v1065
        %v1099 = vmul.f32 %v1041, %v1066
        %v1100 = vmul.f32 %v1047, %v1067
        %v1101 = vmul.f32 %v959, %v1069
        %v1102 = vmul.f32 %v965, %v1070
        %v1103 = vmul.f32 %v971, %v1071
        %v1104 = vmul.f32 %v977, %v1072
        %v1105 = vmul.f32 %v983, %v1073
        %v1106 = vmul.f32 %v989, %v1074
        %v1107 = vmul.f32 %v995, %v1075
        %v1108 = vmul.f32 %v1001, %v1076
        %v1109 = vmul.f32 %v1007, %v1077
        %v1110 = vmul.f32 %v1013, %v1078
        %v1111 = vmul.f32 %v1019, %v1079
        %v1112 = vmul.f32 %v1025, %v1080
        %v1113 = vmul.f32 %v1031, %v1081
        %v1114 = vmul.f32 %v1037, %v1082
        %v1115 = vmul.f32 %v1043, %v1083
        %v1116 = vmul.f32 %v1049, %v1084
        %v1117 = vsub.f32 %v1085, %v1101
        %v1118 = vsub.f32 %v1086, %v1102
        %v1119 = vsub.f32 %v1087, %v1103
        %v1120 = vsub.f32 %v1088, %v1104
        %v1121 = vsub.f32 %v1089, %v1105
        %v1122 = vsub.f32 %v1090, %v1106
        %v1123 = vsub.f32 %v1091, %v1107
        %v1124 = vsub.f32 %v1092, %v1108
        %v1125 = vsub.f32 %v1093, %v1109
        %v1126 = vsub.f32 %v1094, %v1110
        %v1127 = vsub.f32 %v1095, %v1111
        %v1128 = vsub.f32 %v1096, %v1112
        %v1129 = vsub.f32 %v1097, %v1113
        %v1130 = vsub.f32 %v1098, %v1114
        %v1131 = vsub.f32 %v1099, %v1115
        %v1132 = vsub.f32 %v1100, %v1116
        %v1133 = vmul.f32 %v959, %v1052
        %v1134 = vmul.f32 %v965, %v1053
        %v1135 = vmul.f32 %v971, %v1054
        %v1136 = vmul.f32 %v977, %v1055
        %v1137 = vmul.f32 %v983, %v1056
        %v1138 = vmul.f32 %v989, %v1057
        %v1139 = vmul.f32 %v995, %v1058
        %v1140 = vmul.f32 %v1001, %v1059
        %v1141 = vmul.f32 %v1007, %v1060
        %v1142 = vmul.f32 %v1013, %v1061
        %v1143 = vmul.f32 %v1019, %v1062
        %v1144 = vmul.f32 %v1025, %v1063
        %v1145 = vmul.f32 %v1031, %v1064
        %v1146 = vmul.f32 %v1037, %v1065
        %v1147 = vmul.f32 %v1043, %v1066
        %v1148 = vmul.f32 %v1049, %v1067
        %v1149 = vmul.f32 %v957, %v1069
        %v1150 = vmul.f32 %v963, %v1070
        %v1151 = vmul.f32 %v969, %v1071
        %v1152 = vmul.f32 %v975, %v1072
        %v1153 = vmul.f32 %v981, %v1073
        %v1154 = vmul.f32 %v987, %v1074
        %v1155 = vmul.f32 %v993, %v1075
        %v1156 = vmul.f32 %v999, %v1076
        %v1157 = vmul.f32 %v1005, %v1077
        %v1158 = vmul.f32 %v1011, %v1078
        %v1159 = vmul.f32 %v1017, %v1079
        %v1160 = vmul.f32 %v1023, %v1080
        %v1161 = vmul.f32 %v1029, %v1081
        %v1162 = vmul.f32 %v1035, %v1082
        %v1163 = vmul.f32 %v1041, %v1083
        %v1164 = vmul.f32 %v1047, %v1084
        %v1165 = vadd.f32 %v1133, %v1149
        %v1166 = vadd.f32 %v1134, %v1150
        %v1167 = vadd.f32 %v1135, %v1151
        %v1168 = vadd.f32 %v1136, %v1152
        %v1169 = vadd.f32 %v1137, %v1153
        %v1170 = vadd.f32 %v1138, %v1154
        %v1171 = vadd.f32 %v1139, %v1155
        %v1172 = vadd.f32 %v1140, %v1156
        %v1173 = vadd.f32 %v1141, %v1157
        %v1174 = vadd.f32 %v1142, %v1158
        %v1175 = vadd.f32 %v1143, %v1159
        %v1176 = vadd.f32 %v1144, %v1160
        %v1177 = vadd.f32 %v1145, %v1161
        %v1178 = vadd.f32 %v1146, %v1162
        %v1179 = vadd.f32 %v1147, %v1163
        %v1180 = vadd.f32 %v1148, %v1164
        %v1181 = vlaneseq
        %v1182 = vshrl.u32 %v1181, 7
        %v1183 = vadd.s32 %v1182, 8
        %v1184 = vadd.s32 %v1182, 16
        %v1185 = vadd.s32 %v1182, 24
        %v1186 = vadd.s32 %v1182, 32
        %v1187 = vadd.s32 %v1182, 40
        %v1188 = vadd.s32 %v1182, 48
        %v1189 = vadd.s32 %v1182, 56
        %v1190 = vadd.s32 %v1182, 64
        %v1191 = vadd.s32 %v1182, 72
        %v1192 = vadd.s32 %v1182, 80
        %v1193 = vadd.s32 %v1182, 88
        %v1194 = vadd.s32 %v1182, 96
        %v1195 = vadd.s32 %v1182, 104
        %v1196 = vadd.s32 %v1182, 112
        %v1197 = vadd.s32 %v1182, 120
        %v1198 = vstv %s828
        %v1199 = vadd.s32 %v1182, %v1198
        %v1200 = vadd.s32 %v1183, %v1198
        %v1201 = vadd.s32 %v1184, %v1198
        %v1202 = vadd.s32 %v1185, %v1198
        %v1203 = vadd.s32 %v1186, %v1198
        %v1204 = vadd.s32 %v1187, %v1198
        %v1205 = vadd.s32 %v1188, %v1198
        %v1206 = vadd.s32 %v1189, %v1198
        %v1207 = vadd.s32 %v1190, %v1198
        %v1208 = vadd.s32 %v1191, %v1198
        %v1209 = vadd.s32 %v1192, %v1198
        %v1210 = vadd.s32 %v1193, %v1198
        %v1211 = vadd.s32 %v1194, %v1198
        %v1212 = vadd.s32 %v1195, %v1198
        %v1213 = vadd.s32 %v1196, %v1198
        %v1214 = vadd.s32 %v1197, %v1198
        %v1215 = vlaneseq
        %v1216 = vand.u32 %v1215, 127
        %v1217 = vld [vmem:[%s336] sm:$0x1]
        %vm1218 = vcmp.lt.s32.totalorder %v1216, %v1199
        %vm1219 = vcmp.lt.s32.totalorder %v1216, %v1200
        %vm1220 = vcmp.lt.s32.totalorder %v1216, %v1201
        %vm1221 = vcmp.lt.s32.totalorder %v1216, %v1202
        %vm1222 = vcmp.lt.s32.totalorder %v1216, %v1203
        %vm1223 = vcmp.lt.s32.totalorder %v1216, %v1204
        %vm1224 = vcmp.lt.s32.totalorder %v1216, %v1205
        %vm1225 = vcmp.lt.s32.totalorder %v1216, %v1206
        %vm1226 = vcmp.lt.s32.totalorder %v1216, %v1207
        %vm1227 = vcmp.lt.s32.totalorder %v1216, %v1208
        %vm1228 = vcmp.lt.s32.totalorder %v1216, %v1209
        %vm1229 = vcmp.lt.s32.totalorder %v1216, %v1210
        %vm1230 = vcmp.lt.s32.totalorder %v1216, %v1211
        %vm1231 = vcmp.lt.s32.totalorder %v1216, %v1212
        %vm1232 = vcmp.lt.s32.totalorder %v1216, %v1213
        %vm1233 = vcmp.lt.s32.totalorder %v1216, %v1214
        %v1234 = vsel %vm1218, -1.25e+11, 0.0
        %v1235 = vsel %vm1219, -1.25e+11, 0.0
        %v1236 = vsel %vm1220, -1.25e+11, 0.0
        %v1237 = vsel %vm1221, -1.25e+11, 0.0
        %v1238 = vsel %vm1222, -1.25e+11, 0.0
        %v1239 = vsel %vm1223, -1.25e+11, 0.0
        %v1240 = vsel %vm1224, -1.25e+11, 0.0
        %v1241 = vsel %vm1225, -1.25e+11, 0.0
        %v1242 = vsel %vm1226, -1.25e+11, 0.0
        %v1243 = vsel %vm1227, -1.25e+11, 0.0
        %v1244 = vsel %vm1228, -1.25e+11, 0.0
        %v1245 = vsel %vm1229, -1.25e+11, 0.0
        %v1246 = vsel %vm1230, -1.25e+11, 0.0
        %v1247 = vsel %vm1231, -1.25e+11, 0.0
        %v1248 = vsel %vm1232, -1.25e+11, 0.0
        %v1249 = vsel %vm1233, -1.25e+11, 0.0
        %v1251 = vlaneseq
        %v1252 = vshrl.u32 %v1251, 7
        %v1253 = vsub.s32 0, %v1252
        %v1254 = vrot.slane %v1217, %v1253
        %v1256 = vadd.f32 %v1254, %v1234
        %v1257 = vadd.f32 %v1254, %v1235
        %v1258 = vadd.f32 %v1254, %v1236
        %v1259 = vadd.f32 %v1254, %v1237
        %v1260 = vadd.f32 %v1254, %v1238
        %v1261 = vadd.f32 %v1254, %v1239
        %v1262 = vadd.f32 %v1254, %v1240
        %v1263 = vadd.f32 %v1254, %v1241
        %v1264 = vadd.f32 %v1254, %v1242
        %v1265 = vadd.f32 %v1254, %v1243
        %v1266 = vadd.f32 %v1254, %v1244
        %v1267 = vadd.f32 %v1254, %v1245
        %v1268 = vadd.f32 %v1254, %v1246
        %v1269 = vadd.f32 %v1254, %v1247
        %v1270 = vadd.f32 %v1254, %v1248
        %v1271 = vadd.f32 %v1254, %v1249
        %1288 = vrot.lane.b32.xlu0 %v1165, 32
        %v1289 = vpop.permute.xlu0 %1288
        %1290 = vrot.lane.b32.xlu0 %v1166, 32
        %v1291 = vpop.permute.xlu0 %1290
        %1292 = vrot.lane.b32.xlu0 %v1167, 32
        %v1293 = vpop.permute.xlu0 %1292
        %1294 = vrot.lane.b32.xlu0 %v1168, 32
        %v1295 = vpop.permute.xlu0 %1294
        %1296 = vrot.lane.b32.xlu0 %v1169, 32
        %v1297 = vpop.permute.xlu0 %1296
        %1298 = vrot.lane.b32.xlu0 %v1170, 32
        %v1299 = vpop.permute.xlu0 %1298
        %1300 = vrot.lane.b32.xlu0 %v1171, 32
        %v1301 = vpop.permute.xlu0 %1300
        %1302 = vrot.lane.b32.xlu0 %v1172, 32
        %v1303 = vpop.permute.xlu0 %1302
        %1304 = vrot.lane.b32.xlu0 %v1173, 32
        %v1305 = vpop.permute.xlu0 %1304
        %1306 = vrot.lane.b32.xlu0 %v1174, 32
        %v1307 = vpop.permute.xlu0 %1306
        %1308 = vrot.lane.b32.xlu0 %v1175, 32
        %v1309 = vpop.permute.xlu0 %1308
        %1310 = vrot.lane.b32.xlu0 %v1176, 32
        %v1311 = vpop.permute.xlu0 %1310
        %1312 = vrot.lane.b32.xlu0 %v1177, 32
        %v1313 = vpop.permute.xlu0 %1312
        %1314 = vrot.lane.b32.xlu0 %v1178, 32
        %v1315 = vpop.permute.xlu0 %1314
        %1316 = vrot.lane.b32.xlu0 %v1179, 32
        %v1317 = vpop.permute.xlu0 %1316
        %1318 = vrot.lane.b32.xlu0 %v1180, 32
        %v1319 = vpop.permute.xlu0 %1318
        %vm1336 = vcmask 261120
        %v1337 = vsel %vm1336, %v1117, %v1289
        %v1338 = vsel %vm1336, %v1118, %v1291
        %v1339 = vsel %vm1336, %v1119, %v1293
        %v1340 = vsel %vm1336, %v1120, %v1295
        %v1341 = vsel %vm1336, %v1121, %v1297
        %v1342 = vsel %vm1336, %v1122, %v1299
        %v1343 = vsel %vm1336, %v1123, %v1301
        %v1344 = vsel %vm1336, %v1124, %v1303
        %v1345 = vsel %vm1336, %v1125, %v1305
        %v1346 = vsel %vm1336, %v1126, %v1307
        %v1347 = vsel %vm1336, %v1127, %v1309
        %v1348 = vsel %vm1336, %v1128, %v1311
        %v1349 = vsel %vm1336, %v1129, %v1313
        %v1350 = vsel %vm1336, %v1130, %v1315
        %v1351 = vsel %vm1336, %v1131, %v1317
        %v1352 = vsel %vm1336, %v1132, %v1319
        %v1353 = vld [vmem:[#allocation2] sm:$0xff]
        %v1354 = vld [vmem:[#allocation2 + $0x8] sm:$0xff]
        %v1355 = vld [vmem:[#allocation2 + $0x10] sm:$0xff]
        %v1356 = vld [vmem:[#allocation2 + $0x18] sm:$0xff]
        %v1357 = vld [vmem:[#allocation2 + $0x20] sm:$0xff]
        %v1358 = vld [vmem:[#allocation2 + $0x28] sm:$0xff]
        %v1359 = vld [vmem:[#allocation2 + $0x30] sm:$0xff]
        %v1360 = vld [vmem:[#allocation2 + $0x38] sm:$0xff]
        %vm1361 = vcmask 523264
        %v1363 = vsel %vm1361, %v1337, 0
        %v1366 = vsel %vm1361, %v1338, 0
        %v1369 = vsel %vm1361, %v1339, 0
        %v1372 = vsel %vm1361, %v1340, 0
        %v1375 = vsel %vm1361, %v1341, 0
        %v1378 = vsel %vm1361, %v1342, 0
        %v1381 = vsel %vm1361, %v1343, 0
        %v1384 = vsel %vm1361, %v1344, 0
        %v1387 = vsel %vm1361, %v1345, 0
        %v1390 = vsel %vm1361, %v1346, 0
        %v1393 = vsel %vm1361, %v1347, 0
        %v1396 = vsel %vm1361, %v1348, 0
        %v1399 = vsel %vm1361, %v1349, 0
        %v1402 = vsel %vm1361, %v1350, 0
        %v1405 = vsel %vm1361, %v1351, 0
        %v1408 = vsel %vm1361, %v1352, 0
        %1410 = vmatprep.subr.mxu0 0.0
        %1411 = vmatpush1.msra.mxu0 0.0
        %1412 = vmatprep.subr.mxu0 0.0
        %1413 = vmatpush1.msra.mxu0 0.0
        %1414 = vmatprep.subr.mxu0 0.0
        %1415 = vmatpush1.msra.mxu0 0.0
        %1416 = vmatprep.subr.mxu0 0.0
        %1417 = vmatpush1.msra.mxu0 0.0
        %1418 = vmatprep.subr.mxu0 0.0
        %1419 = vmatpush1.msra.mxu0 0.0
        %1420 = vmatprep.subr.mxu0 0.0
        %1421 = vmatpush1.msra.mxu0 0.0
        %1422 = vmatprep.subr.mxu0 0.0
        %1423 = vmatpush1.msra.mxu0 0.0
        %1424 = vmatprep.subr.mxu0 0.0
        %1425 = vmatpush1.msra.mxu0 0.0
        %1426 = vmatprep.subr.mxu0 0.0
        %1427 = vmatpush1.msra.mxu0 %v1360
        %1428 = vmatprep.subr.mxu0 0.0
        %1429 = vmatpush1.msra.mxu0 %v1359
        %1430 = vmatprep.subr.mxu0 0.0
        %1431 = vmatpush1.msra.mxu0 %v1358
        %1432 = vmatprep.subr.mxu0 0.0
        %1433 = vmatpush1.msra.mxu0 %v1357
        %1434 = vmatprep.subr.mxu0 0.0
        %1435 = vmatpush1.msra.mxu0 %v1356
        %1436 = vmatprep.subr.mxu0 0.0
        %1437 = vmatpush1.msra.mxu0 %v1355
        %1438 = vmatprep.subr.mxu0 0.0
        %1439 = vmatpush1.msra.mxu0 %v1354
        %1440 = vmatprep.subr.mxu0 0.0
        %1441 = vmatpush1.msra.mxu0 %v1353
        %1442 = vmatprep.subr.mxu0 0.0
        %1443 = vmatpush2.msra.mxu0 0.0
        %1444 = vmatprep.subr.mxu0 0.0
        %1445 = vmatpush2.msra.mxu0 0.0
        %1446 = vmatprep.subr.mxu0 0.0
        %1447 = vmatpush2.msra.mxu0 0.0
        %1448 = vmatprep.subr.mxu0 0.0
        %1449 = vmatpush2.msra.mxu0 0.0
        %1450 = vmatprep.subr.mxu0 0.0
        %1451 = vmatpush2.msra.mxu0 0.0
        %1452 = vmatprep.subr.mxu0 0.0
        %1453 = vmatpush2.msra.mxu0 0.0
        %1454 = vmatprep.subr.mxu0 0.0
        %1455 = vmatpush2.msra.mxu0 0.0
        %1456 = vmatprep.subr.mxu0 0.0
        %1457 = vmatpush2.msra.mxu0 0.0
        %1458 = vmatprep.subr.mxu0 0.0
        %1459 = vmatpush2.msra.mxu0 0.0
        %1460 = vmatprep.subr.mxu0 0.0
        %1461 = vmatpush2.msra.mxu0 0.0
        %1462 = vmatprep.subr.mxu0 0.0
        %1463 = vmatpush2.msra.mxu0 0.0
        %1464 = vmatprep.subr.mxu0 0.0
        %1465 = vmatpush2.msra.mxu0 0.0
        %1466 = vmatprep.subr.mxu0 0.0
        %1467 = vmatpush2.msra.mxu0 0.0
        %1468 = vmatprep.subr.mxu0 0.0
        %1469 = vmatpush2.msra.mxu0 0.0
        %1470 = vmatprep.subr.mxu0 0.0
        %1471 = vmatpush2.msra.mxu0 0.0
        %1472 = vmatprep.subr.mxu0 0.0
        %1473 = vmatpush2.msra.mxu0 0.0
        %1474 = vmatprep.mubr.f32.mxu0 0.0
        %1475 = vmatmul.mubr.f32.gmra.mxu0 %v1363
        %v1476 = vpop.f32.mrf.mxu0
        %v1477 = vadd.f32 %v1256, %v1476
        %v1478 = vpop.f32.mrf.mxu0
        %1479 = vmatprep.mubr.f32.mxu0 0.0
        %1480 = vmatmul.mubr.f32.gmra.mxu0 %v1366
        %v1481 = vpop.f32.mrf.mxu0
        %v1482 = vadd.f32 %v1257, %v1481
        %v1483 = vpop.f32.mrf.mxu0
        %1484 = vmatprep.mubr.f32.mxu0 0.0
        %1485 = vmatmul.mubr.f32.gmra.mxu0 %v1369
        %v1486 = vpop.f32.mrf.mxu0
        %v1487 = vadd.f32 %v1258, %v1486
        %v1488 = vpop.f32.mrf.mxu0
        %1489 = vmatprep.mubr.f32.mxu0 0.0
        %1490 = vmatmul.mubr.f32.gmra.mxu0 %v1372
        %v1491 = vpop.f32.mrf.mxu0
        %v1492 = vadd.f32 %v1259, %v1491
        %v1493 = vpop.f32.mrf.mxu0
        %1494 = vmatprep.mubr.f32.mxu0 0.0
        %1495 = vmatmul.mubr.f32.gmra.mxu0 %v1375
        %v1496 = vpop.f32.mrf.mxu0
        %v1497 = vadd.f32 %v1260, %v1496
        %v1498 = vpop.f32.mrf.mxu0
        %1499 = vmatprep.mubr.f32.mxu0 0.0
        %1500 = vmatmul.mubr.f32.gmra.mxu0 %v1378
        %v1501 = vpop.f32.mrf.mxu0
        %v1502 = vadd.f32 %v1261, %v1501
        %v1503 = vpop.f32.mrf.mxu0
        %1504 = vmatprep.mubr.f32.mxu0 0.0
        %1505 = vmatmul.mubr.f32.gmra.mxu0 %v1381
        %v1506 = vpop.f32.mrf.mxu0
        %v1507 = vadd.f32 %v1262, %v1506
        %v1508 = vpop.f32.mrf.mxu0
        %1509 = vmatprep.mubr.f32.mxu0 0.0
        %1510 = vmatmul.mubr.f32.gmra.mxu0 %v1384
        %v1511 = vpop.f32.mrf.mxu0
        %v1512 = vadd.f32 %v1263, %v1511
        %v1513 = vpop.f32.mrf.mxu0
        %1514 = vmatprep.mubr.f32.mxu0 0.0
        %1515 = vmatmul.mubr.f32.gmra.mxu0 %v1387
        %v1516 = vpop.f32.mrf.mxu0
        %v1517 = vadd.f32 %v1264, %v1516
        %v1518 = vpop.f32.mrf.mxu0
        %1519 = vmatprep.mubr.f32.mxu0 0.0
        %1520 = vmatmul.mubr.f32.gmra.mxu0 %v1390
        %v1521 = vpop.f32.mrf.mxu0
        %v1522 = vadd.f32 %v1265, %v1521
        %v1523 = vpop.f32.mrf.mxu0
        %1524 = vmatprep.mubr.f32.mxu0 0.0
        %1525 = vmatmul.mubr.f32.gmra.mxu0 %v1393
        %v1526 = vpop.f32.mrf.mxu0
        %v1527 = vadd.f32 %v1266, %v1526
        %v1528 = vpop.f32.mrf.mxu0
        %1529 = vmatprep.mubr.f32.mxu0 0.0
        %1530 = vmatmul.mubr.f32.gmra.mxu0 %v1396
        %v1531 = vpop.f32.mrf.mxu0
        %v1532 = vadd.f32 %v1267, %v1531
        %v1533 = vpop.f32.mrf.mxu0
        %1534 = vmatprep.mubr.f32.mxu0 0.0
        %1535 = vmatmul.mubr.f32.gmra.mxu0 %v1399
        %v1536 = vpop.f32.mrf.mxu0
        %v1537 = vadd.f32 %v1268, %v1536
        %v1538 = vpop.f32.mrf.mxu0
        %1539 = vmatprep.mubr.f32.mxu0 0.0
        %1540 = vmatmul.mubr.f32.gmra.mxu0 %v1402
        %v1541 = vpop.f32.mrf.mxu0
        %v1542 = vadd.f32 %v1269, %v1541
        %v1543 = vpop.f32.mrf.mxu0
        %1544 = vmatprep.mubr.f32.mxu0 0.0
        %1545 = vmatmul.mubr.f32.gmra.mxu0 %v1405
        %v1546 = vpop.f32.mrf.mxu0
        %v1547 = vadd.f32 %v1270, %v1546
        %v1548 = vpop.f32.mrf.mxu0
        %1549 = vmatprep.mubr.f32.mxu0 0.0
        %1550 = vmatmul.mubr.f32.gmra.mxu0 %v1408
        %v1551 = vpop.f32.mrf.mxu0
        %v1552 = vadd.f32 %v1271, %v1551
        %v1553 = vpop.f32.mrf.mxu0
        %1554 = vdwg.mxu0
        %1555 = vst [vmem:[%s333] sm:$0xff] %v1477
        %1556 = vst [vmem:[%s333 + $0x8] sm:$0xff] %v1482
        %1557 = vst [vmem:[%s333 + $0x10] sm:$0xff] %v1487
        %1558 = vst [vmem:[%s333 + $0x18] sm:$0xff] %v1492
        %1559 = vst [vmem:[%s333 + $0x20] sm:$0xff] %v1497
        %1560 = vst [vmem:[%s333 + $0x28] sm:$0xff] %v1502
        %1561 = vst [vmem:[%s333 + $0x30] sm:$0xff] %v1507
        %1562 = vst [vmem:[%s333 + $0x38] sm:$0xff] %v1512
        %1563 = vst [vmem:[%s333 + $0x40] sm:$0xff] %v1517
        %1564 = vst [vmem:[%s333 + $0x48] sm:$0xff] %v1522
        %1565 = vst [vmem:[%s333 + $0x50] sm:$0xff] %v1527
        %1566 = vst [vmem:[%s333 + $0x58] sm:$0xff] %v1532
        %1567 = vst [vmem:[%s333 + $0x60] sm:$0xff] %v1537
        %1568 = vst [vmem:[%s333 + $0x68] sm:$0xff] %v1542
        %1569 = vst [vmem:[%s333 + $0x70] sm:$0xff] %v1547
        %1570 = vst [vmem:[%s333 + $0x78] sm:$0xff] %v1552
        %1587 = vrot.lane.b32.xlu0 %v1117, 96
        %v1588 = vpop.permute.xlu0 %1587
        %1589 = vrot.lane.b32.xlu0 %v1118, 96
        %v1590 = vpop.permute.xlu0 %1589
        %1591 = vrot.lane.b32.xlu0 %v1119, 96
        %v1592 = vpop.permute.xlu0 %1591
        %1593 = vrot.lane.b32.xlu0 %v1120, 96
        %v1594 = vpop.permute.xlu0 %1593
        %1595 = vrot.lane.b32.xlu0 %v1121, 96
        %v1596 = vpop.permute.xlu0 %1595
        %1597 = vrot.lane.b32.xlu0 %v1122, 96
        %v1598 = vpop.permute.xlu0 %1597
        %1599 = vrot.lane.b32.xlu0 %v1123, 96
        %v1600 = vpop.permute.xlu0 %1599
        %1601 = vrot.lane.b32.xlu0 %v1124, 96
        %v1602 = vpop.permute.xlu0 %1601
        %1603 = vrot.lane.b32.xlu0 %v1125, 96
        %v1604 = vpop.permute.xlu0 %1603
        %1605 = vrot.lane.b32.xlu0 %v1126, 96
        %v1606 = vpop.permute.xlu0 %1605
        %1607 = vrot.lane.b32.xlu0 %v1127, 96
        %v1608 = vpop.permute.xlu0 %1607
        %1609 = vrot.lane.b32.xlu0 %v1128, 96
        %v1610 = vpop.permute.xlu0 %1609
        %1611 = vrot.lane.b32.xlu0 %v1129, 96
        %v1612 = vpop.permute.xlu0 %1611
        %1613 = vrot.lane.b32.xlu0 %v1130, 96
        %v1614 = vpop.permute.xlu0 %1613
        %1615 = vrot.lane.b32.xlu0 %v1131, 96
        %v1616 = vpop.permute.xlu0 %1615
        %1617 = vrot.lane.b32.xlu0 %v1132, 96
        %v1618 = vpop.permute.xlu0 %1617
        %v1635 = vsel %vm1336, %v1588, %v1165
        %v1636 = vsel %vm1336, %v1590, %v1166
        %v1637 = vsel %vm1336, %v1592, %v1167
        %v1638 = vsel %vm1336, %v1594, %v1168
        %v1639 = vsel %vm1336, %v1596, %v1169
        %v1640 = vsel %vm1336, %v1598, %v1170
        %v1641 = vsel %vm1336, %v1600, %v1171
        %v1642 = vsel %vm1336, %v1602, %v1172
        %v1643 = vsel %vm1336, %v1604, %v1173
        %v1644 = vsel %vm1336, %v1606, %v1174
        %v1645 = vsel %vm1336, %v1608, %v1175
        %v1646 = vsel %vm1336, %v1610, %v1176
        %v1647 = vsel %vm1336, %v1612, %v1177
        %v1648 = vsel %vm1336, %v1614, %v1178
        %v1649 = vsel %vm1336, %v1616, %v1179
        %v1650 = vsel %vm1336, %v1618, %v1180
        %v1651 = vld [vmem:[#allocation2 + $0x40] sm:$0xff]
        %v1652 = vld [vmem:[#allocation2 + $0x48] sm:$0xff]
        %v1653 = vld [vmem:[#allocation2 + $0x50] sm:$0xff]
        %v1654 = vld [vmem:[#allocation2 + $0x58] sm:$0xff]
        %v1655 = vld [vmem:[#allocation2 + $0x60] sm:$0xff]
        %v1656 = vld [vmem:[#allocation2 + $0x68] sm:$0xff]
        %v1657 = vld [vmem:[#allocation2 + $0x70] sm:$0xff]
        %v1658 = vld [vmem:[#allocation2 + $0x78] sm:$0xff]
        %v1660 = vsel %vm1361, %v1635, 0
        %v1663 = vsel %vm1361, %v1636, 0
        %v1666 = vsel %vm1361, %v1637, 0
        %v1669 = vsel %vm1361, %v1638, 0
        %v1672 = vsel %vm1361, %v1639, 0
        %v1675 = vsel %vm1361, %v1640, 0
        %v1678 = vsel %vm1361, %v1641, 0
        %v1681 = vsel %vm1361, %v1642, 0
        %v1684 = vsel %vm1361, %v1643, 0
        %v1687 = vsel %vm1361, %v1644, 0
        %v1690 = vsel %vm1361, %v1645, 0
        %v1693 = vsel %vm1361, %v1646, 0
        %v1696 = vsel %vm1361, %v1647, 0
        %v1699 = vsel %vm1361, %v1648, 0
        %v1702 = vsel %vm1361, %v1649, 0
        %v1705 = vsel %vm1361, %v1650, 0
        %1707 = vmatprep.subr.mxu0 0.0
        %1708 = vmatpush1.msra.mxu0 0.0
        %1709 = vmatprep.subr.mxu0 0.0
        %1710 = vmatpush1.msra.mxu0 0.0
        %1711 = vmatprep.subr.mxu0 0.0
        %1712 = vmatpush1.msra.mxu0 0.0
        %1713 = vmatprep.subr.mxu0 0.0
        %1714 = vmatpush1.msra.mxu0 0.0
        %1715 = vmatprep.subr.mxu0 0.0
        %1716 = vmatpush1.msra.mxu0 0.0
        %1717 = vmatprep.subr.mxu0 0.0
        %1718 = vmatpush1.msra.mxu0 0.0
        %1719 = vmatprep.subr.mxu0 0.0
        %1720 = vmatpush1.msra.mxu0 0.0
        %1721 = vmatprep.subr.mxu0 0.0
        %1722 = vmatpush1.msra.mxu0 0.0
        %1723 = vmatprep.subr.mxu0 0.0
        %1724 = vmatpush1.msra.mxu0 %v1658
        %1725 = vmatprep.subr.mxu0 0.0
        %1726 = vmatpush1.msra.mxu0 %v1657
        %1727 = vmatprep.subr.mxu0 0.0
        %1728 = vmatpush1.msra.mxu0 %v1656
        %1729 = vmatprep.subr.mxu0 0.0
        %1730 = vmatpush1.msra.mxu0 %v1655
        %1731 = vmatprep.subr.mxu0 0.0
        %1732 = vmatpush1.msra.mxu0 %v1654
        %1733 = vmatprep.subr.mxu0 0.0
        %1734 = vmatpush1.msra.mxu0 %v1653
        %1735 = vmatprep.subr.mxu0 0.0
        %1736 = vmatpush1.msra.mxu0 %v1652
        %1737 = vmatprep.subr.mxu0 0.0
        %1738 = vmatpush1.msra.mxu0 %v1651
        %1739 = vmatprep.subr.mxu0 0.0
        %1740 = vmatpush2.msra.mxu0 0.0
        %1741 = vmatprep.subr.mxu0 0.0
        %1742 = vmatpush2.msra.mxu0 0.0
        %1743 = vmatprep.subr.mxu0 0.0
        %1744 = vmatpush2.msra.mxu0 0.0
        %1745 = vmatprep.subr.mxu0 0.0
        %1746 = vmatpush2.msra.mxu0 0.0
        %1747 = vmatprep.subr.mxu0 0.0
        %1748 = vmatpush2.msra.mxu0 0.0
        %1749 = vmatprep.subr.mxu0 0.0
        %1750 = vmatpush2.msra.mxu0 0.0
        %1751 = vmatprep.subr.mxu0 0.0
        %1752 = vmatpush2.msra.mxu0 0.0
        %1753 = vmatprep.subr.mxu0 0.0
        %1754 = vmatpush2.msra.mxu0 0.0
        %1755 = vmatprep.subr.mxu0 0.0
        %1756 = vmatpush2.msra.mxu0 0.0
        %1757 = vmatprep.subr.mxu0 0.0
        %1758 = vmatpush2.msra.mxu0 0.0
        %1759 = vmatprep.subr.mxu0 0.0
        %1760 = vmatpush2.msra.mxu0 0.0
        %1761 = vmatprep.subr.mxu0 0.0
        %1762 = vmatpush2.msra.mxu0 0.0
        %1763 = vmatprep.subr.mxu0 0.0
        %1764 = vmatpush2.msra.mxu0 0.0
        %1765 = vmatprep.subr.mxu0 0.0
        %1766 = vmatpush2.msra.mxu0 0.0
        %1767 = vmatprep.subr.mxu0 0.0
        %1768 = vmatpush2.msra.mxu0 0.0
        %1769 = vmatprep.subr.mxu0 0.0
        %1770 = vmatpush2.msra.mxu0 0.0
        %1771 = vmatprep.mubr.f32.mxu0 0.0
        %1772 = vmatmul.mubr.f32.gmra.mxu0 %v1660
        %v1773 = vpop.f32.mrf.mxu0
        %v1774 = vadd.f32 %v1256, %v1773
        %v1775 = vpop.f32.mrf.mxu0
        %1776 = vmatprep.mubr.f32.mxu0 0.0
        %1777 = vmatmul.mubr.f32.gmra.mxu0 %v1663
        %v1778 = vpop.f32.mrf.mxu0
        %v1779 = vadd.f32 %v1257, %v1778
        %v1780 = vpop.f32.mrf.mxu0
        %1781 = vmatprep.mubr.f32.mxu0 0.0
        %1782 = vmatmul.mubr.f32.gmra.mxu0 %v1666
        %v1783 = vpop.f32.mrf.mxu0
        %v1784 = vadd.f32 %v1258, %v1783
        %v1785 = vpop.f32.mrf.mxu0
        %1786 = vmatprep.mubr.f32.mxu0 0.0
        %1787 = vmatmul.mubr.f32.gmra.mxu0 %v1669
        %v1788 = vpop.f32.mrf.mxu0
        %v1789 = vadd.f32 %v1259, %v1788
        %v1790 = vpop.f32.mrf.mxu0
        %1791 = vmatprep.mubr.f32.mxu0 0.0
        %1792 = vmatmul.mubr.f32.gmra.mxu0 %v1672
        %v1793 = vpop.f32.mrf.mxu0
        %v1794 = vadd.f32 %v1260, %v1793
        %v1795 = vpop.f32.mrf.mxu0
        %1796 = vmatprep.mubr.f32.mxu0 0.0
        %1797 = vmatmul.mubr.f32.gmra.mxu0 %v1675
        %v1798 = vpop.f32.mrf.mxu0
        %v1799 = vadd.f32 %v1261, %v1798
        %v1800 = vpop.f32.mrf.mxu0
        %1801 = vmatprep.mubr.f32.mxu0 0.0
        %1802 = vmatmul.mubr.f32.gmra.mxu0 %v1678
        %v1803 = vpop.f32.mrf.mxu0
        %v1804 = vadd.f32 %v1262, %v1803
        %v1805 = vpop.f32.mrf.mxu0
        %1806 = vmatprep.mubr.f32.mxu0 0.0
        %1807 = vmatmul.mubr.f32.gmra.mxu0 %v1681
        %v1808 = vpop.f32.mrf.mxu0
        %v1809 = vadd.f32 %v1263, %v1808
        %v1810 = vpop.f32.mrf.mxu0
        %1811 = vmatprep.mubr.f32.mxu0 0.0
        %1812 = vmatmul.mubr.f32.gmra.mxu0 %v1684
        %v1813 = vpop.f32.mrf.mxu0
        %v1814 = vadd.f32 %v1264, %v1813
        %v1815 = vpop.f32.mrf.mxu0
        %1816 = vmatprep.mubr.f32.mxu0 0.0
        %1817 = vmatmul.mubr.f32.gmra.mxu0 %v1687
        %v1818 = vpop.f32.mrf.mxu0
        %v1819 = vadd.f32 %v1265, %v1818
        %v1820 = vpop.f32.mrf.mxu0
        %1821 = vmatprep.mubr.f32.mxu0 0.0
        %1822 = vmatmul.mubr.f32.gmra.mxu0 %v1690
        %v1823 = vpop.f32.mrf.mxu0
        %v1824 = vadd.f32 %v1266, %v1823
        %v1825 = vpop.f32.mrf.mxu0
        %1826 = vmatprep.mubr.f32.mxu0 0.0
        %1827 = vmatmul.mubr.f32.gmra.mxu0 %v1693
        %v1828 = vpop.f32.mrf.mxu0
        %v1829 = vadd.f32 %v1267, %v1828
        %v1830 = vpop.f32.mrf.mxu0
        %1831 = vmatprep.mubr.f32.mxu0 0.0
        %1832 = vmatmul.mubr.f32.gmra.mxu0 %v1696
        %v1833 = vpop.f32.mrf.mxu0
        %v1834 = vadd.f32 %v1268, %v1833
        %v1835 = vpop.f32.mrf.mxu0
        %1836 = vmatprep.mubr.f32.mxu0 0.0
        %1837 = vmatmul.mubr.f32.gmra.mxu0 %v1699
        %v1838 = vpop.f32.mrf.mxu0
        %v1839 = vadd.f32 %v1269, %v1838
        %v1840 = vpop.f32.mrf.mxu0
        %1841 = vmatprep.mubr.f32.mxu0 0.0
        %1842 = vmatmul.mubr.f32.gmra.mxu0 %v1702
        %v1843 = vpop.f32.mrf.mxu0
        %v1844 = vadd.f32 %v1270, %v1843
        %v1845 = vpop.f32.mrf.mxu0
        %1846 = vmatprep.mubr.f32.mxu0 0.0
        %1847 = vmatmul.mubr.f32.gmra.mxu0 %v1705
        %v1848 = vpop.f32.mrf.mxu0
        %v1849 = vadd.f32 %v1271, %v1848
        %v1850 = vpop.f32.mrf.mxu0
        %1851 = vdwg.mxu0
        %s1852 = scalar_lea.vmem %s333, 128 [#allocation12]
        %1853 = vst [vmem:[%s1852] sm:$0xff] %v1774
        %1854 = vst [vmem:[%s1852 + $0x8] sm:$0xff] %v1779
        %1855 = vst [vmem:[%s1852 + $0x10] sm:$0xff] %v1784
        %1856 = vst [vmem:[%s1852 + $0x18] sm:$0xff] %v1789
        %1857 = vst [vmem:[%s1852 + $0x20] sm:$0xff] %v1794
        %1858 = vst [vmem:[%s1852 + $0x28] sm:$0xff] %v1799
        %1859 = vst [vmem:[%s1852 + $0x30] sm:$0xff] %v1804
        %1860 = vst [vmem:[%s1852 + $0x38] sm:$0xff] %v1809
        %1861 = vst [vmem:[%s1852 + $0x40] sm:$0xff] %v1814
        %1862 = vst [vmem:[%s1852 + $0x48] sm:$0xff] %v1819
        %1863 = vst [vmem:[%s1852 + $0x50] sm:$0xff] %v1824
        %1864 = vst [vmem:[%s1852 + $0x58] sm:$0xff] %v1829
        %1865 = vst [vmem:[%s1852 + $0x60] sm:$0xff] %v1834
        %1866 = vst [vmem:[%s1852 + $0x68] sm:$0xff] %v1839
        %1867 = vst [vmem:[%s1852 + $0x70] sm:$0xff] %v1844
        %1868 = vst [vmem:[%s1852 + $0x78] sm:$0xff] %v1849
        %1869 = vrot.lane.b32.xlu0 %v1117, 64
        %v1870 = vpop.permute.xlu0 %1869
        %1871 = vrot.lane.b32.xlu0 %v1118, 64
        %v1872 = vpop.permute.xlu0 %1871
        %1873 = vrot.lane.b32.xlu0 %v1119, 64
        %v1874 = vpop.permute.xlu0 %1873
        %1875 = vrot.lane.b32.xlu0 %v1120, 64
        %v1876 = vpop.permute.xlu0 %1875
        %1877 = vrot.lane.b32.xlu0 %v1121, 64
        %v1878 = vpop.permute.xlu0 %1877
        %1879 = vrot.lane.b32.xlu0 %v1122, 64
        %v1880 = vpop.permute.xlu0 %1879
        %1881 = vrot.lane.b32.xlu0 %v1123, 64
        %v1882 = vpop.permute.xlu0 %1881
        %1883 = vrot.lane.b32.xlu0 %v1124, 64
        %v1884 = vpop.permute.xlu0 %1883
        %1885 = vrot.lane.b32.xlu0 %v1125, 64
        %v1886 = vpop.permute.xlu0 %1885
        %1887 = vrot.lane.b32.xlu0 %v1126, 64
        %v1888 = vpop.permute.xlu0 %1887
        %1889 = vrot.lane.b32.xlu0 %v1127, 64
        %v1890 = vpop.permute.xlu0 %1889
        %1891 = vrot.lane.b32.xlu0 %v1128, 64
        %v1892 = vpop.permute.xlu0 %1891
        %1893 = vrot.lane.b32.xlu0 %v1129, 64
        %v1894 = vpop.permute.xlu0 %1893
        %1895 = vrot.lane.b32.xlu0 %v1130, 64
        %v1896 = vpop.permute.xlu0 %1895
        %1897 = vrot.lane.b32.xlu0 %v1131, 64
        %v1898 = vpop.permute.xlu0 %1897
        %1899 = vrot.lane.b32.xlu0 %v1132, 64
        %v1900 = vpop.permute.xlu0 %1899
        %1917 = vrot.lane.b32.xlu0 %v1165, 96
        %v1918 = vpop.permute.xlu0 %1917
        %1919 = vrot.lane.b32.xlu0 %v1166, 96
        %v1920 = vpop.permute.xlu0 %1919
        %1921 = vrot.lane.b32.xlu0 %v1167, 96
        %v1922 = vpop.permute.xlu0 %1921
        %1923 = vrot.lane.b32.xlu0 %v1168, 96
        %v1924 = vpop.permute.xlu0 %1923
        %1925 = vrot.lane.b32.xlu0 %v1169, 96
        %v1926 = vpop.permute.xlu0 %1925
        %1927 = vrot.lane.b32.xlu0 %v1170, 96
        %v1928 = vpop.permute.xlu0 %1927
        %1929 = vrot.lane.b32.xlu0 %v1171, 96
        %v1930 = vpop.permute.xlu0 %1929
        %1931 = vrot.lane.b32.xlu0 %v1172, 96
        %v1932 = vpop.permute.xlu0 %1931
        %1933 = vrot.lane.b32.xlu0 %v1173, 96
        %v1934 = vpop.permute.xlu0 %1933
        %1935 = vrot.lane.b32.xlu0 %v1174, 96
        %v1936 = vpop.permute.xlu0 %1935
        %1937 = vrot.lane.b32.xlu0 %v1175, 96
        %v1938 = vpop.permute.xlu0 %1937
        %1939 = vrot.lane.b32.xlu0 %v1176, 96
        %v1940 = vpop.permute.xlu0 %1939
        %1941 = vrot.lane.b32.xlu0 %v1177, 96
        %v1942 = vpop.permute.xlu0 %1941
        %1943 = vrot.lane.b32.xlu0 %v1178, 96
        %v1944 = vpop.permute.xlu0 %1943
        %1945 = vrot.lane.b32.xlu0 %v1179, 96
        %v1946 = vpop.permute.xlu0 %1945
        %1947 = vrot.lane.b32.xlu0 %v1180, 96
        %v1948 = vpop.permute.xlu0 %1947
        %v1965 = vsel %vm1336, %v1870, %v1918
        %v1966 = vsel %vm1336, %v1872, %v1920
        %v1967 = vsel %vm1336, %v1874, %v1922
        %v1968 = vsel %vm1336, %v1876, %v1924
        %v1969 = vsel %vm1336, %v1878, %v1926
        %v1970 = vsel %vm1336, %v1880, %v1928
        %v1971 = vsel %vm1336, %v1882, %v1930
        %v1972 = vsel %vm1336, %v1884, %v1932
        %v1973 = vsel %vm1336, %v1886, %v1934
        %v1974 = vsel %vm1336, %v1888, %v1936
        %v1975 = vsel %vm1336, %v1890, %v1938
        %v1976 = vsel %vm1336, %v1892, %v1940
        %v1977 = vsel %vm1336, %v1894, %v1942
        %v1978 = vsel %vm1336, %v1896, %v1944
        %v1979 = vsel %vm1336, %v1898, %v1946
        %v1980 = vsel %vm1336, %v1900, %v1948
        %v1981 = vld [vmem:[#allocation2 + $0x80] sm:$0xff]
        %v1982 = vld [vmem:[#allocation2 + $0x88] sm:$0xff]
        %v1983 = vld [vmem:[#allocation2 + $0x90] sm:$0xff]
        %v1984 = vld [vmem:[#allocation2 + $0x98] sm:$0xff]
        %v1985 = vld [vmem:[#allocation2 + $0xa0] sm:$0xff]
        %v1986 = vld [vmem:[#allocation2 + $0xa8] sm:$0xff]
        %v1987 = vld [vmem:[#allocation2 + $0xb0] sm:$0xff]
        %v1988 = vld [vmem:[#allocation2 + $0xb8] sm:$0xff]
        %v1990 = vsel %vm1361, %v1965, 0
        %v1993 = vsel %vm1361, %v1966, 0
        %v1996 = vsel %vm1361, %v1967, 0
        %v1999 = vsel %vm1361, %v1968, 0
        %v2002 = vsel %vm1361, %v1969, 0
        %v2005 = vsel %vm1361, %v1970, 0
        %v2008 = vsel %vm1361, %v1971, 0
        %v2011 = vsel %vm1361, %v1972, 0
        %v2014 = vsel %vm1361, %v1973, 0
        %v2017 = vsel %vm1361, %v1974, 0
        %v2020 = vsel %vm1361, %v1975, 0
        %v2023 = vsel %vm1361, %v1976, 0
        %v2026 = vsel %vm1361, %v1977, 0
        %v2029 = vsel %vm1361, %v1978, 0
        %v2032 = vsel %vm1361, %v1979, 0
        %v2035 = vsel %vm1361, %v1980, 0
        %2037 = vmatprep.subr.mxu0 0.0
        %2038 = vmatpush1.msra.mxu0 0.0
        %2039 = vmatprep.subr.mxu0 0.0
        %2040 = vmatpush1.msra.mxu0 0.0
        %2041 = vmatprep.subr.mxu0 0.0
        %2042 = vmatpush1.msra.mxu0 0.0
        %2043 = vmatprep.subr.mxu0 0.0
        %2044 = vmatpush1.msra.mxu0 0.0
        %2045 = vmatprep.subr.mxu0 0.0
        %2046 = vmatpush1.msra.mxu0 0.0
        %2047 = vmatprep.subr.mxu0 0.0
        %2048 = vmatpush1.msra.mxu0 0.0
        %2049 = vmatprep.subr.mxu0 0.0
        %2050 = vmatpush1.msra.mxu0 0.0
        %2051 = vmatprep.subr.mxu0 0.0
        %2052 = vmatpush1.msra.mxu0 0.0
        %2053 = vmatprep.subr.mxu0 0.0
        %2054 = vmatpush1.msra.mxu0 %v1988
        %2055 = vmatprep.subr.mxu0 0.0
        %2056 = vmatpush1.msra.mxu0 %v1987
        %2057 = vmatprep.subr.mxu0 0.0
        %2058 = vmatpush1.msra.mxu0 %v1986
        %2059 = vmatprep.subr.mxu0 0.0
        %2060 = vmatpush1.msra.mxu0 %v1985
        %2061 = vmatprep.subr.mxu0 0.0
        %2062 = vmatpush1.msra.mxu0 %v1984
        %2063 = vmatprep.subr.mxu0 0.0
        %2064 = vmatpush1.msra.mxu0 %v1983
        %2065 = vmatprep.subr.mxu0 0.0
        %2066 = vmatpush1.msra.mxu0 %v1982
        %2067 = vmatprep.subr.mxu0 0.0
        %2068 = vmatpush1.msra.mxu0 %v1981
        %2069 = vmatprep.subr.mxu0 0.0
        %2070 = vmatpush2.msra.mxu0 0.0
        %2071 = vmatprep.subr.mxu0 0.0
        %2072 = vmatpush2.msra.mxu0 0.0
        %2073 = vmatprep.subr.mxu0 0.0
        %2074 = vmatpush2.msra.mxu0 0.0
        %2075 = vmatprep.subr.mxu0 0.0
        %2076 = vmatpush2.msra.mxu0 0.0
        %2077 = vmatprep.subr.mxu0 0.0
        %2078 = vmatpush2.msra.mxu0 0.0
        %2079 = vmatprep.subr.mxu0 0.0
        %2080 = vmatpush2.msra.mxu0 0.0
        %2081 = vmatprep.subr.mxu0 0.0
        %2082 = vmatpush2.msra.mxu0 0.0
        %2083 = vmatprep.subr.mxu0 0.0
        %2084 = vmatpush2.msra.mxu0 0.0
        %2085 = vmatprep.subr.mxu0 0.0
        %2086 = vmatpush2.msra.mxu0 0.0
        %2087 = vmatprep.subr.mxu0 0.0
        %2088 = vmatpush2.msra.mxu0 0.0
        %2089 = vmatprep.subr.mxu0 0.0
        %2090 = vmatpush2.msra.mxu0 0.0
        %2091 = vmatprep.subr.mxu0 0.0
        %2092 = vmatpush2.msra.mxu0 0.0
        %2093 = vmatprep.subr.mxu0 0.0
        %2094 = vmatpush2.msra.mxu0 0.0
        %2095 = vmatprep.subr.mxu0 0.0
        %2096 = vmatpush2.msra.mxu0 0.0
        %2097 = vmatprep.subr.mxu0 0.0
        %2098 = vmatpush2.msra.mxu0 0.0
        %2099 = vmatprep.subr.mxu0 0.0
        %2100 = vmatpush2.msra.mxu0 0.0
        %2101 = vmatprep.mubr.f32.mxu0 0.0
        %2102 = vmatmul.mubr.f32.gmra.mxu0 %v1990
        %v2103 = vpop.f32.mrf.mxu0
        %v2104 = vadd.f32 %v1256, %v2103
        %v2105 = vpop.f32.mrf.mxu0
        %2106 = vmatprep.mubr.f32.mxu0 0.0
        %2107 = vmatmul.mubr.f32.gmra.mxu0 %v1993
        %v2108 = vpop.f32.mrf.mxu0
        %v2109 = vadd.f32 %v1257, %v2108
        %v2110 = vpop.f32.mrf.mxu0
        %2111 = vmatprep.mubr.f32.mxu0 0.0
        %2112 = vmatmul.mubr.f32.gmra.mxu0 %v1996
        %v2113 = vpop.f32.mrf.mxu0
        %v2114 = vadd.f32 %v1258, %v2113
        %v2115 = vpop.f32.mrf.mxu0
        %2116 = vmatprep.mubr.f32.mxu0 0.0
        %2117 = vmatmul.mubr.f32.gmra.mxu0 %v1999
        %v2118 = vpop.f32.mrf.mxu0
        %v2119 = vadd.f32 %v1259, %v2118
        %v2120 = vpop.f32.mrf.mxu0
        %2121 = vmatprep.mubr.f32.mxu0 0.0
        %2122 = vmatmul.mubr.f32.gmra.mxu0 %v2002
        %v2123 = vpop.f32.mrf.mxu0
        %v2124 = vadd.f32 %v1260, %v2123
        %v2125 = vpop.f32.mrf.mxu0
        %2126 = vmatprep.mubr.f32.mxu0 0.0
        %2127 = vmatmul.mubr.f32.gmra.mxu0 %v2005
        %v2128 = vpop.f32.mrf.mxu0
        %v2129 = vadd.f32 %v1261, %v2128
        %v2130 = vpop.f32.mrf.mxu0
        %2131 = vmatprep.mubr.f32.mxu0 0.0
        %2132 = vmatmul.mubr.f32.gmra.mxu0 %v2008
        %v2133 = vpop.f32.mrf.mxu0
        %v2134 = vadd.f32 %v1262, %v2133
        %v2135 = vpop.f32.mrf.mxu0
        %2136 = vmatprep.mubr.f32.mxu0 0.0
        %2137 = vmatmul.mubr.f32.gmra.mxu0 %v2011
        %v2138 = vpop.f32.mrf.mxu0
        %v2139 = vadd.f32 %v1263, %v2138
        %v2140 = vpop.f32.mrf.mxu0
        %2141 = vmatprep.mubr.f32.mxu0 0.0
        %2142 = vmatmul.mubr.f32.gmra.mxu0 %v2014
        %v2143 = vpop.f32.mrf.mxu0
        %v2144 = vadd.f32 %v1264, %v2143
        %v2145 = vpop.f32.mrf.mxu0
        %2146 = vmatprep.mubr.f32.mxu0 0.0
        %2147 = vmatmul.mubr.f32.gmra.mxu0 %v2017
        %v2148 = vpop.f32.mrf.mxu0
        %v2149 = vadd.f32 %v1265, %v2148
        %v2150 = vpop.f32.mrf.mxu0
        %2151 = vmatprep.mubr.f32.mxu0 0.0
        %2152 = vmatmul.mubr.f32.gmra.mxu0 %v2020
        %v2153 = vpop.f32.mrf.mxu0
        %v2154 = vadd.f32 %v1266, %v2153
        %v2155 = vpop.f32.mrf.mxu0
        %2156 = vmatprep.mubr.f32.mxu0 0.0
        %2157 = vmatmul.mubr.f32.gmra.mxu0 %v2023
        %v2158 = vpop.f32.mrf.mxu0
        %v2159 = vadd.f32 %v1267, %v2158
        %v2160 = vpop.f32.mrf.mxu0
        %2161 = vmatprep.mubr.f32.mxu0 0.0
        %2162 = vmatmul.mubr.f32.gmra.mxu0 %v2026
        %v2163 = vpop.f32.mrf.mxu0
        %v2164 = vadd.f32 %v1268, %v2163
        %v2165 = vpop.f32.mrf.mxu0
        %2166 = vmatprep.mubr.f32.mxu0 0.0
        %2167 = vmatmul.mubr.f32.gmra.mxu0 %v2029
        %v2168 = vpop.f32.mrf.mxu0
        %v2169 = vadd.f32 %v1269, %v2168
        %v2170 = vpop.f32.mrf.mxu0
        %2171 = vmatprep.mubr.f32.mxu0 0.0
        %2172 = vmatmul.mubr.f32.gmra.mxu0 %v2032
        %v2173 = vpop.f32.mrf.mxu0
        %v2174 = vadd.f32 %v1270, %v2173
        %v2175 = vpop.f32.mrf.mxu0
        %2176 = vmatprep.mubr.f32.mxu0 0.0
        %2177 = vmatmul.mubr.f32.gmra.mxu0 %v2035
        %v2178 = vpop.f32.mrf.mxu0
        %v2179 = vadd.f32 %v1271, %v2178
        %v2180 = vpop.f32.mrf.mxu0
        %2181 = vdwg.mxu0
        %s2182 = scalar_lea.vmem %s333, 256 [#allocation12]
        %2183 = vst [vmem:[%s2182] sm:$0xff] %v2104
        %2184 = vst [vmem:[%s2182 + $0x8] sm:$0xff] %v2109
        %2185 = vst [vmem:[%s2182 + $0x10] sm:$0xff] %v2114
        %2186 = vst [vmem:[%s2182 + $0x18] sm:$0xff] %v2119
        %2187 = vst [vmem:[%s2182 + $0x20] sm:$0xff] %v2124
        %2188 = vst [vmem:[%s2182 + $0x28] sm:$0xff] %v2129
        %2189 = vst [vmem:[%s2182 + $0x30] sm:$0xff] %v2134
        %2190 = vst [vmem:[%s2182 + $0x38] sm:$0xff] %v2139
        %2191 = vst [vmem:[%s2182 + $0x40] sm:$0xff] %v2144
        %2192 = vst [vmem:[%s2182 + $0x48] sm:$0xff] %v2149
        %2193 = vst [vmem:[%s2182 + $0x50] sm:$0xff] %v2154
        %2194 = vst [vmem:[%s2182 + $0x58] sm:$0xff] %v2159
        %2195 = vst [vmem:[%s2182 + $0x60] sm:$0xff] %v2164
        %2196 = vst [vmem:[%s2182 + $0x68] sm:$0xff] %v2169
        %2197 = vst [vmem:[%s2182 + $0x70] sm:$0xff] %v2174
        %2198 = vst [vmem:[%s2182 + $0x78] sm:$0xff] %v2179
        %2199 = vrot.lane.b32.xlu0 %v1117, 32
        %v2200 = vpop.permute.xlu0 %2199
        %2201 = vrot.lane.b32.xlu0 %v1118, 32
        %v2202 = vpop.permute.xlu0 %2201
        %2203 = vrot.lane.b32.xlu0 %v1119, 32
        %v2204 = vpop.permute.xlu0 %2203
        %2205 = vrot.lane.b32.xlu0 %v1120, 32
        %v2206 = vpop.permute.xlu0 %2205
        %2207 = vrot.lane.b32.xlu0 %v1121, 32
        %v2208 = vpop.permute.xlu0 %2207
        %2209 = vrot.lane.b32.xlu0 %v1122, 32
        %v2210 = vpop.permute.xlu0 %2209
        %2211 = vrot.lane.b32.xlu0 %v1123, 32
        %v2212 = vpop.permute.xlu0 %2211
        %2213 = vrot.lane.b32.xlu0 %v1124, 32
        %v2214 = vpop.permute.xlu0 %2213
        %2215 = vrot.lane.b32.xlu0 %v1125, 32
        %v2216 = vpop.permute.xlu0 %2215
        %2217 = vrot.lane.b32.xlu0 %v1126, 32
        %v2218 = vpop.permute.xlu0 %2217
        %2219 = vrot.lane.b32.xlu0 %v1127, 32
        %v2220 = vpop.permute.xlu0 %2219
        %2221 = vrot.lane.b32.xlu0 %v1128, 32
        %v2222 = vpop.permute.xlu0 %2221
        %2223 = vrot.lane.b32.xlu0 %v1129, 32
        %v2224 = vpop.permute.xlu0 %2223
        %2225 = vrot.lane.b32.xlu0 %v1130, 32
        %v2226 = vpop.permute.xlu0 %2225
        %2227 = vrot.lane.b32.xlu0 %v1131, 32
        %v2228 = vpop.permute.xlu0 %2227
        %2229 = vrot.lane.b32.xlu0 %v1132, 32
        %v2230 = vpop.permute.xlu0 %2229
        %2247 = vrot.lane.b32.xlu0 %v1165, 64
        %v2248 = vpop.permute.xlu0 %2247
        %2249 = vrot.lane.b32.xlu0 %v1166, 64
        %v2250 = vpop.permute.xlu0 %2249
        %2251 = vrot.lane.b32.xlu0 %v1167, 64
        %v2252 = vpop.permute.xlu0 %2251
        %2253 = vrot.lane.b32.xlu0 %v1168, 64
        %v2254 = vpop.permute.xlu0 %2253
        %2255 = vrot.lane.b32.xlu0 %v1169, 64
        %v2256 = vpop.permute.xlu0 %2255
        %2257 = vrot.lane.b32.xlu0 %v1170, 64
        %v2258 = vpop.permute.xlu0 %2257
        %2259 = vrot.lane.b32.xlu0 %v1171, 64
        %v2260 = vpop.permute.xlu0 %2259
        %2261 = vrot.lane.b32.xlu0 %v1172, 64
        %v2262 = vpop.permute.xlu0 %2261
        %2263 = vrot.lane.b32.xlu0 %v1173, 64
        %v2264 = vpop.permute.xlu0 %2263
        %2265 = vrot.lane.b32.xlu0 %v1174, 64
        %v2266 = vpop.permute.xlu0 %2265
        %2267 = vrot.lane.b32.xlu0 %v1175, 64
        %v2268 = vpop.permute.xlu0 %2267
        %2269 = vrot.lane.b32.xlu0 %v1176, 64
        %v2270 = vpop.permute.xlu0 %2269
        %2271 = vrot.lane.b32.xlu0 %v1177, 64
        %v2272 = vpop.permute.xlu0 %2271
        %2273 = vrot.lane.b32.xlu0 %v1178, 64
        %v2274 = vpop.permute.xlu0 %2273
        %2275 = vrot.lane.b32.xlu0 %v1179, 64
        %v2276 = vpop.permute.xlu0 %2275
        %2277 = vrot.lane.b32.xlu0 %v1180, 64
        %v2278 = vpop.permute.xlu0 %2277
        %v2295 = vsel %vm1336, %v2200, %v2248
        %v2296 = vsel %vm1336, %v2202, %v2250
        %v2297 = vsel %vm1336, %v2204, %v2252
        %v2298 = vsel %vm1336, %v2206, %v2254
        %v2299 = vsel %vm1336, %v2208, %v2256
        %v2300 = vsel %vm1336, %v2210, %v2258
        %v2301 = vsel %vm1336, %v2212, %v2260
        %v2302 = vsel %vm1336, %v2214, %v2262
        %v2303 = vsel %vm1336, %v2216, %v2264
        %v2304 = vsel %vm1336, %v2218, %v2266
        %v2305 = vsel %vm1336, %v2220, %v2268
        %v2306 = vsel %vm1336, %v2222, %v2270
        %v2307 = vsel %vm1336, %v2224, %v2272
        %v2308 = vsel %vm1336, %v2226, %v2274
        %v2309 = vsel %vm1336, %v2228, %v2276
        %v2310 = vsel %vm1336, %v2230, %v2278
        %v2311 = vld [vmem:[#allocation2 + $0xc0] sm:$0xff]
        %v2312 = vld [vmem:[#allocation2 + $0xc8] sm:$0xff]
        %v2313 = vld [vmem:[#allocation2 + $0xd0] sm:$0xff]
        %v2314 = vld [vmem:[#allocation2 + $0xd8] sm:$0xff]
        %v2315 = vld [vmem:[#allocation2 + $0xe0] sm:$0xff]
        %v2316 = vld [vmem:[#allocation2 + $0xe8] sm:$0xff]
        %v2317 = vld [vmem:[#allocation2 + $0xf0] sm:$0xff]
        %v2318 = vld [vmem:[#allocation2 + $0xf8] sm:$0xff]
        %v2320 = vsel %vm1361, %v2295, 0
        %v2323 = vsel %vm1361, %v2296, 0
        %v2326 = vsel %vm1361, %v2297, 0
        %v2329 = vsel %vm1361, %v2298, 0
        %v2332 = vsel %vm1361, %v2299, 0
        %v2335 = vsel %vm1361, %v2300, 0
        %v2338 = vsel %vm1361, %v2301, 0
        %v2341 = vsel %vm1361, %v2302, 0
        %v2344 = vsel %vm1361, %v2303, 0
        %v2347 = vsel %vm1361, %v2304, 0
        %v2350 = vsel %vm1361, %v2305, 0
        %v2353 = vsel %vm1361, %v2306, 0
        %v2356 = vsel %vm1361, %v2307, 0
        %v2359 = vsel %vm1361, %v2308, 0
        %v2362 = vsel %vm1361, %v2309, 0
        %v2365 = vsel %vm1361, %v2310, 0
        %2367 = vmatprep.subr.mxu0 0.0
        %2368 = vmatpush1.msra.mxu0 0.0
        %2369 = vmatprep.subr.mxu0 0.0
        %2370 = vmatpush1.msra.mxu0 0.0
        %2371 = vmatprep.subr.mxu0 0.0
        %2372 = vmatpush1.msra.mxu0 0.0
        %2373 = vmatprep.subr.mxu0 0.0
        %2374 = vmatpush1.msra.mxu0 0.0
        %2375 = vmatprep.subr.mxu0 0.0
        %2376 = vmatpush1.msra.mxu0 0.0
        %2377 = vmatprep.subr.mxu0 0.0
        %2378 = vmatpush1.msra.mxu0 0.0
        %2379 = vmatprep.subr.mxu0 0.0
        %2380 = vmatpush1.msra.mxu0 0.0
        %2381 = vmatprep.subr.mxu0 0.0
        %2382 = vmatpush1.msra.mxu0 0.0
        %2383 = vmatprep.subr.mxu0 0.0
        %2384 = vmatpush1.msra.mxu0 %v2318
        %2385 = vmatprep.subr.mxu0 0.0
        %2386 = vmatpush1.msra.mxu0 %v2317
        %2387 = vmatprep.subr.mxu0 0.0
        %2388 = vmatpush1.msra.mxu0 %v2316
        %2389 = vmatprep.subr.mxu0 0.0
        %2390 = vmatpush1.msra.mxu0 %v2315
        %2391 = vmatprep.subr.mxu0 0.0
        %2392 = vmatpush1.msra.mxu0 %v2314
        %2393 = vmatprep.subr.mxu0 0.0
        %2394 = vmatpush1.msra.mxu0 %v2313
        %2395 = vmatprep.subr.mxu0 0.0
        %2396 = vmatpush1.msra.mxu0 %v2312
        %2397 = vmatprep.subr.mxu0 0.0
        %2398 = vmatpush1.msra.mxu0 %v2311
        %2399 = vmatprep.subr.mxu0 0.0
        %2400 = vmatpush2.msra.mxu0 0.0
        %2401 = vmatprep.subr.mxu0 0.0
        %2402 = vmatpush2.msra.mxu0 0.0
        %2403 = vmatprep.subr.mxu0 0.0
        %2404 = vmatpush2.msra.mxu0 0.0
        %2405 = vmatprep.subr.mxu0 0.0
        %2406 = vmatpush2.msra.mxu0 0.0
        %2407 = vmatprep.subr.mxu0 0.0
        %2408 = vmatpush2.msra.mxu0 0.0
        %2409 = vmatprep.subr.mxu0 0.0
        %2410 = vmatpush2.msra.mxu0 0.0
        %2411 = vmatprep.subr.mxu0 0.0
        %2412 = vmatpush2.msra.mxu0 0.0
        %2413 = vmatprep.subr.mxu0 0.0
        %2414 = vmatpush2.msra.mxu0 0.0
        %2415 = vmatprep.subr.mxu0 0.0
        %2416 = vmatpush2.msra.mxu0 0.0
        %2417 = vmatprep.subr.mxu0 0.0
        %2418 = vmatpush2.msra.mxu0 0.0
        %2419 = vmatprep.subr.mxu0 0.0
        %2420 = vmatpush2.msra.mxu0 0.0
        %2421 = vmatprep.subr.mxu0 0.0
        %2422 = vmatpush2.msra.mxu0 0.0
        %2423 = vmatprep.subr.mxu0 0.0
        %2424 = vmatpush2.msra.mxu0 0.0
        %2425 = vmatprep.subr.mxu0 0.0
        %2426 = vmatpush2.msra.mxu0 0.0
        %2427 = vmatprep.subr.mxu0 0.0
        %2428 = vmatpush2.msra.mxu0 0.0
        %2429 = vmatprep.subr.mxu0 0.0
        %2430 = vmatpush2.msra.mxu0 0.0
        %2431 = vmatprep.mubr.f32.mxu0 0.0
        %2432 = vmatmul.mubr.f32.gmra.mxu0 %v2320
        %v2433 = vpop.f32.mrf.mxu0
        %v2434 = vadd.f32 %v1256, %v2433
        %v2435 = vpop.f32.mrf.mxu0
        %2436 = vmatprep.mubr.f32.mxu0 0.0
        %2437 = vmatmul.mubr.f32.gmra.mxu0 %v2323
        %v2438 = vpop.f32.mrf.mxu0
        %v2439 = vadd.f32 %v1257, %v2438
        %v2440 = vpop.f32.mrf.mxu0
        %2441 = vmatprep.mubr.f32.mxu0 0.0
        %2442 = vmatmul.mubr.f32.gmra.mxu0 %v2326
        %v2443 = vpop.f32.mrf.mxu0
        %v2444 = vadd.f32 %v1258, %v2443
        %v2445 = vpop.f32.mrf.mxu0
        %2446 = vmatprep.mubr.f32.mxu0 0.0
        %2447 = vmatmul.mubr.f32.gmra.mxu0 %v2329
        %v2448 = vpop.f32.mrf.mxu0
        %v2449 = vadd.f32 %v1259, %v2448
        %v2450 = vpop.f32.mrf.mxu0
        %2451 = vmatprep.mubr.f32.mxu0 0.0
        %2452 = vmatmul.mubr.f32.gmra.mxu0 %v2332
        %v2453 = vpop.f32.mrf.mxu0
        %v2454 = vadd.f32 %v1260, %v2453
        %v2455 = vpop.f32.mrf.mxu0
        %2456 = vmatprep.mubr.f32.mxu0 0.0
        %2457 = vmatmul.mubr.f32.gmra.mxu0 %v2335
        %v2458 = vpop.f32.mrf.mxu0
        %v2459 = vadd.f32 %v1261, %v2458
        %v2460 = vpop.f32.mrf.mxu0
        %2461 = vmatprep.mubr.f32.mxu0 0.0
        %2462 = vmatmul.mubr.f32.gmra.mxu0 %v2338
        %v2463 = vpop.f32.mrf.mxu0
        %v2464 = vadd.f32 %v1262, %v2463
        %v2465 = vpop.f32.mrf.mxu0
        %2466 = vmatprep.mubr.f32.mxu0 0.0
        %2467 = vmatmul.mubr.f32.gmra.mxu0 %v2341
        %v2468 = vpop.f32.mrf.mxu0
        %v2469 = vadd.f32 %v1263, %v2468
        %v2470 = vpop.f32.mrf.mxu0
        %2471 = vmatprep.mubr.f32.mxu0 0.0
        %2472 = vmatmul.mubr.f32.gmra.mxu0 %v2344
        %v2473 = vpop.f32.mrf.mxu0
        %v2474 = vadd.f32 %v1264, %v2473
        %v2475 = vpop.f32.mrf.mxu0
        %2476 = vmatprep.mubr.f32.mxu0 0.0
        %2477 = vmatmul.mubr.f32.gmra.mxu0 %v2347
        %v2478 = vpop.f32.mrf.mxu0
        %v2479 = vadd.f32 %v1265, %v2478
        %v2480 = vpop.f32.mrf.mxu0
        %2481 = vmatprep.mubr.f32.mxu0 0.0
        %2482 = vmatmul.mubr.f32.gmra.mxu0 %v2350
        %v2483 = vpop.f32.mrf.mxu0
        %v2484 = vadd.f32 %v1266, %v2483
        %v2485 = vpop.f32.mrf.mxu0
        %2486 = vmatprep.mubr.f32.mxu0 0.0
        %2487 = vmatmul.mubr.f32.gmra.mxu0 %v2353
        %v2488 = vpop.f32.mrf.mxu0
        %v2489 = vadd.f32 %v1267, %v2488
        %v2490 = vpop.f32.mrf.mxu0
        %2491 = vmatprep.mubr.f32.mxu0 0.0
        %2492 = vmatmul.mubr.f32.gmra.mxu0 %v2356
        %v2493 = vpop.f32.mrf.mxu0
        %v2494 = vadd.f32 %v1268, %v2493
        %v2495 = vpop.f32.mrf.mxu0
        %2496 = vmatprep.mubr.f32.mxu0 0.0
        %2497 = vmatmul.mubr.f32.gmra.mxu0 %v2359
        %v2498 = vpop.f32.mrf.mxu0
        %v2499 = vadd.f32 %v1269, %v2498
        %v2500 = vpop.f32.mrf.mxu0
        %2501 = vmatprep.mubr.f32.mxu0 0.0
        %2502 = vmatmul.mubr.f32.gmra.mxu0 %v2362
        %v2503 = vpop.f32.mrf.mxu0
        %v2504 = vadd.f32 %v1270, %v2503
        %v2505 = vpop.f32.mrf.mxu0
        %2506 = vmatprep.mubr.f32.mxu0 0.0
        %2507 = vmatmul.mubr.f32.gmra.mxu0 %v2365
        %v2508 = vpop.f32.mrf.mxu0
        %v2509 = vadd.f32 %v1271, %v2508
        %v2510 = vpop.f32.mrf.mxu0
        %2511 = vdwg.mxu0
        %s2512 = scalar_lea.vmem %s333, 384 [#allocation12]
        %2513 = vst [vmem:[%s2512] sm:$0xff] %v2434
        %2514 = vst [vmem:[%s2512 + $0x8] sm:$0xff] %v2439
        %2515 = vst [vmem:[%s2512 + $0x10] sm:$0xff] %v2444
        %2516 = vst [vmem:[%s2512 + $0x18] sm:$0xff] %v2449
        %2517 = vst [vmem:[%s2512 + $0x20] sm:$0xff] %v2454
        %2518 = vst [vmem:[%s2512 + $0x28] sm:$0xff] %v2459
        %2519 = vst [vmem:[%s2512 + $0x30] sm:$0xff] %v2464
        %2520 = vst [vmem:[%s2512 + $0x38] sm:$0xff] %v2469
        %2521 = vst [vmem:[%s2512 + $0x40] sm:$0xff] %v2474
        %2522 = vst [vmem:[%s2512 + $0x48] sm:$0xff] %v2479
        %2523 = vst [vmem:[%s2512 + $0x50] sm:$0xff] %v2484
        %2524 = vst [vmem:[%s2512 + $0x58] sm:$0xff] %v2489
        %2525 = vst [vmem:[%s2512 + $0x60] sm:$0xff] %v2494
        %2526 = vst [vmem:[%s2512 + $0x68] sm:$0xff] %v2499
        %2527 = vst [vmem:[%s2512 + $0x70] sm:$0xff] %v2504
        %2528 = vst [vmem:[%s2512 + $0x78] sm:$0xff] %v2509
        %s2529 = sand.u32 %s181, 1
        %s2530 = scalar_lea.sflag [#allocation5], %s2529
        %s2531 = sand.u32 %s181, 1
        %s2532 = smul.addr %s2531, 512
        %s2533 = scalar_lea.vmem [#allocation12], %s2532
        // Predicated region
        $region69: #{tpu_custom_call.1} parent=43 // pred_check
          %p2534 = pneg %p191
        $region70: #{tpu_custom_call.1} parent=43 // pred_check_branch
          %2536 = sbr.rel (%p2534) target = $region72
        $region71: #{tpu_custom_call.1} parent=43 // pred_region
          %s2537 = smul.u32 16, %s28
          %s2539 = ssub.s32 8192, 8192
          %2540 = vsyncadd %s2530, %s2539
          %s2541 = smul.addr %s27, 64
          %s2542 = sadd.s32 %s2537, %s2541
          %s2543 = smul.addr %s2542, 128
          %s2544 = scalar_lea.hbm %s6, %s2543
          %s2545 = sshll.u32 %s2533, 4
          %s2546 = int_to_ptr.vmem [resolvable:$true] %s2545
          %2551 = dma.vmem_to_hbm [thread:$0]  %s2546, 8192, %s2544, %s2530, 128, 128, 8
        $region72: #{tpu_custom_call.1} parent=43 // pred_fallthru
          _
      $region44: #{tpu_custom_call.1} parent=5 // pred_fallthru
        _
      %p2552 = scmp.le.s32.totalorder 2, %s18
      // Predicated region
      $region73: #{tpu_custom_call.1} parent=5 // pred_check
        %p2553 = pneg %p2552
      $region74: #{tpu_custom_call.1} parent=5 // pred_check_branch
        %2555 = sbr.rel (%p2553) target = $region76
      $region75: #{tpu_custom_call.1} parent=5 // pred_region
        %s2556 = ssub.s32 %s18, 2
        // Predicated region
        $region77: #{tpu_custom_call.1} parent=75 // pred_check
          %p2557 = pneg %p197
        $region78: #{tpu_custom_call.1} parent=75 // pred_check_branch
          %2559 = sbr.rel (%p2557) target = $region80
        $region79: #{tpu_custom_call.1} parent=75 // pred_region
          %s2560 = sand.u32 %s182, 1
          %s2561 = scalar_lea.sflag [#allocation5], %s2560
          %s2562 = sand.u32 %s182, 1
          %s2563 = smul.addr %s2562, 512
          %s2564 = scalar_lea.vmem [#allocation12], %s2563
          %2565 = dma.done %s2561, 8192
        $region80: #{tpu_custom_call.1} parent=75 // pred_fallthru
          _
      $region76: #{tpu_custom_call.1} parent=5 // pred_fallthru
        _
    $region6: #{tpu_custom_call.1} parent=1 // loop_footer
      %s22 = sadd.s32 1, %s18
    $region7: #{tpu_custom_call.1} parent=1 // loop_footer_branch
      %17 = sbr.rel target = $region3
    $region8: #{tpu_custom_call.1} parent=1 // loop_exit
      _
    %2566 = vsyncpa [#allocation4], 1
    %s2567 = scalar_lea.sflag [#allocation4], 1
    %2568 = vsyncpa %s2567, 1
    %2569 = vsyncpa [#allocation7], 1
    %2570 = vsyncpa [#allocation10], 1
    %2571 = vsyncpa [#allocation5], 1
    %s2572 = scalar_lea.sflag [#allocation5], 1
    %2573 = vsyncpa %s2572, 1

// kernel: tpu_custom_call.1
$region0: #{tpu_custom_call.1}
  #allocation0 [shape = 'u32[]', space=smem, size = 0x4, offset = 0x4, fixed_abs, tag = 'smem constant byte address 0x4 - core index']
  #allocation1 [shape = 'u32[144,128]{1,0:T(1,128)}', space=vmem, size = 0x12000, scoped, tag = 'internal scratch']
  #allocation2 [shape = 'f32[256,128]{1,0:T(8,128)}', space=vmem, size = 0x20000, scoped, tag = 'scratch operand']
  %s0 = inlined_call_operand.hbm [shape: f32[2,128,128], index: 0, kind: input, shape index: {}]
  %s1 = inlined_call_operand.hbm [shape: f32[128,512], index: 1, kind: input, shape index: {}]
  %s2 = inlined_call_operand.hbm [shape: f32[1,512], index: 2, kind: input, shape index: {}]
  %s3 = inlined_call_operand.hbm [shape: f32[128,128], index: 3, kind: input, shape index: {}]
  %s4 = inlined_call_operand.hbm [shape: f32[128,128], index: 4, kind: input, shape index: {}]
  %s5 = inlined_call_operand.vmem [shape: f32[2,1,128], index: 5, kind: input, shape index: {}]
  %s6 = inlined_call_operand.hbm [shape: f32[2,4,128,128], index: 6, kind: output, shape index: {}]
  %s7 = sld [smem:[#allocation0]]
  $region81: #{tpu_custom_call.1} parent=0
    _
  %s9 = ssub.s32 1, %s7
  %s10 = scalar_select 0, %s9, %s7
  $region1: #{tpu_custom_call.1} parent=0
    #allocation3 [shape = 'u8[131072]{0}', space=vmem, size = 0x20000, scoped, tag = 'input window, operand 0']
    #allocation4 [shape = 's32[2]{0}', space=sflag, size = 0x8, scoped, tag = 'scoped memory for tpu_custom_call.1']
    #allocation5 [shape = 's32[2]{0}', space=sflag, size = 0x8, scoped, tag = 'scoped memory for tpu_custom_call.1']
    #allocation6 [shape = 'u8[262144]{0}', space=vmem, size = 0x40000, scoped, tag = 'input window, operand 1, single buffered']
    #allocation7 [shape = 's32[1]{0}', space=sflag, size = 0x4, scoped, tag = 'scoped memory for tpu_custom_call.1']
    #allocation8 [shape = 'u8[2048]{0}', space=vmem, size = 0x800, scoped, tag = 'input window, operand 2, single buffered']
    #allocation9 [shape = 'u8[65536]{0}', space=vmem, size = 0x10000, scoped, tag = 'input window, operand 3, single buffered']
    #allocation10 [shape = 's32[1]{0}', space=sflag, size = 0x4, scoped, tag = 'scoped memory for tpu_custom_call.1']
    #allocation11 [shape = 'u8[65536]{0}', space=vmem, size = 0x10000, scoped, tag = 'input window, operand 4, single buffered']
    #allocation12 [shape = 'u8[524288]{0}', space=vmem, size = 0x80000, scoped, tag = 'output window, operand 0']
    %11 = vsyncpa [#allocation4], 0
    %s12 = scalar_lea.sflag [#allocation4], 1
    %13 = vsyncpa %s12, 0
    %14 = vsyncpa [#allocation7], 0
    %15 = vsyncpa [#allocation10], 0
    %16 = vsyncpa [#allocation5], 0
    %s17 = scalar_lea.sflag [#allocation5], 1
    %18 = vsyncpa %s17, 0
    loop: start=0, step=1, limit=4
    $region2: #{tpu_custom_call.1} parent=1 // loop_pre_header
      _
    $region3: #{tpu_custom_call.1} parent=1 // loop_header
      %s20 = sphi 0, %s24
      %p21 = scmp.ge.s32.totalorder %s20, 4
      %s27 = sphi 0, %s39
      %s28 = sphi 0, %s35
      %s29 = sphi 0, %s27
      %s30 = sphi 0, %s28
      %s31 = sphi 0, %s29
      %s32 = sphi 0, %s30
      %s42 = sphi 0, %s44
      %s45 = sphi 0, %s42
      %s46 = sphi 0, %s45
      %s62 = sphi 0, %s46
      %s66 = sphi 0, %s66
      %s68 = sphi 0, %s66
      %s69 = sphi 0, %s68
      %s83 = sphi 0, %s69
      %s87 = sphi 0, %s87
      %s89 = sphi 0, %s87
      %s90 = sphi 0, %s89
      %s104 = sphi 0, %s90
      %s108 = sphi 0, %s108
      %s110 = sphi 0, %s108
      %s111 = sphi 0, %s110
      %s125 = sphi 0, %s111
      %s129 = sphi 0, %s129
      %s131 = sphi 0, %s129
      %s132 = sphi 0, %s131
      %s146 = sphi 0, %s132
      %s152 = sphi 0, %s154
      %s155 = sphi 0, %s152
      %s156 = sphi 0, %s155
      %s172 = sphi 0, %s156
      %s180 = sphi 0, %s182
      %s183 = sphi 0, %s180
      %s184 = sphi 0, %s183
      %s200 = sphi 0, %s184
    $region4: #{tpu_custom_call.1} parent=1 // loop_header_branch
      %23 = sbr.rel (%p21) target = $region8
    $region5: #{tpu_custom_call.1} parent=1 // loop_body
      %s25 = ssub.s32 %s20, 1
      %s26 = ssub.s32 %s20, 2
      %s33 = sadd.s32 1, %s28
      %p34 = scmp.ge.s32.totalorder %s33, 1
      %s35 = scalar_select %p34, 0, %s33
      %s36 = sadd.s32 1, %s27
      %s37 = scalar_select %p34, %s36, %s27
      %p38 = scmp.ge.s32.totalorder %s37, 2
      %s39 = scalar_select %p38, 0, %s37
      %s40 = ssub.s32 %s27, %s39
      %p41 = scmp.eq.s32.totalorder %s40, 0
      %s43 = sadd.s32 %s42, 1
      %s44 = scalar_select %p41, %s42, %s43
      %p47 = pneg %p41
      %p48 = scmp.eq.s32.totalorder %s20, 1
      %p49 = por %p47, %p48
      %p50 = scmp.ne.s32.totalorder %s42, %s45
      %p51 = scmp.eq.s32.totalorder %s20, 0
      %p52 = por %p50, %p51
      %p53 = scmp.ne.s32.totalorder %s42, %s45
      %p54 = scmp.eq.s32.totalorder %s25, 1
      %p55 = por %p53, %p54
      %p56 = scmp.ne.s32.totalorder %s45, %s46
      %p57 = scmp.eq.s32.totalorder %s25, 0
      %p58 = por %p56, %p57
      %p59 = scmp.ne.s32.totalorder %s45, %s46
      %p60 = scmp.eq.s32.totalorder %s26, 1
      %p61 = por %p59, %p60
      %p63 = scmp.ne.s32.totalorder %s46, %s62
      %p64 = scmp.eq.s32.totalorder %s26, 0
      %p65 = por %p63, %p64
      %s67 = sadd.s32 %s66, 1
      %p70 = scmp.eq.s32.totalorder %s20, 1
      %p71 = scmp.ne.s32.totalorder %s66, %s68
      %p72 = scmp.eq.s32.totalorder %s20, 0
      %p73 = por %p71, %p72
      %p74 = scmp.ne.s32.totalorder %s66, %s68
      %p75 = scmp.eq.s32.totalorder %s25, 1
      %p76 = por %p74, %p75
      %p77 = scmp.ne.s32.totalorder %s68, %s69
      %p78 = scmp.eq.s32.totalorder %s25, 0
      %p79 = por %p77, %p78
      %p80 = scmp.ne.s32.totalorder %s68, %s69
      %p81 = scmp.eq.s32.totalorder %s26, 1
      %p82 = por %p80, %p81
      %p84 = scmp.ne.s32.totalorder %s69, %s83
      %p85 = scmp.eq.s32.totalorder %s26, 0
      %p86 = por %p84, %p85
      %s88 = sadd.s32 %s87, 1
      %p91 = scmp.eq.s32.totalorder %s20, 1
      %p92 = scmp.ne.s32.totalorder %s87, %s89
      %p93 = scmp.eq.s32.totalorder %s20, 0
      %p94 = por %p92, %p93
      %p95 = scmp.ne.s32.totalorder %s87, %s89
      %p96 = scmp.eq.s32.totalorder %s25, 1
      %p97 = por %p95, %p96
      %p98 = scmp.ne.s32.totalorder %s89, %s90
      %p99 = scmp.eq.s32.totalorder %s25, 0
      %p100 = por %p98, %p99
      %p101 = scmp.ne.s32.totalorder %s89, %s90
      %p102 = scmp.eq.s32.totalorder %s26, 1
      %p103 = por %p101, %p102
      %p105 = scmp.ne.s32.totalorder %s90, %s104
      %p106 = scmp.eq.s32.totalorder %s26, 0
      %p107 = por %p105, %p106
      %s109 = sadd.s32 %s108, 1
      %p112 = scmp.eq.s32.totalorder %s20, 1
      %p113 = scmp.ne.s32.totalorder %s108, %s110
      %p114 = scmp.eq.s32.totalorder %s20, 0
      %p115 = por %p113, %p114
      %p116 = scmp.ne.s32.totalorder %s108, %s110
      %p117 = scmp.eq.s32.totalorder %s25, 1
      %p118 = por %p116, %p117
      %p119 = scmp.ne.s32.totalorder %s110, %s111
      %p120 = scmp.eq.s32.totalorder %s25, 0
      %p121 = por %p119, %p120
      %p122 = scmp.ne.s32.totalorder %s110, %s111
      %p123 = scmp.eq.s32.totalorder %s26, 1
      %p124 = por %p122, %p123
      %p126 = scmp.ne.s32.totalorder %s111, %s125
      %p127 = scmp.eq.s32.totalorder %s26, 0
      %p128 = por %p126, %p127
      %s130 = sadd.s32 %s129, 1
      %p133 = scmp.eq.s32.totalorder %s20, 1
      %p134 = scmp.ne.s32.totalorder %s129, %s131
      %p135 = scmp.eq.s32.totalorder %s20, 0
      %p136 = por %p134, %p135
      %p137 = scmp.ne.s32.totalorder %s129, %s131
      %p138 = scmp.eq.s32.totalorder %s25, 1
      %p139 = por %p137, %p138
      %p140 = scmp.ne.s32.totalorder %s131, %s132
      %p141 = scmp.eq.s32.totalorder %s25, 0
      %p142 = por %p140, %p141
      %p143 = scmp.ne.s32.totalorder %s131, %s132
      %p144 = scmp.eq.s32.totalorder %s26, 1
      %p145 = por %p143, %p144
      %p147 = scmp.ne.s32.totalorder %s132, %s146
      %p148 = scmp.eq.s32.totalorder %s26, 0
      %p149 = por %p147, %p148
      %s150 = ssub.s32 %s27, %s39
      %p151 = scmp.eq.s32.totalorder %s150, 0
      %s153 = sadd.s32 %s152, 1
      %s154 = scalar_select %p151, %s152, %s153
      %p157 = pneg %p151
      %p158 = scmp.eq.s32.totalorder %s20, 1
      %p159 = por %p157, %p158
      %p160 = scmp.ne.s32.totalorder %s152, %s155
      %p161 = scmp.eq.s32.totalorder %s20, 0
      %p162 = por %p160, %p161
      %p163 = scmp.ne.s32.totalorder %s152, %s155
      %p164 = scmp.eq.s32.totalorder %s25, 1
      %p165 = por %p163, %p164
      %p166 = scmp.ne.s32.totalorder %s155, %s156
      %p167 = scmp.eq.s32.totalorder %s25, 0
      %p168 = por %p166, %p167
      %p169 = scmp.ne.s32.totalorder %s155, %s156
      %p170 = scmp.eq.s32.totalorder %s26, 1
      %p171 = por %p169, %p170
      %p173 = scmp.ne.s32.totalorder %s156, %s172
      %p174 = scmp.eq.s32.totalorder %s26, 0
      %p175 = por %p173, %p174
      %s176 = ssub.s32 %s27, %s39
      %s177 = ssub.s32 %s28, %s35
      %s178 = sor.u32 %s176, %s177
      %p179 = scmp.eq.s32.totalorder %s178, 0
      %s181 = sadd.s32 %s180, 1
      %s182 = scalar_select %p179, %s180, %s181
      %p185 = pneg %p179
      %p186 = scmp.eq.s32.totalorder %s20, 1
      %p187 = por %p185, %p186
      %p188 = scmp.ne.s32.totalorder %s180, %s183
      %p189 = scmp.eq.s32.totalorder %s20, 0
      %p190 = por %p188, %p189
      %p191 = scmp.ne.s32.totalorder %s180, %s183
      %p192 = scmp.eq.s32.totalorder %s25, 1
      %p193 = por %p191, %p192
      %p194 = scmp.ne.s32.totalorder %s183, %s184
      %p195 = scmp.eq.s32.totalorder %s25, 0
      %p196 = por %p194, %p195
      %p197 = scmp.ne.s32.totalorder %s183, %s184
      %p198 = scmp.eq.s32.totalorder %s26, 1
      %p199 = por %p197, %p198
      %p201 = scmp.ne.s32.totalorder %s184, %s200
      %p202 = scmp.eq.s32.totalorder %s26, 0
      %p203 = por %p201, %p202
      %p204 = scmp.le.s32.totalorder 1, %s20
      %p205 = scmp.lt.s32.totalorder %s20, 3
      %p206 = pnand %p204, %p205
      %p207 = pneg %p206
      // Predicated region
      $region9: #{tpu_custom_call.1} parent=5 // pred_check
        _
      $region10: #{tpu_custom_call.1} parent=5 // pred_check_branch
        %209 = sbr.rel (%p206) target = $region12
      $region11: #{tpu_custom_call.1} parent=5 // pred_region
        %s210 = ssub.s32 %s20, 1
        // Predicated region
        $region13: #{tpu_custom_call.1} parent=11 // pred_check
          %p211 = pneg %p79
        $region14: #{tpu_custom_call.1} parent=11 // pred_check_branch
          %213 = sbr.rel (%p211) target = $region16
        $region15: #{tpu_custom_call.1} parent=11 // pred_region
          %s215 = ssub.s32 8192, 8192
          %216 = vsyncadd [#allocation7], %s215
          %s217 = sshll.u32 [#allocation6], 4
          %s218 = int_to_ptr.vmem [resolvable:$true] %s217
          %223 = dma.hbm_to_vmem [thread:$0]  %s1, 8192, %s218, [#allocation7], 512, 512, 32
        $region16: #{tpu_custom_call.1} parent=11 // pred_fallthru
          _
        // Predicated region
        $region17: #{tpu_custom_call.1} parent=11 // pred_check
          %p224 = pneg %p100
        $region18: #{tpu_custom_call.1} parent=11 // pred_check_branch
          %226 = sbr.rel (%p224) target = $region20
        $region19: #{tpu_custom_call.1} parent=11 // pred_region
          %s228 = ssub.s32 64, 64
          %229 = vsyncadd [#allocation7], %s228
          %s231 = sshll.u32 [#allocation8], 4
          %s232 = int_to_ptr.vmem [resolvable:$true] %s231
          %234 = dma.hbm_to_vmem [thread:$0]  %s2, 64, %s232, [#allocation7]
        $region20: #{tpu_custom_call.1} parent=11 // pred_fallthru
          _
        // Predicated region
        $region21: #{tpu_custom_call.1} parent=11 // pred_check
          %p235 = pneg %p121
        $region22: #{tpu_custom_call.1} parent=11 // pred_check_branch
          %237 = sbr.rel (%p235) target = $region24
        $region23: #{tpu_custom_call.1} parent=11 // pred_region
          %s239 = ssub.s32 2048, 2048
          %240 = vsyncadd [#allocation10], %s239
          %s241 = sshll.u32 [#allocation9], 4
          %s242 = int_to_ptr.vmem [resolvable:$true] %s241
          %247 = dma.hbm_to_vmem [thread:$0]  %s3, 2048, %s242, [#allocation10], 128, 128, 8
        $region24: #{tpu_custom_call.1} parent=11 // pred_fallthru
          _
        // Predicated region
        $region25: #{tpu_custom_call.1} parent=11 // pred_check
          %p248 = pneg %p142
        $region26: #{tpu_custom_call.1} parent=11 // pred_check_branch
          %250 = sbr.rel (%p248) target = $region28
        $region27: #{tpu_custom_call.1} parent=11 // pred_region
          %s252 = ssub.s32 2048, 2048
          %253 = vsyncadd [#allocation10], %s252
          %s254 = sshll.u32 [#allocation11], 4
          %s255 = int_to_ptr.vmem [resolvable:$true] %s254
          %260 = dma.hbm_to_vmem [thread:$0]  %s4, 2048, %s255, [#allocation10], 128, 128, 8
        $region28: #{tpu_custom_call.1} parent=11 // pred_fallthru
          _
      $region12: #{tpu_custom_call.1} parent=5 // pred_fallthru
        _
      %p261 = scmp.lt.s32.totalorder %s20, 2
      // Predicated region
      $region29: #{tpu_custom_call.1} parent=5 // pred_check
        %p262 = pneg %p261
      $region30: #{tpu_custom_call.1} parent=5 // pred_check_branch
        %264 = sbr.rel (%p262) target = $region32
      $region31: #{tpu_custom_call.1} parent=5 // pred_region
        // Predicated region
        $region33: #{tpu_custom_call.1} parent=31 // pred_check
          %p265 = pneg %p52
        $region34: #{tpu_custom_call.1} parent=31 // pred_check_branch
          %267 = sbr.rel (%p265) target = $region36
        $region35: #{tpu_custom_call.1} parent=31 // pred_region
          %s268 = sand.u32 %s42, 1
          %s269 = scalar_lea.sflag [#allocation4], %s268
          %s270 = sand.u32 %s42, 1
          %s271 = smul.addr %s270, 128
          %s272 = scalar_lea.vmem [#allocation3], %s271
          %s274 = ssub.s32 2048, 2048
          %275 = vsyncadd %s269, %s274
          %s276 = smul.addr %s27, 16
          %s277 = smul.addr %s276, 128
          %s278 = scalar_lea.hbm %s0, %s277
          %s279 = sshll.u32 %s272, 4
          %s280 = int_to_ptr.vmem [resolvable:$true] %s279
          %285 = dma.hbm_to_vmem [thread:$0]  %s278, 2048, %s280, %s269, 128, 128, 8
        $region36: #{tpu_custom_call.1} parent=31 // pred_fallthru
          _
        // Predicated region
        $region37: #{tpu_custom_call.1} parent=31 // pred_check
          %p286 = pneg %p162
        $region38: #{tpu_custom_call.1} parent=31 // pred_check_branch
          %288 = sbr.rel (%p286) target = $region40
        $region39: #{tpu_custom_call.1} parent=31 // pred_region
          %p289 = scmp.lt.s32.totalorder %s27, 1
          %s290 = scalar_select %p289, %s27, 1
          %s291 = scalar_lea.vmem %s5, %s290
        $region40: #{tpu_custom_call.1} parent=31 // pred_fallthru
          _
      $region32: #{tpu_custom_call.1} parent=5 // pred_fallthru
        _
      %p292 = scmp.le.s32.totalorder 1, %s20
      %p293 = scmp.lt.s32.totalorder %s20, 3
      %p294 = pnand %p292, %p293
      %p295 = pneg %p294
      // Predicated region
      $region41: #{tpu_custom_call.1} parent=5 // pred_check
        _
      $region42: #{tpu_custom_call.1} parent=5 // pred_check_branch
        %297 = sbr.rel (%p294) target = $region44
      $region43: #{tpu_custom_call.1} parent=5 // pred_region
        %s298 = ssub.s32 %s20, 1
        %s299 = sand.u32 %s45, 1
        %s300 = scalar_lea.sflag [#allocation4], %s299
        %s301 = sand.u32 %s45, 1
        %s302 = smul.addr %s301, 128
        %s303 = scalar_lea.vmem [#allocation3], %s302
        // Predicated region
        $region45: #{tpu_custom_call.1} parent=43 // pred_check
          %p304 = pneg %p58
        $region46: #{tpu_custom_call.1} parent=43 // pred_check_branch
          %306 = sbr.rel (%p304) target = $region48
        $region47: #{tpu_custom_call.1} parent=43 // pred_region
          %307 = dma.done %s300, 2048
        $region48: #{tpu_custom_call.1} parent=43 // pred_fallthru
          _
        // Predicated region
        $region49: #{tpu_custom_call.1} parent=43 // pred_check
          %p308 = pneg %p79
        $region50: #{tpu_custom_call.1} parent=43 // pred_check_branch
          %310 = sbr.rel (%p308) target = $region52
        $region51: #{tpu_custom_call.1} parent=43 // pred_region
          %311 = dma.done [#allocation7], 8192
        $region52: #{tpu_custom_call.1} parent=43 // pred_fallthru
          _
        // Predicated region
        $region53: #{tpu_custom_call.1} parent=43 // pred_check
          %p312 = pneg %p100
        $region54: #{tpu_custom_call.1} parent=43 // pred_check_branch
          %314 = sbr.rel (%p312) target = $region56
        $region55: #{tpu_custom_call.1} parent=43 // pred_region
          %315 = dma.done [#allocation7], 64
        $region56: #{tpu_custom_call.1} parent=43 // pred_fallthru
          _
        // Predicated region
        $region57: #{tpu_custom_call.1} parent=43 // pred_check
          %p316 = pneg %p121
        $region58: #{tpu_custom_call.1} parent=43 // pred_check_branch
          %318 = sbr.rel (%p316) target = $region60
        $region59: #{tpu_custom_call.1} parent=43 // pred_region
          %319 = dma.done [#allocation10], 2048
        $region60: #{tpu_custom_call.1} parent=43 // pred_fallthru
          _
        // Predicated region
        $region61: #{tpu_custom_call.1} parent=43 // pred_check
          %p320 = pneg %p142
        $region62: #{tpu_custom_call.1} parent=43 // pred_check_branch
          %322 = sbr.rel (%p320) target = $region64
        $region63: #{tpu_custom_call.1} parent=43 // pred_region
          %323 = dma.done [#allocation10], 2048
        $region64: #{tpu_custom_call.1} parent=43 // pred_fallthru
          _
        %s324 = sand.u32 %s45, 1
        %s325 = scalar_lea.sflag [#allocation4], %s324
        %s326 = sand.u32 %s45, 1
        %s327 = smul.addr %s326, 128
        %s328 = scalar_lea.vmem [#allocation3], %s327
        %p329 = pneg %p58
        %p330 = pneg %p55
        %p331 = pneg %p79
        %p332 = pneg %p76
        %p333 = pneg %p100
        %p334 = pneg %p97
        %p335 = pneg %p121
        %p336 = pneg %p118
        %p337 = pneg %p142
        %p338 = pneg %p139
        %p339 = scmp.lt.s32.totalorder %s29, 1
        %s340 = scalar_select %p339, %s29, 1
        %s341 = scalar_lea.vmem %s5, %s340
        %p342 = pneg %p168
        %p343 = pneg %p165
        %p344 = pneg %p196
        %p345 = pneg %p193
        %s346 = sand.u32 %s183, 1
        %s347 = scalar_lea.sflag [#allocation5], %s346
        %s348 = sand.u32 %s183, 1
        %s349 = smul.addr %s348, 512
        %s350 = scalar_lea.vmem [#allocation12], %s349
        %p351 = scmp.lt.s32.totalorder %s29, 1
        %s352 = scalar_select %p351, %s29, 1
        %s353 = scalar_lea.vmem %s5, %s352
        %s354 = smul.u32 16, %s30
        %p355 = scmp.eq.s32.totalorder %s30, 0
        // Predicated region
        $region65: #{tpu_custom_call.1} parent=43 // pred_check
          %p356 = pneg %p355
        $region66: #{tpu_custom_call.1} parent=43 // pred_check_branch
          %358 = sbr.rel (%p356) target = $region68
        $region67: #{tpu_custom_call.1} parent=43 // pred_region
          %v359 = vld [vmem:[%s303] sm:$0xff]
          %v360 = vld [vmem:[%s303 + $0x8] sm:$0xff]
          %v361 = vld [vmem:[%s303 + $0x10] sm:$0xff]
          %v362 = vld [vmem:[%s303 + $0x18] sm:$0xff]
          %v363 = vld [vmem:[%s303 + $0x20] sm:$0xff]
          %v364 = vld [vmem:[%s303 + $0x28] sm:$0xff]
          %v365 = vld [vmem:[%s303 + $0x30] sm:$0xff]
          %v366 = vld [vmem:[%s303 + $0x38] sm:$0xff]
          %v367 = vld [vmem:[%s303 + $0x40] sm:$0xff]
          %v368 = vld [vmem:[%s303 + $0x48] sm:$0xff]
          %v369 = vld [vmem:[%s303 + $0x50] sm:$0xff]
          %v370 = vld [vmem:[%s303 + $0x58] sm:$0xff]
          %v371 = vld [vmem:[%s303 + $0x60] sm:$0xff]
          %v372 = vld [vmem:[%s303 + $0x68] sm:$0xff]
          %v373 = vld [vmem:[%s303 + $0x70] sm:$0xff]
          %v374 = vld [vmem:[%s303 + $0x78] sm:$0xff]
          %v375 = vld [vmem:[#allocation6 + $0x10] sm:$0xff]
          %v376 = vld [vmem:[#allocation6 + $0x18] sm:$0xff]
          %v377 = vld [vmem:[#allocation6 + $0x30] sm:$0xff]
          %v378 = vld [vmem:[#allocation6 + $0x38] sm:$0xff]
          %v379 = vld [vmem:[#allocation6 + $0x50] sm:$0xff]
          %v380 = vld [vmem:[#allocation6 + $0x58] sm:$0xff]
          %v381 = vld [vmem:[#allocation6 + $0x70] sm:$0xff]
          %v382 = vld [vmem:[#allocation6 + $0x78] sm:$0xff]
          %v383 = vld [vmem:[#allocation6 + $0x90] sm:$0xff]
          %v384 = vld [vmem:[#allocation6 + $0x98] sm:$0xff]
          %v385 = vld [vmem:[#allocation6 + $0xb0] sm:$0xff]
          %v386 = vld [vmem:[#allocation6 + $0xb8] sm:$0xff]
          %v387 = vld [vmem:[#allocation6 + $0xd0] sm:$0xff]
          %v388 = vld [vmem:[#allocation6 + $0xd8] sm:$0xff]
          %v389 = vld [vmem:[#allocation6 + $0xf0] sm:$0xff]
          %v390 = vld [vmem:[#allocation6 + $0xf8] sm:$0xff]
          %v391 = vld [vmem:[#allocation6 + $0x110] sm:$0xff]
          %v392 = vld [vmem:[#allocation6 + $0x118] sm:$0xff]
          %v393 = vld [vmem:[#allocation6 + $0x130] sm:$0xff]
          %v394 = vld [vmem:[#allocation6 + $0x138] sm:$0xff]
          %v395 = vld [vmem:[#allocation6 + $0x150] sm:$0xff]
          %v396 = vld [vmem:[#allocation6 + $0x158] sm:$0xff]
          %v397 = vld [vmem:[#allocation6 + $0x170] sm:$0xff]
          %v398 = vld [vmem:[#allocation6 + $0x178] sm:$0xff]
          %v399 = vld [vmem:[#allocation6 + $0x190] sm:$0xff]
          %v400 = vld [vmem:[#allocation6 + $0x198] sm:$0xff]
          %v401 = vld [vmem:[#allocation6 + $0x1b0] sm:$0xff]
          %v402 = vld [vmem:[#allocation6 + $0x1b8] sm:$0xff]
          %v403 = vld [vmem:[#allocation6 + $0x1d0] sm:$0xff]
          %v404 = vld [vmem:[#allocation6 + $0x1d8] sm:$0xff]
          %v405 = vld [vmem:[#allocation6 + $0x1f0] sm:$0xff]
          %v406 = vld [vmem:[#allocation6 + $0x1f8] sm:$0xff]
          %v407 = vld [vmem:[#allocation8 + $0x2] sm:$0x3]
          %v409 = vlaneseq
          %v410 = vshrl.u32 %v409, 7
          %v411 = vsub.s32 0, %v410
          %v412 = vrot.slane %v407, %v411
          %v413 = vlaneseq
          %v414 = vshrl.u32 %v413, 7
          %v415 = vsub.s32 1, %v414
          %v416 = vrot.slane %v407, %v415
          %419 = vmatprep.subr.mxu0 %v406
          %420 = vmatpush1.msra.mxu0 %v405
          %421 = vmatprep.subr.mxu0 %v404
          %422 = vmatpush1.msra.mxu0 %v403
          %423 = vmatprep.subr.mxu0 %v402
          %424 = vmatpush1.msra.mxu0 %v401
          %425 = vmatprep.subr.mxu0 %v400
          %426 = vmatpush1.msra.mxu0 %v399
          %427 = vmatprep.subr.mxu0 %v398
          %428 = vmatpush1.msra.mxu0 %v397
          %429 = vmatprep.subr.mxu0 %v396
          %430 = vmatpush1.msra.mxu0 %v395
          %431 = vmatprep.subr.mxu0 %v394
          %432 = vmatpush1.msra.mxu0 %v393
          %433 = vmatprep.subr.mxu0 %v392
          %434 = vmatpush1.msra.mxu0 %v391
          %435 = vmatprep.subr.mxu0 %v390
          %436 = vmatpush1.msra.mxu0 %v389
          %437 = vmatprep.subr.mxu0 %v388
          %438 = vmatpush1.msra.mxu0 %v387
          %439 = vmatprep.subr.mxu0 %v386
          %440 = vmatpush1.msra.mxu0 %v385
          %441 = vmatprep.subr.mxu0 %v384
          %442 = vmatpush1.msra.mxu0 %v383
          %443 = vmatprep.subr.mxu0 %v382
          %444 = vmatpush1.msra.mxu0 %v381
          %445 = vmatprep.subr.mxu0 %v380
          %446 = vmatpush1.msra.mxu0 %v379
          %447 = vmatprep.subr.mxu0 %v378
          %448 = vmatpush1.msra.mxu0 %v377
          %449 = vmatprep.subr.mxu0 %v376
          %450 = vmatpush1.msra.mxu0 %v375
          %451 = vmatprep.subr.mxu0 0.0
          %452 = vmatpush2.msra.mxu0 0.0
          %453 = vmatprep.subr.mxu0 0.0
          %454 = vmatpush2.msra.mxu0 0.0
          %455 = vmatprep.subr.mxu0 0.0
          %456 = vmatpush2.msra.mxu0 0.0
          %457 = vmatprep.subr.mxu0 0.0
          %458 = vmatpush2.msra.mxu0 0.0
          %459 = vmatprep.subr.mxu0 0.0
          %460 = vmatpush2.msra.mxu0 0.0
          %461 = vmatprep.subr.mxu0 0.0
          %462 = vmatpush2.msra.mxu0 0.0
          %463 = vmatprep.subr.mxu0 0.0
          %464 = vmatpush2.msra.mxu0 0.0
          %465 = vmatprep.subr.mxu0 0.0
          %466 = vmatpush2.msra.mxu0 0.0
          %467 = vmatprep.subr.mxu0 0.0
          %468 = vmatpush2.msra.mxu0 0.0
          %469 = vmatprep.subr.mxu0 0.0
          %470 = vmatpush2.msra.mxu0 0.0
          %471 = vmatprep.subr.mxu0 0.0
          %472 = vmatpush2.msra.mxu0 0.0
          %473 = vmatprep.subr.mxu0 0.0
          %474 = vmatpush2.msra.mxu0 0.0
          %475 = vmatprep.subr.mxu0 0.0
          %476 = vmatpush2.msra.mxu0 0.0
          %477 = vmatprep.subr.mxu0 0.0
          %478 = vmatpush2.msra.mxu0 0.0
          %479 = vmatprep.subr.mxu0 0.0
          %480 = vmatpush2.msra.mxu0 0.0
          %481 = vmatprep.subr.mxu0 0.0
          %482 = vmatpush2.msra.mxu0 0.0
          %483 = vmatprep.mubr.f32.mxu0 0.0
          %484 = vmatmul.mubr.f32.gmra.mxu0 %v359
          %v485 = vpop.f32.mrf.mxu0
          %v486 = vadd.f32 %v412, %v485
          %v487 = vpop.f32.mrf.mxu0
          %v488 = vadd.f32 %v416, %v487
          %489 = vmatprep.mubr.f32.mxu0 0.0
          %490 = vmatmul.mubr.f32.gmra.mxu0 %v360
          %v491 = vpop.f32.mrf.mxu0
          %v492 = vadd.f32 %v412, %v491
          %v493 = vpop.f32.mrf.mxu0
          %v494 = vadd.f32 %v416, %v493
          %495 = vmatprep.mubr.f32.mxu0 0.0
          %496 = vmatmul.mubr.f32.gmra.mxu0 %v361
          %v497 = vpop.f32.mrf.mxu0
          %v498 = vadd.f32 %v412, %v497
          %v499 = vpop.f32.mrf.mxu0
          %v500 = vadd.f32 %v416, %v499
          %501 = vmatprep.mubr.f32.mxu0 0.0
          %502 = vmatmul.mubr.f32.gmra.mxu0 %v362
          %v503 = vpop.f32.mrf.mxu0
          %v504 = vadd.f32 %v412, %v503
          %v505 = vpop.f32.mrf.mxu0
          %v506 = vadd.f32 %v416, %v505
          %507 = vmatprep.mubr.f32.mxu0 0.0
          %508 = vmatmul.mubr.f32.gmra.mxu0 %v363
          %v509 = vpop.f32.mrf.mxu0
          %v510 = vadd.f32 %v412, %v509
          %v511 = vpop.f32.mrf.mxu0
          %v512 = vadd.f32 %v416, %v511
          %513 = vmatprep.mubr.f32.mxu0 0.0
          %514 = vmatmul.mubr.f32.gmra.mxu0 %v364
          %v515 = vpop.f32.mrf.mxu0
          %v516 = vadd.f32 %v412, %v515
          %v517 = vpop.f32.mrf.mxu0
          %v518 = vadd.f32 %v416, %v517
          %519 = vmatprep.mubr.f32.mxu0 0.0
          %520 = vmatmul.mubr.f32.gmra.mxu0 %v365
          %v521 = vpop.f32.mrf.mxu0
          %v522 = vadd.f32 %v412, %v521
          %v523 = vpop.f32.mrf.mxu0
          %v524 = vadd.f32 %v416, %v523
          %525 = vmatprep.mubr.f32.mxu0 0.0
          %526 = vmatmul.mubr.f32.gmra.mxu0 %v366
          %v527 = vpop.f32.mrf.mxu0
          %v528 = vadd.f32 %v412, %v527
          %v529 = vpop.f32.mrf.mxu0
          %v530 = vadd.f32 %v416, %v529
          %531 = vmatprep.mubr.f32.mxu0 0.0
          %532 = vmatmul.mubr.f32.gmra.mxu0 %v367
          %v533 = vpop.f32.mrf.mxu0
          %v534 = vadd.f32 %v412, %v533
          %v535 = vpop.f32.mrf.mxu0
          %v536 = vadd.f32 %v416, %v535
          %537 = vmatprep.mubr.f32.mxu0 0.0
          %538 = vmatmul.mubr.f32.gmra.mxu0 %v368
          %v539 = vpop.f32.mrf.mxu0
          %v540 = vadd.f32 %v412, %v539
          %v541 = vpop.f32.mrf.mxu0
          %v542 = vadd.f32 %v416, %v541
          %543 = vmatprep.mubr.f32.mxu0 0.0
          %544 = vmatmul.mubr.f32.gmra.mxu0 %v369
          %v545 = vpop.f32.mrf.mxu0
          %v546 = vadd.f32 %v412, %v545
          %v547 = vpop.f32.mrf.mxu0
          %v548 = vadd.f32 %v416, %v547
          %549 = vmatprep.mubr.f32.mxu0 0.0
          %550 = vmatmul.mubr.f32.gmra.mxu0 %v370
          %v551 = vpop.f32.mrf.mxu0
          %v552 = vadd.f32 %v412, %v551
          %v553 = vpop.f32.mrf.mxu0
          %v554 = vadd.f32 %v416, %v553
          %555 = vmatprep.mubr.f32.mxu0 0.0
          %556 = vmatmul.mubr.f32.gmra.mxu0 %v371
          %v557 = vpop.f32.mrf.mxu0
          %v558 = vadd.f32 %v412, %v557
          %v559 = vpop.f32.mrf.mxu0
          %v560 = vadd.f32 %v416, %v559
          %561 = vmatprep.mubr.f32.mxu0 0.0
          %562 = vmatmul.mubr.f32.gmra.mxu0 %v372
          %v563 = vpop.f32.mrf.mxu0
          %v564 = vadd.f32 %v412, %v563
          %v565 = vpop.f32.mrf.mxu0
          %v566 = vadd.f32 %v416, %v565
          %567 = vmatprep.mubr.f32.mxu0 0.0
          %568 = vmatmul.mubr.f32.gmra.mxu0 %v373
          %v569 = vpop.f32.mrf.mxu0
          %v570 = vadd.f32 %v412, %v569
          %v571 = vpop.f32.mrf.mxu0
          %v572 = vadd.f32 %v416, %v571
          %573 = vmatprep.mubr.f32.mxu0 0.0
          %574 = vmatmul.mubr.f32.gmra.mxu0 %v374
          %v575 = vpop.f32.mrf.mxu0
          %v576 = vadd.f32 %v412, %v575
          %v577 = vpop.f32.mrf.mxu0
          %v578 = vadd.f32 %v416, %v577
          %579 = vdwg.mxu0
          %v580 = vld [vmem:[#allocation9] sm:$0xff]
          %v581 = vld [vmem:[#allocation9 + $0x8] sm:$0xff]
          %v582 = vld [vmem:[#allocation9 + $0x10] sm:$0xff]
          %v583 = vld [vmem:[#allocation9 + $0x18] sm:$0xff]
          %v584 = vld [vmem:[#allocation9 + $0x20] sm:$0xff]
          %v585 = vld [vmem:[#allocation9 + $0x28] sm:$0xff]
          %v586 = vld [vmem:[#allocation9 + $0x30] sm:$0xff]
          %v587 = vld [vmem:[#allocation9 + $0x38] sm:$0xff]
          %v588 = vld [vmem:[#allocation9 + $0x40] sm:$0xff]
          %v589 = vld [vmem:[#allocation9 + $0x48] sm:$0xff]
          %v590 = vld [vmem:[#allocation9 + $0x50] sm:$0xff]
          %v591 = vld [vmem:[#allocation9 + $0x58] sm:$0xff]
          %v592 = vld [vmem:[#allocation9 + $0x60] sm:$0xff]
          %v593 = vld [vmem:[#allocation9 + $0x68] sm:$0xff]
          %v594 = vld [vmem:[#allocation9 + $0x70] sm:$0xff]
          %v595 = vld [vmem:[#allocation9 + $0x78] sm:$0xff]
          %v596 = vld [vmem:[#allocation11] sm:$0xff]
          %v597 = vld [vmem:[#allocation11 + $0x8] sm:$0xff]
          %v598 = vld [vmem:[#allocation11 + $0x10] sm:$0xff]
          %v599 = vld [vmem:[#allocation11 + $0x18] sm:$0xff]
          %v600 = vld [vmem:[#allocation11 + $0x20] sm:$0xff]
          %v601 = vld [vmem:[#allocation11 + $0x28] sm:$0xff]
          %v602 = vld [vmem:[#allocation11 + $0x30] sm:$0xff]
          %v603 = vld [vmem:[#allocation11 + $0x38] sm:$0xff]
          %v604 = vld [vmem:[#allocation11 + $0x40] sm:$0xff]
          %v605 = vld [vmem:[#allocation11 + $0x48] sm:$0xff]
          %v606 = vld [vmem:[#allocation11 + $0x50] sm:$0xff]
          %v607 = vld [vmem:[#allocation11 + $0x58] sm:$0xff]
          %v608 = vld [vmem:[#allocation11 + $0x60] sm:$0xff]
          %v609 = vld [vmem:[#allocation11 + $0x68] sm:$0xff]
          %v610 = vld [vmem:[#allocation11 + $0x70] sm:$0xff]
          %v611 = vld [vmem:[#allocation11 + $0x78] sm:$0xff]
          %v612 = vmul.f32 %v486, %v580
          %v613 = vmul.f32 %v492, %v581
          %v614 = vmul.f32 %v498, %v582
          %v615 = vmul.f32 %v504, %v583
          %v616 = vmul.f32 %v510, %v584
          %v617 = vmul.f32 %v516, %v585
          %v618 = vmul.f32 %v522, %v586
          %v619 = vmul.f32 %v528, %v587
          %v620 = vmul.f32 %v534, %v588
          %v621 = vmul.f32 %v540, %v589
          %v622 = vmul.f32 %v546, %v590
          %v623 = vmul.f32 %v552, %v591
          %v624 = vmul.f32 %v558, %v592
          %v625 = vmul.f32 %v564, %v593
          %v626 = vmul.f32 %v570, %v594
          %v627 = vmul.f32 %v576, %v595
          %v628 = vmul.f32 %v488, %v596
          %v629 = vmul.f32 %v494, %v597
          %v630 = vmul.f32 %v500, %v598
          %v631 = vmul.f32 %v506, %v599
          %v632 = vmul.f32 %v512, %v600
          %v633 = vmul.f32 %v518, %v601
          %v634 = vmul.f32 %v524, %v602
          %v635 = vmul.f32 %v530, %v603
          %v636 = vmul.f32 %v536, %v604
          %v637 = vmul.f32 %v542, %v605
          %v638 = vmul.f32 %v548, %v606
          %v639 = vmul.f32 %v554, %v607
          %v640 = vmul.f32 %v560, %v608
          %v641 = vmul.f32 %v566, %v609
          %v642 = vmul.f32 %v572, %v610
          %v643 = vmul.f32 %v578, %v611
          %v644 = vsub.f32 %v612, %v628
          %v645 = vsub.f32 %v613, %v629
          %v646 = vsub.f32 %v614, %v630
          %v647 = vsub.f32 %v615, %v631
          %v648 = vsub.f32 %v616, %v632
          %v649 = vsub.f32 %v617, %v633
          %v650 = vsub.f32 %v618, %v634
          %v651 = vsub.f32 %v619, %v635
          %v652 = vsub.f32 %v620, %v636
          %v653 = vsub.f32 %v621, %v637
          %v654 = vsub.f32 %v622, %v638
          %v655 = vsub.f32 %v623, %v639
          %v656 = vsub.f32 %v624, %v640
          %v657 = vsub.f32 %v625, %v641
          %v658 = vsub.f32 %v626, %v642
          %v659 = vsub.f32 %v627, %v643
          %v660 = vmul.f32 %v488, %v580
          %v661 = vmul.f32 %v494, %v581
          %v662 = vmul.f32 %v500, %v582
          %v663 = vmul.f32 %v506, %v583
          %v664 = vmul.f32 %v512, %v584
          %v665 = vmul.f32 %v518, %v585
          %v666 = vmul.f32 %v524, %v586
          %v667 = vmul.f32 %v530, %v587
          %v668 = vmul.f32 %v536, %v588
          %v669 = vmul.f32 %v542, %v589
          %v670 = vmul.f32 %v548, %v590
          %v671 = vmul.f32 %v554, %v591
          %v672 = vmul.f32 %v560, %v592
          %v673 = vmul.f32 %v566, %v593
          %v674 = vmul.f32 %v572, %v594
          %v675 = vmul.f32 %v578, %v595
          %v676 = vmul.f32 %v486, %v596
          %v677 = vmul.f32 %v492, %v597
          %v678 = vmul.f32 %v498, %v598
          %v679 = vmul.f32 %v504, %v599
          %v680 = vmul.f32 %v510, %v600
          %v681 = vmul.f32 %v516, %v601
          %v682 = vmul.f32 %v522, %v602
          %v683 = vmul.f32 %v528, %v603
          %v684 = vmul.f32 %v534, %v604
          %v685 = vmul.f32 %v540, %v605
          %v686 = vmul.f32 %v546, %v606
          %v687 = vmul.f32 %v552, %v607
          %v688 = vmul.f32 %v558, %v608
          %v689 = vmul.f32 %v564, %v609
          %v690 = vmul.f32 %v570, %v610
          %v691 = vmul.f32 %v576, %v611
          %v692 = vadd.f32 %v660, %v676
          %v693 = vadd.f32 %v661, %v677
          %v694 = vadd.f32 %v662, %v678
          %v695 = vadd.f32 %v663, %v679
          %v696 = vadd.f32 %v664, %v680
          %v697 = vadd.f32 %v665, %v681
          %v698 = vadd.f32 %v666, %v682
          %v699 = vadd.f32 %v667, %v683
          %v700 = vadd.f32 %v668, %v684
          %v701 = vadd.f32 %v669, %v685
          %v702 = vadd.f32 %v670, %v686
          %v703 = vadd.f32 %v671, %v687
          %v704 = vadd.f32 %v672, %v688
          %v705 = vadd.f32 %v673, %v689
          %v706 = vadd.f32 %v674, %v690
          %v707 = vadd.f32 %v675, %v691
          %v708 = vld [vmem:[%s353] sm:$0x1]
          %vm709 = vcmp.eq.f32.partialorder %v708, 0.0
          %v710 = vsel %vm709, 1.0, 0.0
          %711 = vxpose.xlu0.b32.start [1/16] %v644, 128
          %712 = vxpose.xlu0.b32.cont [2/16] %v645, 128
          %713 = vxpose.xlu0.b32.cont [3/16] %v646, 128
          %714 = vxpose.xlu0.b32.cont [4/16] %v647, 128
          %715 = vxpose.xlu0.b32.cont [5/16] %v648, 128
          %716 = vxpose.xlu0.b32.cont [6/16] %v649, 128
          %717 = vxpose.xlu0.b32.cont [7/16] %v650, 128
          %718 = vxpose.xlu0.b32.cont [8/16] %v651, 128
          %719 = vxpose.xlu0.b32.cont [9/16] %v652, 128
          %720 = vxpose.xlu0.b32.cont [10/16] %v653, 128
          %721 = vxpose.xlu0.b32.cont [11/16] %v654, 128
          %722 = vxpose.xlu0.b32.cont [12/16] %v655, 128
          %723 = vxpose.xlu0.b32.cont [13/16] %v656, 128
          %724 = vxpose.xlu0.b32.cont [14/16] %v657, 128
          %725 = vxpose.xlu0.b32.cont [15/16] %v658, 128
          %726 = vxpose.xlu0.b32.end [16/16] %v659, 128
          %v727 = vpop.trf.xlu0
          %v728 = vpop.trf.xlu0
          %v729 = vpop.trf.xlu0
          %v730 = vpop.trf.xlu0
          %v731 = vpop.trf.xlu0
          %v732 = vpop.trf.xlu0
          %v733 = vpop.trf.xlu0
          %v734 = vpop.trf.xlu0
          %v735 = vpop.trf.xlu0
          %v736 = vpop.trf.xlu0
          %v737 = vpop.trf.xlu0
          %v738 = vpop.trf.xlu0
          %v739 = vpop.trf.xlu0
          %v740 = vpop.trf.xlu0
          %v741 = vpop.trf.xlu0
          %v742 = vpop.trf.xlu0
          %v744 = vlaneseq
          %v745 = vshrl.u32 %v744, 7
          %v746 = vsub.s32 0, %v745
          %v747 = vrot.slane %v710, %v746
          %v749 = vmul.f32 %v727, %v747
          %v750 = vmul.f32 %v728, %v747
          %v751 = vmul.f32 %v729, %v747
          %v752 = vmul.f32 %v730, %v747
          %v753 = vmul.f32 %v731, %v747
          %v754 = vmul.f32 %v732, %v747
          %v755 = vmul.f32 %v733, %v747
          %v756 = vmul.f32 %v734, %v747
          %v757 = vmul.f32 %v735, %v747
          %v758 = vmul.f32 %v736, %v747
          %v759 = vmul.f32 %v737, %v747
          %v760 = vmul.f32 %v738, %v747
          %v761 = vmul.f32 %v739, %v747
          %v762 = vmul.f32 %v740, %v747
          %v763 = vmul.f32 %v741, %v747
          %v764 = vmul.f32 %v742, %v747
          %765 = vxpose.xlu0.b32.start [1/16] %v692, 128
          %766 = vxpose.xlu0.b32.cont [2/16] %v693, 128
          %767 = vxpose.xlu0.b32.cont [3/16] %v694, 128
          %768 = vxpose.xlu0.b32.cont [4/16] %v695, 128
          %769 = vxpose.xlu0.b32.cont [5/16] %v696, 128
          %770 = vxpose.xlu0.b32.cont [6/16] %v697, 128
          %771 = vxpose.xlu0.b32.cont [7/16] %v698, 128
          %772 = vxpose.xlu0.b32.cont [8/16] %v699, 128
          %773 = vxpose.xlu0.b32.cont [9/16] %v700, 128
          %774 = vxpose.xlu0.b32.cont [10/16] %v701, 128
          %775 = vxpose.xlu0.b32.cont [11/16] %v702, 128
          %776 = vxpose.xlu0.b32.cont [12/16] %v703, 128
          %777 = vxpose.xlu0.b32.cont [13/16] %v704, 128
          %778 = vxpose.xlu0.b32.cont [14/16] %v705, 128
          %779 = vxpose.xlu0.b32.cont [15/16] %v706, 128
          %780 = vxpose.xlu0.b32.end [16/16] %v707, 128
          %v781 = vpop.trf.xlu0
          %v782 = vpop.trf.xlu0
          %v783 = vpop.trf.xlu0
          %v784 = vpop.trf.xlu0
          %v785 = vpop.trf.xlu0
          %v786 = vpop.trf.xlu0
          %v787 = vpop.trf.xlu0
          %v788 = vpop.trf.xlu0
          %v789 = vpop.trf.xlu0
          %v790 = vpop.trf.xlu0
          %v791 = vpop.trf.xlu0
          %v792 = vpop.trf.xlu0
          %v793 = vpop.trf.xlu0
          %v794 = vpop.trf.xlu0
          %v795 = vpop.trf.xlu0
          %v796 = vpop.trf.xlu0
          %v797 = vmul.f32 %v781, %v747
          %v798 = vmul.f32 %v782, %v747
          %v799 = vmul.f32 %v783, %v747
          %v800 = vmul.f32 %v784, %v747
          %v801 = vmul.f32 %v785, %v747
          %v802 = vmul.f32 %v786, %v747
          %v803 = vmul.f32 %v787, %v747
          %v804 = vmul.f32 %v788, %v747
          %v805 = vmul.f32 %v789, %v747
          %v806 = vmul.f32 %v790, %v747
          %v807 = vmul.f32 %v791, %v747
          %v808 = vmul.f32 %v792, %v747
          %v809 = vmul.f32 %v793, %v747
          %v810 = vmul.f32 %v794, %v747
          %v811 = vmul.f32 %v795, %v747
          %v812 = vmul.f32 %v796, %v747
          %813 = vst [vmem:[#allocation2] sm:$0xff] %v749
          %814 = vst [vmem:[#allocation2 + $0x8] sm:$0xff] %v750
          %815 = vst [vmem:[#allocation2 + $0x10] sm:$0xff] %v751
          %816 = vst [vmem:[#allocation2 + $0x18] sm:$0xff] %v752
          %817 = vst [vmem:[#allocation2 + $0x20] sm:$0xff] %v797
          %818 = vst [vmem:[#allocation2 + $0x28] sm:$0xff] %v798
          %819 = vst [vmem:[#allocation2 + $0x30] sm:$0xff] %v799
          %820 = vst [vmem:[#allocation2 + $0x38] sm:$0xff] %v800
          %821 = vst [vmem:[#allocation2 + $0x40] sm:$0xff] %v753
          %822 = vst [vmem:[#allocation2 + $0x48] sm:$0xff] %v754
          %823 = vst [vmem:[#allocation2 + $0x50] sm:$0xff] %v755
          %824 = vst [vmem:[#allocation2 + $0x58] sm:$0xff] %v756
          %825 = vst [vmem:[#allocation2 + $0x60] sm:$0xff] %v801
          %826 = vst [vmem:[#allocation2 + $0x68] sm:$0xff] %v802
          %827 = vst [vmem:[#allocation2 + $0x70] sm:$0xff] %v803
          %828 = vst [vmem:[#allocation2 + $0x78] sm:$0xff] %v804
          %829 = vst [vmem:[#allocation2 + $0x80] sm:$0xff] %v757
          %830 = vst [vmem:[#allocation2 + $0x88] sm:$0xff] %v758
          %831 = vst [vmem:[#allocation2 + $0x90] sm:$0xff] %v759
          %832 = vst [vmem:[#allocation2 + $0x98] sm:$0xff] %v760
          %833 = vst [vmem:[#allocation2 + $0xa0] sm:$0xff] %v805
          %834 = vst [vmem:[#allocation2 + $0xa8] sm:$0xff] %v806
          %835 = vst [vmem:[#allocation2 + $0xb0] sm:$0xff] %v807
          %836 = vst [vmem:[#allocation2 + $0xb8] sm:$0xff] %v808
          %837 = vst [vmem:[#allocation2 + $0xc0] sm:$0xff] %v761
          %838 = vst [vmem:[#allocation2 + $0xc8] sm:$0xff] %v762
          %839 = vst [vmem:[#allocation2 + $0xd0] sm:$0xff] %v763
          %840 = vst [vmem:[#allocation2 + $0xd8] sm:$0xff] %v764
          %841 = vst [vmem:[#allocation2 + $0xe0] sm:$0xff] %v809
          %842 = vst [vmem:[#allocation2 + $0xe8] sm:$0xff] %v810
          %843 = vst [vmem:[#allocation2 + $0xf0] sm:$0xff] %v811
          %844 = vst [vmem:[#allocation2 + $0xf8] sm:$0xff] %v812
        $region68: #{tpu_custom_call.1} parent=43 // pred_fallthru
          _
        %s845 = smul.u32 %s30, 128
        %s846 = scalar_lea.vmem %s303, %s845 [#allocation3]
        %v847 = vld [vmem:[%s846] sm:$0xff]
        %v848 = vld [vmem:[%s846 + $0x8] sm:$0xff]
        %v849 = vld [vmem:[%s846 + $0x10] sm:$0xff]
        %v850 = vld [vmem:[%s846 + $0x18] sm:$0xff]
        %v851 = vld [vmem:[%s846 + $0x20] sm:$0xff]
        %v852 = vld [vmem:[%s846 + $0x28] sm:$0xff]
        %v853 = vld [vmem:[%s846 + $0x30] sm:$0xff]
        %v854 = vld [vmem:[%s846 + $0x38] sm:$0xff]
        %v855 = vld [vmem:[%s846 + $0x40] sm:$0xff]
        %v856 = vld [vmem:[%s846 + $0x48] sm:$0xff]
        %v857 = vld [vmem:[%s846 + $0x50] sm:$0xff]
        %v858 = vld [vmem:[%s846 + $0x58] sm:$0xff]
        %v859 = vld [vmem:[%s846 + $0x60] sm:$0xff]
        %v860 = vld [vmem:[%s846 + $0x68] sm:$0xff]
        %v861 = vld [vmem:[%s846 + $0x70] sm:$0xff]
        %v862 = vld [vmem:[%s846 + $0x78] sm:$0xff]
        %v863 = vld [vmem:[#allocation6] sm:$0xff]
        %v864 = vld [vmem:[#allocation6 + $0x8] sm:$0xff]
        %v865 = vld [vmem:[#allocation6 + $0x20] sm:$0xff]
        %v866 = vld [vmem:[#allocation6 + $0x28] sm:$0xff]
        %v867 = vld [vmem:[#allocation6 + $0x40] sm:$0xff]
        %v868 = vld [vmem:[#allocation6 + $0x48] sm:$0xff]
        %v869 = vld [vmem:[#allocation6 + $0x60] sm:$0xff]
        %v870 = vld [vmem:[#allocation6 + $0x68] sm:$0xff]
        %v871 = vld [vmem:[#allocation6 + $0x80] sm:$0xff]
        %v872 = vld [vmem:[#allocation6 + $0x88] sm:$0xff]
        %v873 = vld [vmem:[#allocation6 + $0xa0] sm:$0xff]
        %v874 = vld [vmem:[#allocation6 + $0xa8] sm:$0xff]
        %v875 = vld [vmem:[#allocation6 + $0xc0] sm:$0xff]
        %v876 = vld [vmem:[#allocation6 + $0xc8] sm:$0xff]
        %v877 = vld [vmem:[#allocation6 + $0xe0] sm:$0xff]
        %v878 = vld [vmem:[#allocation6 + $0xe8] sm:$0xff]
        %v879 = vld [vmem:[#allocation6 + $0x100] sm:$0xff]
        %v880 = vld [vmem:[#allocation6 + $0x108] sm:$0xff]
        %v881 = vld [vmem:[#allocation6 + $0x120] sm:$0xff]
        %v882 = vld [vmem:[#allocation6 + $0x128] sm:$0xff]
        %v883 = vld [vmem:[#allocation6 + $0x140] sm:$0xff]
        %v884 = vld [vmem:[#allocation6 + $0x148] sm:$0xff]
        %v885 = vld [vmem:[#allocation6 + $0x160] sm:$0xff]
        %v886 = vld [vmem:[#allocation6 + $0x168] sm:$0xff]
        %v887 = vld [vmem:[#allocation6 + $0x180] sm:$0xff]
        %v888 = vld [vmem:[#allocation6 + $0x188] sm:$0xff]
        %v889 = vld [vmem:[#allocation6 + $0x1a0] sm:$0xff]
        %v890 = vld [vmem:[#allocation6 + $0x1a8] sm:$0xff]
        %v891 = vld [vmem:[#allocation6 + $0x1c0] sm:$0xff]
        %v892 = vld [vmem:[#allocation6 + $0x1c8] sm:$0xff]
        %v893 = vld [vmem:[#allocation6 + $0x1e0] sm:$0xff]
        %v894 = vld [vmem:[#allocation6 + $0x1e8] sm:$0xff]
        %v895 = vld [vmem:[#allocation8] sm:$0x3]
        %v897 = vlaneseq
        %v898 = vshrl.u32 %v897, 7
        %v899 = vsub.s32 0, %v898
        %v900 = vrot.slane %v895, %v899
        %v901 = vlaneseq
        %v902 = vshrl.u32 %v901, 7
        %v903 = vsub.s32 1, %v902
        %v904 = vrot.slane %v895, %v903
        %907 = vmatprep.subr.mxu0 %v894
        %908 = vmatpush1.msra.mxu0 %v893
        %909 = vmatprep.subr.mxu0 %v892
        %910 = vmatpush1.msra.mxu0 %v891
        %911 = vmatprep.subr.mxu0 %v890
        %912 = vmatpush1.msra.mxu0 %v889
        %913 = vmatprep.subr.mxu0 %v888
        %914 = vmatpush1.msra.mxu0 %v887
        %915 = vmatprep.subr.mxu0 %v886
        %916 = vmatpush1.msra.mxu0 %v885
        %917 = vmatprep.subr.mxu0 %v884
        %918 = vmatpush1.msra.mxu0 %v883
        %919 = vmatprep.subr.mxu0 %v882
        %920 = vmatpush1.msra.mxu0 %v881
        %921 = vmatprep.subr.mxu0 %v880
        %922 = vmatpush1.msra.mxu0 %v879
        %923 = vmatprep.subr.mxu0 %v878
        %924 = vmatpush1.msra.mxu0 %v877
        %925 = vmatprep.subr.mxu0 %v876
        %926 = vmatpush1.msra.mxu0 %v875
        %927 = vmatprep.subr.mxu0 %v874
        %928 = vmatpush1.msra.mxu0 %v873
        %929 = vmatprep.subr.mxu0 %v872
        %930 = vmatpush1.msra.mxu0 %v871
        %931 = vmatprep.subr.mxu0 %v870
        %932 = vmatpush1.msra.mxu0 %v869
        %933 = vmatprep.subr.mxu0 %v868
        %934 = vmatpush1.msra.mxu0 %v867
        %935 = vmatprep.subr.mxu0 %v866
        %936 = vmatpush1.msra.mxu0 %v865
        %937 = vmatprep.subr.mxu0 %v864
        %938 = vmatpush1.msra.mxu0 %v863
        %939 = vmatprep.subr.mxu0 0.0
        %940 = vmatpush2.msra.mxu0 0.0
        %941 = vmatprep.subr.mxu0 0.0
        %942 = vmatpush2.msra.mxu0 0.0
        %943 = vmatprep.subr.mxu0 0.0
        %944 = vmatpush2.msra.mxu0 0.0
        %945 = vmatprep.subr.mxu0 0.0
        %946 = vmatpush2.msra.mxu0 0.0
        %947 = vmatprep.subr.mxu0 0.0
        %948 = vmatpush2.msra.mxu0 0.0
        %949 = vmatprep.subr.mxu0 0.0
        %950 = vmatpush2.msra.mxu0 0.0
        %951 = vmatprep.subr.mxu0 0.0
        %952 = vmatpush2.msra.mxu0 0.0
        %953 = vmatprep.subr.mxu0 0.0
        %954 = vmatpush2.msra.mxu0 0.0
        %955 = vmatprep.subr.mxu0 0.0
        %956 = vmatpush2.msra.mxu0 0.0
        %957 = vmatprep.subr.mxu0 0.0
        %958 = vmatpush2.msra.mxu0 0.0
        %959 = vmatprep.subr.mxu0 0.0
        %960 = vmatpush2.msra.mxu0 0.0
        %961 = vmatprep.subr.mxu0 0.0
        %962 = vmatpush2.msra.mxu0 0.0
        %963 = vmatprep.subr.mxu0 0.0
        %964 = vmatpush2.msra.mxu0 0.0
        %965 = vmatprep.subr.mxu0 0.0
        %966 = vmatpush2.msra.mxu0 0.0
        %967 = vmatprep.subr.mxu0 0.0
        %968 = vmatpush2.msra.mxu0 0.0
        %969 = vmatprep.subr.mxu0 0.0
        %970 = vmatpush2.msra.mxu0 0.0
        %971 = vmatprep.mubr.f32.mxu0 0.0
        %972 = vmatmul.mubr.f32.gmra.mxu0 %v847
        %v973 = vpop.f32.mrf.mxu0
        %v974 = vadd.f32 %v900, %v973
        %v975 = vpop.f32.mrf.mxu0
        %v976 = vadd.f32 %v904, %v975
        %977 = vmatprep.mubr.f32.mxu0 0.0
        %978 = vmatmul.mubr.f32.gmra.mxu0 %v848
        %v979 = vpop.f32.mrf.mxu0
        %v980 = vadd.f32 %v900, %v979
        %v981 = vpop.f32.mrf.mxu0
        %v982 = vadd.f32 %v904, %v981
        %983 = vmatprep.mubr.f32.mxu0 0.0
        %984 = vmatmul.mubr.f32.gmra.mxu0 %v849
        %v985 = vpop.f32.mrf.mxu0
        %v986 = vadd.f32 %v900, %v985
        %v987 = vpop.f32.mrf.mxu0
        %v988 = vadd.f32 %v904, %v987
        %989 = vmatprep.mubr.f32.mxu0 0.0
        %990 = vmatmul.mubr.f32.gmra.mxu0 %v850
        %v991 = vpop.f32.mrf.mxu0
        %v992 = vadd.f32 %v900, %v991
        %v993 = vpop.f32.mrf.mxu0
        %v994 = vadd.f32 %v904, %v993
        %995 = vmatprep.mubr.f32.mxu0 0.0
        %996 = vmatmul.mubr.f32.gmra.mxu0 %v851
        %v997 = vpop.f32.mrf.mxu0
        %v998 = vadd.f32 %v900, %v997
        %v999 = vpop.f32.mrf.mxu0
        %v1000 = vadd.f32 %v904, %v999
        %1001 = vmatprep.mubr.f32.mxu0 0.0
        %1002 = vmatmul.mubr.f32.gmra.mxu0 %v852
        %v1003 = vpop.f32.mrf.mxu0
        %v1004 = vadd.f32 %v900, %v1003
        %v1005 = vpop.f32.mrf.mxu0
        %v1006 = vadd.f32 %v904, %v1005
        %1007 = vmatprep.mubr.f32.mxu0 0.0
        %1008 = vmatmul.mubr.f32.gmra.mxu0 %v853
        %v1009 = vpop.f32.mrf.mxu0
        %v1010 = vadd.f32 %v900, %v1009
        %v1011 = vpop.f32.mrf.mxu0
        %v1012 = vadd.f32 %v904, %v1011
        %1013 = vmatprep.mubr.f32.mxu0 0.0
        %1014 = vmatmul.mubr.f32.gmra.mxu0 %v854
        %v1015 = vpop.f32.mrf.mxu0
        %v1016 = vadd.f32 %v900, %v1015
        %v1017 = vpop.f32.mrf.mxu0
        %v1018 = vadd.f32 %v904, %v1017
        %1019 = vmatprep.mubr.f32.mxu0 0.0
        %1020 = vmatmul.mubr.f32.gmra.mxu0 %v855
        %v1021 = vpop.f32.mrf.mxu0
        %v1022 = vadd.f32 %v900, %v1021
        %v1023 = vpop.f32.mrf.mxu0
        %v1024 = vadd.f32 %v904, %v1023
        %1025 = vmatprep.mubr.f32.mxu0 0.0
        %1026 = vmatmul.mubr.f32.gmra.mxu0 %v856
        %v1027 = vpop.f32.mrf.mxu0
        %v1028 = vadd.f32 %v900, %v1027
        %v1029 = vpop.f32.mrf.mxu0
        %v1030 = vadd.f32 %v904, %v1029
        %1031 = vmatprep.mubr.f32.mxu0 0.0
        %1032 = vmatmul.mubr.f32.gmra.mxu0 %v857
        %v1033 = vpop.f32.mrf.mxu0
        %v1034 = vadd.f32 %v900, %v1033
        %v1035 = vpop.f32.mrf.mxu0
        %v1036 = vadd.f32 %v904, %v1035
        %1037 = vmatprep.mubr.f32.mxu0 0.0
        %1038 = vmatmul.mubr.f32.gmra.mxu0 %v858
        %v1039 = vpop.f32.mrf.mxu0
        %v1040 = vadd.f32 %v900, %v1039
        %v1041 = vpop.f32.mrf.mxu0
        %v1042 = vadd.f32 %v904, %v1041
        %1043 = vmatprep.mubr.f32.mxu0 0.0
        %1044 = vmatmul.mubr.f32.gmra.mxu0 %v859
        %v1045 = vpop.f32.mrf.mxu0
        %v1046 = vadd.f32 %v900, %v1045
        %v1047 = vpop.f32.mrf.mxu0
        %v1048 = vadd.f32 %v904, %v1047
        %1049 = vmatprep.mubr.f32.mxu0 0.0
        %1050 = vmatmul.mubr.f32.gmra.mxu0 %v860
        %v1051 = vpop.f32.mrf.mxu0
        %v1052 = vadd.f32 %v900, %v1051
        %v1053 = vpop.f32.mrf.mxu0
        %v1054 = vadd.f32 %v904, %v1053
        %1055 = vmatprep.mubr.f32.mxu0 0.0
        %1056 = vmatmul.mubr.f32.gmra.mxu0 %v861
        %v1057 = vpop.f32.mrf.mxu0
        %v1058 = vadd.f32 %v900, %v1057
        %v1059 = vpop.f32.mrf.mxu0
        %v1060 = vadd.f32 %v904, %v1059
        %1061 = vmatprep.mubr.f32.mxu0 0.0
        %1062 = vmatmul.mubr.f32.gmra.mxu0 %v862
        %v1063 = vpop.f32.mrf.mxu0
        %v1064 = vadd.f32 %v900, %v1063
        %v1065 = vpop.f32.mrf.mxu0
        %v1066 = vadd.f32 %v904, %v1065
        %1067 = vdwg.mxu0
        %s1068 = scalar_lea.vmem [#allocation9], %s845
        %v1069 = vld [vmem:[%s1068] sm:$0xff]
        %v1070 = vld [vmem:[%s1068 + $0x8] sm:$0xff]
        %v1071 = vld [vmem:[%s1068 + $0x10] sm:$0xff]
        %v1072 = vld [vmem:[%s1068 + $0x18] sm:$0xff]
        %v1073 = vld [vmem:[%s1068 + $0x20] sm:$0xff]
        %v1074 = vld [vmem:[%s1068 + $0x28] sm:$0xff]
        %v1075 = vld [vmem:[%s1068 + $0x30] sm:$0xff]
        %v1076 = vld [vmem:[%s1068 + $0x38] sm:$0xff]
        %v1077 = vld [vmem:[%s1068 + $0x40] sm:$0xff]
        %v1078 = vld [vmem:[%s1068 + $0x48] sm:$0xff]
        %v1079 = vld [vmem:[%s1068 + $0x50] sm:$0xff]
        %v1080 = vld [vmem:[%s1068 + $0x58] sm:$0xff]
        %v1081 = vld [vmem:[%s1068 + $0x60] sm:$0xff]
        %v1082 = vld [vmem:[%s1068 + $0x68] sm:$0xff]
        %v1083 = vld [vmem:[%s1068 + $0x70] sm:$0xff]
        %v1084 = vld [vmem:[%s1068 + $0x78] sm:$0xff]
        %s1085 = scalar_lea.vmem [#allocation11], %s845
        %v1086 = vld [vmem:[%s1085] sm:$0xff]
        %v1087 = vld [vmem:[%s1085 + $0x8] sm:$0xff]
        %v1088 = vld [vmem:[%s1085 + $0x10] sm:$0xff]
        %v1089 = vld [vmem:[%s1085 + $0x18] sm:$0xff]
        %v1090 = vld [vmem:[%s1085 + $0x20] sm:$0xff]
        %v1091 = vld [vmem:[%s1085 + $0x28] sm:$0xff]
        %v1092 = vld [vmem:[%s1085 + $0x30] sm:$0xff]
        %v1093 = vld [vmem:[%s1085 + $0x38] sm:$0xff]
        %v1094 = vld [vmem:[%s1085 + $0x40] sm:$0xff]
        %v1095 = vld [vmem:[%s1085 + $0x48] sm:$0xff]
        %v1096 = vld [vmem:[%s1085 + $0x50] sm:$0xff]
        %v1097 = vld [vmem:[%s1085 + $0x58] sm:$0xff]
        %v1098 = vld [vmem:[%s1085 + $0x60] sm:$0xff]
        %v1099 = vld [vmem:[%s1085 + $0x68] sm:$0xff]
        %v1100 = vld [vmem:[%s1085 + $0x70] sm:$0xff]
        %v1101 = vld [vmem:[%s1085 + $0x78] sm:$0xff]
        %v1102 = vmul.f32 %v974, %v1069
        %v1103 = vmul.f32 %v980, %v1070
        %v1104 = vmul.f32 %v986, %v1071
        %v1105 = vmul.f32 %v992, %v1072
        %v1106 = vmul.f32 %v998, %v1073
        %v1107 = vmul.f32 %v1004, %v1074
        %v1108 = vmul.f32 %v1010, %v1075
        %v1109 = vmul.f32 %v1016, %v1076
        %v1110 = vmul.f32 %v1022, %v1077
        %v1111 = vmul.f32 %v1028, %v1078
        %v1112 = vmul.f32 %v1034, %v1079
        %v1113 = vmul.f32 %v1040, %v1080
        %v1114 = vmul.f32 %v1046, %v1081
        %v1115 = vmul.f32 %v1052, %v1082
        %v1116 = vmul.f32 %v1058, %v1083
        %v1117 = vmul.f32 %v1064, %v1084
        %v1118 = vmul.f32 %v976, %v1086
        %v1119 = vmul.f32 %v982, %v1087
        %v1120 = vmul.f32 %v988, %v1088
        %v1121 = vmul.f32 %v994, %v1089
        %v1122 = vmul.f32 %v1000, %v1090
        %v1123 = vmul.f32 %v1006, %v1091
        %v1124 = vmul.f32 %v1012, %v1092
        %v1125 = vmul.f32 %v1018, %v1093
        %v1126 = vmul.f32 %v1024, %v1094
        %v1127 = vmul.f32 %v1030, %v1095
        %v1128 = vmul.f32 %v1036, %v1096
        %v1129 = vmul.f32 %v1042, %v1097
        %v1130 = vmul.f32 %v1048, %v1098
        %v1131 = vmul.f32 %v1054, %v1099
        %v1132 = vmul.f32 %v1060, %v1100
        %v1133 = vmul.f32 %v1066, %v1101
        %v1134 = vsub.f32 %v1102, %v1118
        %v1135 = vsub.f32 %v1103, %v1119
        %v1136 = vsub.f32 %v1104, %v1120
        %v1137 = vsub.f32 %v1105, %v1121
        %v1138 = vsub.f32 %v1106, %v1122
        %v1139 = vsub.f32 %v1107, %v1123
        %v1140 = vsub.f32 %v1108, %v1124
        %v1141 = vsub.f32 %v1109, %v1125
        %v1142 = vsub.f32 %v1110, %v1126
        %v1143 = vsub.f32 %v1111, %v1127
        %v1144 = vsub.f32 %v1112, %v1128
        %v1145 = vsub.f32 %v1113, %v1129
        %v1146 = vsub.f32 %v1114, %v1130
        %v1147 = vsub.f32 %v1115, %v1131
        %v1148 = vsub.f32 %v1116, %v1132
        %v1149 = vsub.f32 %v1117, %v1133
        %v1150 = vmul.f32 %v976, %v1069
        %v1151 = vmul.f32 %v982, %v1070
        %v1152 = vmul.f32 %v988, %v1071
        %v1153 = vmul.f32 %v994, %v1072
        %v1154 = vmul.f32 %v1000, %v1073
        %v1155 = vmul.f32 %v1006, %v1074
        %v1156 = vmul.f32 %v1012, %v1075
        %v1157 = vmul.f32 %v1018, %v1076
        %v1158 = vmul.f32 %v1024, %v1077
        %v1159 = vmul.f32 %v1030, %v1078
        %v1160 = vmul.f32 %v1036, %v1079
        %v1161 = vmul.f32 %v1042, %v1080
        %v1162 = vmul.f32 %v1048, %v1081
        %v1163 = vmul.f32 %v1054, %v1082
        %v1164 = vmul.f32 %v1060, %v1083
        %v1165 = vmul.f32 %v1066, %v1084
        %v1166 = vmul.f32 %v974, %v1086
        %v1167 = vmul.f32 %v980, %v1087
        %v1168 = vmul.f32 %v986, %v1088
        %v1169 = vmul.f32 %v992, %v1089
        %v1170 = vmul.f32 %v998, %v1090
        %v1171 = vmul.f32 %v1004, %v1091
        %v1172 = vmul.f32 %v1010, %v1092
        %v1173 = vmul.f32 %v1016, %v1093
        %v1174 = vmul.f32 %v1022, %v1094
        %v1175 = vmul.f32 %v1028, %v1095
        %v1176 = vmul.f32 %v1034, %v1096
        %v1177 = vmul.f32 %v1040, %v1097
        %v1178 = vmul.f32 %v1046, %v1098
        %v1179 = vmul.f32 %v1052, %v1099
        %v1180 = vmul.f32 %v1058, %v1100
        %v1181 = vmul.f32 %v1064, %v1101
        %v1182 = vadd.f32 %v1150, %v1166
        %v1183 = vadd.f32 %v1151, %v1167
        %v1184 = vadd.f32 %v1152, %v1168
        %v1185 = vadd.f32 %v1153, %v1169
        %v1186 = vadd.f32 %v1154, %v1170
        %v1187 = vadd.f32 %v1155, %v1171
        %v1188 = vadd.f32 %v1156, %v1172
        %v1189 = vadd.f32 %v1157, %v1173
        %v1190 = vadd.f32 %v1158, %v1174
        %v1191 = vadd.f32 %v1159, %v1175
        %v1192 = vadd.f32 %v1160, %v1176
        %v1193 = vadd.f32 %v1161, %v1177
        %v1194 = vadd.f32 %v1162, %v1178
        %v1195 = vadd.f32 %v1163, %v1179
        %v1196 = vadd.f32 %v1164, %v1180
        %v1197 = vadd.f32 %v1165, %v1181
        %v1198 = vlaneseq
        %v1199 = vshrl.u32 %v1198, 7
        %v1200 = vadd.s32 %v1199, 8
        %v1201 = vadd.s32 %v1199, 16
        %v1202 = vadd.s32 %v1199, 24
        %v1203 = vadd.s32 %v1199, 32
        %v1204 = vadd.s32 %v1199, 40
        %v1205 = vadd.s32 %v1199, 48
        %v1206 = vadd.s32 %v1199, 56
        %v1207 = vadd.s32 %v1199, 64
        %v1208 = vadd.s32 %v1199, 72
        %v1209 = vadd.s32 %v1199, 80
        %v1210 = vadd.s32 %v1199, 88
        %v1211 = vadd.s32 %v1199, 96
        %v1212 = vadd.s32 %v1199, 104
        %v1213 = vadd.s32 %v1199, 112
        %v1214 = vadd.s32 %v1199, 120
        %v1215 = vstv %s845
        %v1216 = vadd.s32 %v1199, %v1215
        %v1217 = vadd.s32 %v1200, %v1215
        %v1218 = vadd.s32 %v1201, %v1215
        %v1219 = vadd.s32 %v1202, %v1215
        %v1220 = vadd.s32 %v1203, %v1215
        %v1221 = vadd.s32 %v1204, %v1215
        %v1222 = vadd.s32 %v1205, %v1215
        %v1223 = vadd.s32 %v1206, %v1215
        %v1224 = vadd.s32 %v1207, %v1215
        %v1225 = vadd.s32 %v1208, %v1215
        %v1226 = vadd.s32 %v1209, %v1215
        %v1227 = vadd.s32 %v1210, %v1215
        %v1228 = vadd.s32 %v1211, %v1215
        %v1229 = vadd.s32 %v1212, %v1215
        %v1230 = vadd.s32 %v1213, %v1215
        %v1231 = vadd.s32 %v1214, %v1215
        %v1232 = vlaneseq
        %v1233 = vand.u32 %v1232, 127
        %v1234 = vld [vmem:[%s353] sm:$0x1]
        %vm1235 = vcmp.lt.s32.totalorder %v1233, %v1216
        %vm1236 = vcmp.lt.s32.totalorder %v1233, %v1217
        %vm1237 = vcmp.lt.s32.totalorder %v1233, %v1218
        %vm1238 = vcmp.lt.s32.totalorder %v1233, %v1219
        %vm1239 = vcmp.lt.s32.totalorder %v1233, %v1220
        %vm1240 = vcmp.lt.s32.totalorder %v1233, %v1221
        %vm1241 = vcmp.lt.s32.totalorder %v1233, %v1222
        %vm1242 = vcmp.lt.s32.totalorder %v1233, %v1223
        %vm1243 = vcmp.lt.s32.totalorder %v1233, %v1224
        %vm1244 = vcmp.lt.s32.totalorder %v1233, %v1225
        %vm1245 = vcmp.lt.s32.totalorder %v1233, %v1226
        %vm1246 = vcmp.lt.s32.totalorder %v1233, %v1227
        %vm1247 = vcmp.lt.s32.totalorder %v1233, %v1228
        %vm1248 = vcmp.lt.s32.totalorder %v1233, %v1229
        %vm1249 = vcmp.lt.s32.totalorder %v1233, %v1230
        %vm1250 = vcmp.lt.s32.totalorder %v1233, %v1231
        %v1251 = vsel %vm1235, -1.25e+11, 0.0
        %v1252 = vsel %vm1236, -1.25e+11, 0.0
        %v1253 = vsel %vm1237, -1.25e+11, 0.0
        %v1254 = vsel %vm1238, -1.25e+11, 0.0
        %v1255 = vsel %vm1239, -1.25e+11, 0.0
        %v1256 = vsel %vm1240, -1.25e+11, 0.0
        %v1257 = vsel %vm1241, -1.25e+11, 0.0
        %v1258 = vsel %vm1242, -1.25e+11, 0.0
        %v1259 = vsel %vm1243, -1.25e+11, 0.0
        %v1260 = vsel %vm1244, -1.25e+11, 0.0
        %v1261 = vsel %vm1245, -1.25e+11, 0.0
        %v1262 = vsel %vm1246, -1.25e+11, 0.0
        %v1263 = vsel %vm1247, -1.25e+11, 0.0
        %v1264 = vsel %vm1248, -1.25e+11, 0.0
        %v1265 = vsel %vm1249, -1.25e+11, 0.0
        %v1266 = vsel %vm1250, -1.25e+11, 0.0
        %v1268 = vlaneseq
        %v1269 = vshrl.u32 %v1268, 7
        %v1270 = vsub.s32 0, %v1269
        %v1271 = vrot.slane %v1234, %v1270
        %v1273 = vadd.f32 %v1271, %v1251
        %v1274 = vadd.f32 %v1271, %v1252
        %v1275 = vadd.f32 %v1271, %v1253
        %v1276 = vadd.f32 %v1271, %v1254
        %v1277 = vadd.f32 %v1271, %v1255
        %v1278 = vadd.f32 %v1271, %v1256
        %v1279 = vadd.f32 %v1271, %v1257
        %v1280 = vadd.f32 %v1271, %v1258
        %v1281 = vadd.f32 %v1271, %v1259
        %v1282 = vadd.f32 %v1271, %v1260
        %v1283 = vadd.f32 %v1271, %v1261
        %v1284 = vadd.f32 %v1271, %v1262
        %v1285 = vadd.f32 %v1271, %v1263
        %v1286 = vadd.f32 %v1271, %v1264
        %v1287 = vadd.f32 %v1271, %v1265
        %v1288 = vadd.f32 %v1271, %v1266
        %1305 = vrot.lane.b32.xlu0 %v1182, 32
        %v1306 = vpop.permute.xlu0 %1305
        %1307 = vrot.lane.b32.xlu0 %v1183, 32
        %v1308 = vpop.permute.xlu0 %1307
        %1309 = vrot.lane.b32.xlu0 %v1184, 32
        %v1310 = vpop.permute.xlu0 %1309
        %1311 = vrot.lane.b32.xlu0 %v1185, 32
        %v1312 = vpop.permute.xlu0 %1311
        %1313 = vrot.lane.b32.xlu0 %v1186, 32
        %v1314 = vpop.permute.xlu0 %1313
        %1315 = vrot.lane.b32.xlu0 %v1187, 32
        %v1316 = vpop.permute.xlu0 %1315
        %1317 = vrot.lane.b32.xlu0 %v1188, 32
        %v1318 = vpop.permute.xlu0 %1317
        %1319 = vrot.lane.b32.xlu0 %v1189, 32
        %v1320 = vpop.permute.xlu0 %1319
        %1321 = vrot.lane.b32.xlu0 %v1190, 32
        %v1322 = vpop.permute.xlu0 %1321
        %1323 = vrot.lane.b32.xlu0 %v1191, 32
        %v1324 = vpop.permute.xlu0 %1323
        %1325 = vrot.lane.b32.xlu0 %v1192, 32
        %v1326 = vpop.permute.xlu0 %1325
        %1327 = vrot.lane.b32.xlu0 %v1193, 32
        %v1328 = vpop.permute.xlu0 %1327
        %1329 = vrot.lane.b32.xlu0 %v1194, 32
        %v1330 = vpop.permute.xlu0 %1329
        %1331 = vrot.lane.b32.xlu0 %v1195, 32
        %v1332 = vpop.permute.xlu0 %1331
        %1333 = vrot.lane.b32.xlu0 %v1196, 32
        %v1334 = vpop.permute.xlu0 %1333
        %1335 = vrot.lane.b32.xlu0 %v1197, 32
        %v1336 = vpop.permute.xlu0 %1335
        %vm1353 = vcmask 261120
        %v1354 = vsel %vm1353, %v1134, %v1306
        %v1355 = vsel %vm1353, %v1135, %v1308
        %v1356 = vsel %vm1353, %v1136, %v1310
        %v1357 = vsel %vm1353, %v1137, %v1312
        %v1358 = vsel %vm1353, %v1138, %v1314
        %v1359 = vsel %vm1353, %v1139, %v1316
        %v1360 = vsel %vm1353, %v1140, %v1318
        %v1361 = vsel %vm1353, %v1141, %v1320
        %v1362 = vsel %vm1353, %v1142, %v1322
        %v1363 = vsel %vm1353, %v1143, %v1324
        %v1364 = vsel %vm1353, %v1144, %v1326
        %v1365 = vsel %vm1353, %v1145, %v1328
        %v1366 = vsel %vm1353, %v1146, %v1330
        %v1367 = vsel %vm1353, %v1147, %v1332
        %v1368 = vsel %vm1353, %v1148, %v1334
        %v1369 = vsel %vm1353, %v1149, %v1336
        %v1370 = vld [vmem:[#allocation2] sm:$0xff]
        %v1371 = vld [vmem:[#allocation2 + $0x8] sm:$0xff]
        %v1372 = vld [vmem:[#allocation2 + $0x10] sm:$0xff]
        %v1373 = vld [vmem:[#allocation2 + $0x18] sm:$0xff]
        %v1374 = vld [vmem:[#allocation2 + $0x20] sm:$0xff]
        %v1375 = vld [vmem:[#allocation2 + $0x28] sm:$0xff]
        %v1376 = vld [vmem:[#allocation2 + $0x30] sm:$0xff]
        %v1377 = vld [vmem:[#allocation2 + $0x38] sm:$0xff]
        %vm1378 = vcmask 523264
        %v1380 = vsel %vm1378, %v1354, 0
        %v1383 = vsel %vm1378, %v1355, 0
        %v1386 = vsel %vm1378, %v1356, 0
        %v1389 = vsel %vm1378, %v1357, 0
        %v1392 = vsel %vm1378, %v1358, 0
        %v1395 = vsel %vm1378, %v1359, 0
        %v1398 = vsel %vm1378, %v1360, 0
        %v1401 = vsel %vm1378, %v1361, 0
        %v1404 = vsel %vm1378, %v1362, 0
        %v1407 = vsel %vm1378, %v1363, 0
        %v1410 = vsel %vm1378, %v1364, 0
        %v1413 = vsel %vm1378, %v1365, 0
        %v1416 = vsel %vm1378, %v1366, 0
        %v1419 = vsel %vm1378, %v1367, 0
        %v1422 = vsel %vm1378, %v1368, 0
        %v1425 = vsel %vm1378, %v1369, 0
        %1427 = vmatprep.subr.mxu0 0.0
        %1428 = vmatpush1.msra.mxu0 0.0
        %1429 = vmatprep.subr.mxu0 0.0
        %1430 = vmatpush1.msra.mxu0 0.0
        %1431 = vmatprep.subr.mxu0 0.0
        %1432 = vmatpush1.msra.mxu0 0.0
        %1433 = vmatprep.subr.mxu0 0.0
        %1434 = vmatpush1.msra.mxu0 0.0
        %1435 = vmatprep.subr.mxu0 0.0
        %1436 = vmatpush1.msra.mxu0 0.0
        %1437 = vmatprep.subr.mxu0 0.0
        %1438 = vmatpush1.msra.mxu0 0.0
        %1439 = vmatprep.subr.mxu0 0.0
        %1440 = vmatpush1.msra.mxu0 0.0
        %1441 = vmatprep.subr.mxu0 0.0
        %1442 = vmatpush1.msra.mxu0 0.0
        %1443 = vmatprep.subr.mxu0 0.0
        %1444 = vmatpush1.msra.mxu0 %v1377
        %1445 = vmatprep.subr.mxu0 0.0
        %1446 = vmatpush1.msra.mxu0 %v1376
        %1447 = vmatprep.subr.mxu0 0.0
        %1448 = vmatpush1.msra.mxu0 %v1375
        %1449 = vmatprep.subr.mxu0 0.0
        %1450 = vmatpush1.msra.mxu0 %v1374
        %1451 = vmatprep.subr.mxu0 0.0
        %1452 = vmatpush1.msra.mxu0 %v1373
        %1453 = vmatprep.subr.mxu0 0.0
        %1454 = vmatpush1.msra.mxu0 %v1372
        %1455 = vmatprep.subr.mxu0 0.0
        %1456 = vmatpush1.msra.mxu0 %v1371
        %1457 = vmatprep.subr.mxu0 0.0
        %1458 = vmatpush1.msra.mxu0 %v1370
        %1459 = vmatprep.subr.mxu0 0.0
        %1460 = vmatpush2.msra.mxu0 0.0
        %1461 = vmatprep.subr.mxu0 0.0
        %1462 = vmatpush2.msra.mxu0 0.0
        %1463 = vmatprep.subr.mxu0 0.0
        %1464 = vmatpush2.msra.mxu0 0.0
        %1465 = vmatprep.subr.mxu0 0.0
        %1466 = vmatpush2.msra.mxu0 0.0
        %1467 = vmatprep.subr.mxu0 0.0
        %1468 = vmatpush2.msra.mxu0 0.0
        %1469 = vmatprep.subr.mxu0 0.0
        %1470 = vmatpush2.msra.mxu0 0.0
        %1471 = vmatprep.subr.mxu0 0.0
        %1472 = vmatpush2.msra.mxu0 0.0
        %1473 = vmatprep.subr.mxu0 0.0
        %1474 = vmatpush2.msra.mxu0 0.0
        %1475 = vmatprep.subr.mxu0 0.0
        %1476 = vmatpush2.msra.mxu0 0.0
        %1477 = vmatprep.subr.mxu0 0.0
        %1478 = vmatpush2.msra.mxu0 0.0
        %1479 = vmatprep.subr.mxu0 0.0
        %1480 = vmatpush2.msra.mxu0 0.0
        %1481 = vmatprep.subr.mxu0 0.0
        %1482 = vmatpush2.msra.mxu0 0.0
        %1483 = vmatprep.subr.mxu0 0.0
        %1484 = vmatpush2.msra.mxu0 0.0
        %1485 = vmatprep.subr.mxu0 0.0
        %1486 = vmatpush2.msra.mxu0 0.0
        %1487 = vmatprep.subr.mxu0 0.0
        %1488 = vmatpush2.msra.mxu0 0.0
        %1489 = vmatprep.subr.mxu0 0.0
        %1490 = vmatpush2.msra.mxu0 0.0
        %1491 = vmatprep.mubr.f32.mxu0 0.0
        %1492 = vmatmul.mubr.f32.gmra.mxu0 %v1380
        %v1493 = vpop.f32.mrf.mxu0
        %v1494 = vadd.f32 %v1273, %v1493
        %v1495 = vpop.f32.mrf.mxu0
        %1496 = vmatprep.mubr.f32.mxu0 0.0
        %1497 = vmatmul.mubr.f32.gmra.mxu0 %v1383
        %v1498 = vpop.f32.mrf.mxu0
        %v1499 = vadd.f32 %v1274, %v1498
        %v1500 = vpop.f32.mrf.mxu0
        %1501 = vmatprep.mubr.f32.mxu0 0.0
        %1502 = vmatmul.mubr.f32.gmra.mxu0 %v1386
        %v1503 = vpop.f32.mrf.mxu0
        %v1504 = vadd.f32 %v1275, %v1503
        %v1505 = vpop.f32.mrf.mxu0
        %1506 = vmatprep.mubr.f32.mxu0 0.0
        %1507 = vmatmul.mubr.f32.gmra.mxu0 %v1389
        %v1508 = vpop.f32.mrf.mxu0
        %v1509 = vadd.f32 %v1276, %v1508
        %v1510 = vpop.f32.mrf.mxu0
        %1511 = vmatprep.mubr.f32.mxu0 0.0
        %1512 = vmatmul.mubr.f32.gmra.mxu0 %v1392
        %v1513 = vpop.f32.mrf.mxu0
        %v1514 = vadd.f32 %v1277, %v1513
        %v1515 = vpop.f32.mrf.mxu0
        %1516 = vmatprep.mubr.f32.mxu0 0.0
        %1517 = vmatmul.mubr.f32.gmra.mxu0 %v1395
        %v1518 = vpop.f32.mrf.mxu0
        %v1519 = vadd.f32 %v1278, %v1518
        %v1520 = vpop.f32.mrf.mxu0
        %1521 = vmatprep.mubr.f32.mxu0 0.0
        %1522 = vmatmul.mubr.f32.gmra.mxu0 %v1398
        %v1523 = vpop.f32.mrf.mxu0
        %v1524 = vadd.f32 %v1279, %v1523
        %v1525 = vpop.f32.mrf.mxu0
        %1526 = vmatprep.mubr.f32.mxu0 0.0
        %1527 = vmatmul.mubr.f32.gmra.mxu0 %v1401
        %v1528 = vpop.f32.mrf.mxu0
        %v1529 = vadd.f32 %v1280, %v1528
        %v1530 = vpop.f32.mrf.mxu0
        %1531 = vmatprep.mubr.f32.mxu0 0.0
        %1532 = vmatmul.mubr.f32.gmra.mxu0 %v1404
        %v1533 = vpop.f32.mrf.mxu0
        %v1534 = vadd.f32 %v1281, %v1533
        %v1535 = vpop.f32.mrf.mxu0
        %1536 = vmatprep.mubr.f32.mxu0 0.0
        %1537 = vmatmul.mubr.f32.gmra.mxu0 %v1407
        %v1538 = vpop.f32.mrf.mxu0
        %v1539 = vadd.f32 %v1282, %v1538
        %v1540 = vpop.f32.mrf.mxu0
        %1541 = vmatprep.mubr.f32.mxu0 0.0
        %1542 = vmatmul.mubr.f32.gmra.mxu0 %v1410
        %v1543 = vpop.f32.mrf.mxu0
        %v1544 = vadd.f32 %v1283, %v1543
        %v1545 = vpop.f32.mrf.mxu0
        %1546 = vmatprep.mubr.f32.mxu0 0.0
        %1547 = vmatmul.mubr.f32.gmra.mxu0 %v1413
        %v1548 = vpop.f32.mrf.mxu0
        %v1549 = vadd.f32 %v1284, %v1548
        %v1550 = vpop.f32.mrf.mxu0
        %1551 = vmatprep.mubr.f32.mxu0 0.0
        %1552 = vmatmul.mubr.f32.gmra.mxu0 %v1416
        %v1553 = vpop.f32.mrf.mxu0
        %v1554 = vadd.f32 %v1285, %v1553
        %v1555 = vpop.f32.mrf.mxu0
        %1556 = vmatprep.mubr.f32.mxu0 0.0
        %1557 = vmatmul.mubr.f32.gmra.mxu0 %v1419
        %v1558 = vpop.f32.mrf.mxu0
        %v1559 = vadd.f32 %v1286, %v1558
        %v1560 = vpop.f32.mrf.mxu0
        %1561 = vmatprep.mubr.f32.mxu0 0.0
        %1562 = vmatmul.mubr.f32.gmra.mxu0 %v1422
        %v1563 = vpop.f32.mrf.mxu0
        %v1564 = vadd.f32 %v1287, %v1563
        %v1565 = vpop.f32.mrf.mxu0
        %1566 = vmatprep.mubr.f32.mxu0 0.0
        %1567 = vmatmul.mubr.f32.gmra.mxu0 %v1425
        %v1568 = vpop.f32.mrf.mxu0
        %v1569 = vadd.f32 %v1288, %v1568
        %v1570 = vpop.f32.mrf.mxu0
        %1571 = vdwg.mxu0
        %1572 = vst [vmem:[%s350] sm:$0xff] %v1494
        %1573 = vst [vmem:[%s350 + $0x8] sm:$0xff] %v1499
        %1574 = vst [vmem:[%s350 + $0x10] sm:$0xff] %v1504
        %1575 = vst [vmem:[%s350 + $0x18] sm:$0xff] %v1509
        %1576 = vst [vmem:[%s350 + $0x20] sm:$0xff] %v1514
        %1577 = vst [vmem:[%s350 + $0x28] sm:$0xff] %v1519
        %1578 = vst [vmem:[%s350 + $0x30] sm:$0xff] %v1524
        %1579 = vst [vmem:[%s350 + $0x38] sm:$0xff] %v1529
        %1580 = vst [vmem:[%s350 + $0x40] sm:$0xff] %v1534
        %1581 = vst [vmem:[%s350 + $0x48] sm:$0xff] %v1539
        %1582 = vst [vmem:[%s350 + $0x50] sm:$0xff] %v1544
        %1583 = vst [vmem:[%s350 + $0x58] sm:$0xff] %v1549
        %1584 = vst [vmem:[%s350 + $0x60] sm:$0xff] %v1554
        %1585 = vst [vmem:[%s350 + $0x68] sm:$0xff] %v1559
        %1586 = vst [vmem:[%s350 + $0x70] sm:$0xff] %v1564
        %1587 = vst [vmem:[%s350 + $0x78] sm:$0xff] %v1569
        %1604 = vrot.lane.b32.xlu0 %v1134, 96
        %v1605 = vpop.permute.xlu0 %1604
        %1606 = vrot.lane.b32.xlu0 %v1135, 96
        %v1607 = vpop.permute.xlu0 %1606
        %1608 = vrot.lane.b32.xlu0 %v1136, 96
        %v1609 = vpop.permute.xlu0 %1608
        %1610 = vrot.lane.b32.xlu0 %v1137, 96
        %v1611 = vpop.permute.xlu0 %1610
        %1612 = vrot.lane.b32.xlu0 %v1138, 96
        %v1613 = vpop.permute.xlu0 %1612
        %1614 = vrot.lane.b32.xlu0 %v1139, 96
        %v1615 = vpop.permute.xlu0 %1614
        %1616 = vrot.lane.b32.xlu0 %v1140, 96
        %v1617 = vpop.permute.xlu0 %1616
        %1618 = vrot.lane.b32.xlu0 %v1141, 96
        %v1619 = vpop.permute.xlu0 %1618
        %1620 = vrot.lane.b32.xlu0 %v1142, 96
        %v1621 = vpop.permute.xlu0 %1620
        %1622 = vrot.lane.b32.xlu0 %v1143, 96
        %v1623 = vpop.permute.xlu0 %1622
        %1624 = vrot.lane.b32.xlu0 %v1144, 96
        %v1625 = vpop.permute.xlu0 %1624
        %1626 = vrot.lane.b32.xlu0 %v1145, 96
        %v1627 = vpop.permute.xlu0 %1626
        %1628 = vrot.lane.b32.xlu0 %v1146, 96
        %v1629 = vpop.permute.xlu0 %1628
        %1630 = vrot.lane.b32.xlu0 %v1147, 96
        %v1631 = vpop.permute.xlu0 %1630
        %1632 = vrot.lane.b32.xlu0 %v1148, 96
        %v1633 = vpop.permute.xlu0 %1632
        %1634 = vrot.lane.b32.xlu0 %v1149, 96
        %v1635 = vpop.permute.xlu0 %1634
        %v1652 = vsel %vm1353, %v1605, %v1182
        %v1653 = vsel %vm1353, %v1607, %v1183
        %v1654 = vsel %vm1353, %v1609, %v1184
        %v1655 = vsel %vm1353, %v1611, %v1185
        %v1656 = vsel %vm1353, %v1613, %v1186
        %v1657 = vsel %vm1353, %v1615, %v1187
        %v1658 = vsel %vm1353, %v1617, %v1188
        %v1659 = vsel %vm1353, %v1619, %v1189
        %v1660 = vsel %vm1353, %v1621, %v1190
        %v1661 = vsel %vm1353, %v1623, %v1191
        %v1662 = vsel %vm1353, %v1625, %v1192
        %v1663 = vsel %vm1353, %v1627, %v1193
        %v1664 = vsel %vm1353, %v1629, %v1194
        %v1665 = vsel %vm1353, %v1631, %v1195
        %v1666 = vsel %vm1353, %v1633, %v1196
        %v1667 = vsel %vm1353, %v1635, %v1197
        %v1668 = vld [vmem:[#allocation2 + $0x40] sm:$0xff]
        %v1669 = vld [vmem:[#allocation2 + $0x48] sm:$0xff]
        %v1670 = vld [vmem:[#allocation2 + $0x50] sm:$0xff]
        %v1671 = vld [vmem:[#allocation2 + $0x58] sm:$0xff]
        %v1672 = vld [vmem:[#allocation2 + $0x60] sm:$0xff]
        %v1673 = vld [vmem:[#allocation2 + $0x68] sm:$0xff]
        %v1674 = vld [vmem:[#allocation2 + $0x70] sm:$0xff]
        %v1675 = vld [vmem:[#allocation2 + $0x78] sm:$0xff]
        %v1677 = vsel %vm1378, %v1652, 0
        %v1680 = vsel %vm1378, %v1653, 0
        %v1683 = vsel %vm1378, %v1654, 0
        %v1686 = vsel %vm1378, %v1655, 0
        %v1689 = vsel %vm1378, %v1656, 0
        %v1692 = vsel %vm1378, %v1657, 0
        %v1695 = vsel %vm1378, %v1658, 0
        %v1698 = vsel %vm1378, %v1659, 0
        %v1701 = vsel %vm1378, %v1660, 0
        %v1704 = vsel %vm1378, %v1661, 0
        %v1707 = vsel %vm1378, %v1662, 0
        %v1710 = vsel %vm1378, %v1663, 0
        %v1713 = vsel %vm1378, %v1664, 0
        %v1716 = vsel %vm1378, %v1665, 0
        %v1719 = vsel %vm1378, %v1666, 0
        %v1722 = vsel %vm1378, %v1667, 0
        %1724 = vmatprep.subr.mxu0 0.0
        %1725 = vmatpush1.msra.mxu0 0.0
        %1726 = vmatprep.subr.mxu0 0.0
        %1727 = vmatpush1.msra.mxu0 0.0
        %1728 = vmatprep.subr.mxu0 0.0
        %1729 = vmatpush1.msra.mxu0 0.0
        %1730 = vmatprep.subr.mxu0 0.0
        %1731 = vmatpush1.msra.mxu0 0.0
        %1732 = vmatprep.subr.mxu0 0.0
        %1733 = vmatpush1.msra.mxu0 0.0
        %1734 = vmatprep.subr.mxu0 0.0
        %1735 = vmatpush1.msra.mxu0 0.0
        %1736 = vmatprep.subr.mxu0 0.0
        %1737 = vmatpush1.msra.mxu0 0.0
        %1738 = vmatprep.subr.mxu0 0.0
        %1739 = vmatpush1.msra.mxu0 0.0
        %1740 = vmatprep.subr.mxu0 0.0
        %1741 = vmatpush1.msra.mxu0 %v1675
        %1742 = vmatprep.subr.mxu0 0.0
        %1743 = vmatpush1.msra.mxu0 %v1674
        %1744 = vmatprep.subr.mxu0 0.0
        %1745 = vmatpush1.msra.mxu0 %v1673
        %1746 = vmatprep.subr.mxu0 0.0
        %1747 = vmatpush1.msra.mxu0 %v1672
        %1748 = vmatprep.subr.mxu0 0.0
        %1749 = vmatpush1.msra.mxu0 %v1671
        %1750 = vmatprep.subr.mxu0 0.0
        %1751 = vmatpush1.msra.mxu0 %v1670
        %1752 = vmatprep.subr.mxu0 0.0
        %1753 = vmatpush1.msra.mxu0 %v1669
        %1754 = vmatprep.subr.mxu0 0.0
        %1755 = vmatpush1.msra.mxu0 %v1668
        %1756 = vmatprep.subr.mxu0 0.0
        %1757 = vmatpush2.msra.mxu0 0.0
        %1758 = vmatprep.subr.mxu0 0.0
        %1759 = vmatpush2.msra.mxu0 0.0
        %1760 = vmatprep.subr.mxu0 0.0
        %1761 = vmatpush2.msra.mxu0 0.0
        %1762 = vmatprep.subr.mxu0 0.0
        %1763 = vmatpush2.msra.mxu0 0.0
        %1764 = vmatprep.subr.mxu0 0.0
        %1765 = vmatpush2.msra.mxu0 0.0
        %1766 = vmatprep.subr.mxu0 0.0
        %1767 = vmatpush2.msra.mxu0 0.0
        %1768 = vmatprep.subr.mxu0 0.0
        %1769 = vmatpush2.msra.mxu0 0.0
        %1770 = vmatprep.subr.mxu0 0.0
        %1771 = vmatpush2.msra.mxu0 0.0
        %1772 = vmatprep.subr.mxu0 0.0
        %1773 = vmatpush2.msra.mxu0 0.0
        %1774 = vmatprep.subr.mxu0 0.0
        %1775 = vmatpush2.msra.mxu0 0.0
        %1776 = vmatprep.subr.mxu0 0.0
        %1777 = vmatpush2.msra.mxu0 0.0
        %1778 = vmatprep.subr.mxu0 0.0
        %1779 = vmatpush2.msra.mxu0 0.0
        %1780 = vmatprep.subr.mxu0 0.0
        %1781 = vmatpush2.msra.mxu0 0.0
        %1782 = vmatprep.subr.mxu0 0.0
        %1783 = vmatpush2.msra.mxu0 0.0
        %1784 = vmatprep.subr.mxu0 0.0
        %1785 = vmatpush2.msra.mxu0 0.0
        %1786 = vmatprep.subr.mxu0 0.0
        %1787 = vmatpush2.msra.mxu0 0.0
        %1788 = vmatprep.mubr.f32.mxu0 0.0
        %1789 = vmatmul.mubr.f32.gmra.mxu0 %v1677
        %v1790 = vpop.f32.mrf.mxu0
        %v1791 = vadd.f32 %v1273, %v1790
        %v1792 = vpop.f32.mrf.mxu0
        %1793 = vmatprep.mubr.f32.mxu0 0.0
        %1794 = vmatmul.mubr.f32.gmra.mxu0 %v1680
        %v1795 = vpop.f32.mrf.mxu0
        %v1796 = vadd.f32 %v1274, %v1795
        %v1797 = vpop.f32.mrf.mxu0
        %1798 = vmatprep.mubr.f32.mxu0 0.0
        %1799 = vmatmul.mubr.f32.gmra.mxu0 %v1683
        %v1800 = vpop.f32.mrf.mxu0
        %v1801 = vadd.f32 %v1275, %v1800
        %v1802 = vpop.f32.mrf.mxu0
        %1803 = vmatprep.mubr.f32.mxu0 0.0
        %1804 = vmatmul.mubr.f32.gmra.mxu0 %v1686
        %v1805 = vpop.f32.mrf.mxu0
        %v1806 = vadd.f32 %v1276, %v1805
        %v1807 = vpop.f32.mrf.mxu0
        %1808 = vmatprep.mubr.f32.mxu0 0.0
        %1809 = vmatmul.mubr.f32.gmra.mxu0 %v1689
        %v1810 = vpop.f32.mrf.mxu0
        %v1811 = vadd.f32 %v1277, %v1810
        %v1812 = vpop.f32.mrf.mxu0
        %1813 = vmatprep.mubr.f32.mxu0 0.0
        %1814 = vmatmul.mubr.f32.gmra.mxu0 %v1692
        %v1815 = vpop.f32.mrf.mxu0
        %v1816 = vadd.f32 %v1278, %v1815
        %v1817 = vpop.f32.mrf.mxu0
        %1818 = vmatprep.mubr.f32.mxu0 0.0
        %1819 = vmatmul.mubr.f32.gmra.mxu0 %v1695
        %v1820 = vpop.f32.mrf.mxu0
        %v1821 = vadd.f32 %v1279, %v1820
        %v1822 = vpop.f32.mrf.mxu0
        %1823 = vmatprep.mubr.f32.mxu0 0.0
        %1824 = vmatmul.mubr.f32.gmra.mxu0 %v1698
        %v1825 = vpop.f32.mrf.mxu0
        %v1826 = vadd.f32 %v1280, %v1825
        %v1827 = vpop.f32.mrf.mxu0
        %1828 = vmatprep.mubr.f32.mxu0 0.0
        %1829 = vmatmul.mubr.f32.gmra.mxu0 %v1701
        %v1830 = vpop.f32.mrf.mxu0
        %v1831 = vadd.f32 %v1281, %v1830
        %v1832 = vpop.f32.mrf.mxu0
        %1833 = vmatprep.mubr.f32.mxu0 0.0
        %1834 = vmatmul.mubr.f32.gmra.mxu0 %v1704
        %v1835 = vpop.f32.mrf.mxu0
        %v1836 = vadd.f32 %v1282, %v1835
        %v1837 = vpop.f32.mrf.mxu0
        %1838 = vmatprep.mubr.f32.mxu0 0.0
        %1839 = vmatmul.mubr.f32.gmra.mxu0 %v1707
        %v1840 = vpop.f32.mrf.mxu0
        %v1841 = vadd.f32 %v1283, %v1840
        %v1842 = vpop.f32.mrf.mxu0
        %1843 = vmatprep.mubr.f32.mxu0 0.0
        %1844 = vmatmul.mubr.f32.gmra.mxu0 %v1710
        %v1845 = vpop.f32.mrf.mxu0
        %v1846 = vadd.f32 %v1284, %v1845
        %v1847 = vpop.f32.mrf.mxu0
        %1848 = vmatprep.mubr.f32.mxu0 0.0
        %1849 = vmatmul.mubr.f32.gmra.mxu0 %v1713
        %v1850 = vpop.f32.mrf.mxu0
        %v1851 = vadd.f32 %v1285, %v1850
        %v1852 = vpop.f32.mrf.mxu0
        %1853 = vmatprep.mubr.f32.mxu0 0.0
        %1854 = vmatmul.mubr.f32.gmra.mxu0 %v1716
        %v1855 = vpop.f32.mrf.mxu0
        %v1856 = vadd.f32 %v1286, %v1855
        %v1857 = vpop.f32.mrf.mxu0
        %1858 = vmatprep.mubr.f32.mxu0 0.0
        %1859 = vmatmul.mubr.f32.gmra.mxu0 %v1719
        %v1860 = vpop.f32.mrf.mxu0
        %v1861 = vadd.f32 %v1287, %v1860
        %v1862 = vpop.f32.mrf.mxu0
        %1863 = vmatprep.mubr.f32.mxu0 0.0
        %1864 = vmatmul.mubr.f32.gmra.mxu0 %v1722
        %v1865 = vpop.f32.mrf.mxu0
        %v1866 = vadd.f32 %v1288, %v1865
        %v1867 = vpop.f32.mrf.mxu0
        %1868 = vdwg.mxu0
        %s1869 = scalar_lea.vmem %s350, 128 [#allocation12]
        %1870 = vst [vmem:[%s1869] sm:$0xff] %v1791
        %1871 = vst [vmem:[%s1869 + $0x8] sm:$0xff] %v1796
        %1872 = vst [vmem:[%s1869 + $0x10] sm:$0xff] %v1801
        %1873 = vst [vmem:[%s1869 + $0x18] sm:$0xff] %v1806
        %1874 = vst [vmem:[%s1869 + $0x20] sm:$0xff] %v1811
        %1875 = vst [vmem:[%s1869 + $0x28] sm:$0xff] %v1816
        %1876 = vst [vmem:[%s1869 + $0x30] sm:$0xff] %v1821
        %1877 = vst [vmem:[%s1869 + $0x38] sm:$0xff] %v1826
        %1878 = vst [vmem:[%s1869 + $0x40] sm:$0xff] %v1831
        %1879 = vst [vmem:[%s1869 + $0x48] sm:$0xff] %v1836
        %1880 = vst [vmem:[%s1869 + $0x50] sm:$0xff] %v1841
        %1881 = vst [vmem:[%s1869 + $0x58] sm:$0xff] %v1846
        %1882 = vst [vmem:[%s1869 + $0x60] sm:$0xff] %v1851
        %1883 = vst [vmem:[%s1869 + $0x68] sm:$0xff] %v1856
        %1884 = vst [vmem:[%s1869 + $0x70] sm:$0xff] %v1861
        %1885 = vst [vmem:[%s1869 + $0x78] sm:$0xff] %v1866
        %1886 = vrot.lane.b32.xlu0 %v1134, 64
        %v1887 = vpop.permute.xlu0 %1886
        %1888 = vrot.lane.b32.xlu0 %v1135, 64
        %v1889 = vpop.permute.xlu0 %1888
        %1890 = vrot.lane.b32.xlu0 %v1136, 64
        %v1891 = vpop.permute.xlu0 %1890
        %1892 = vrot.lane.b32.xlu0 %v1137, 64
        %v1893 = vpop.permute.xlu0 %1892
        %1894 = vrot.lane.b32.xlu0 %v1138, 64
        %v1895 = vpop.permute.xlu0 %1894
        %1896 = vrot.lane.b32.xlu0 %v1139, 64
        %v1897 = vpop.permute.xlu0 %1896
        %1898 = vrot.lane.b32.xlu0 %v1140, 64
        %v1899 = vpop.permute.xlu0 %1898
        %1900 = vrot.lane.b32.xlu0 %v1141, 64
        %v1901 = vpop.permute.xlu0 %1900
        %1902 = vrot.lane.b32.xlu0 %v1142, 64
        %v1903 = vpop.permute.xlu0 %1902
        %1904 = vrot.lane.b32.xlu0 %v1143, 64
        %v1905 = vpop.permute.xlu0 %1904
        %1906 = vrot.lane.b32.xlu0 %v1144, 64
        %v1907 = vpop.permute.xlu0 %1906
        %1908 = vrot.lane.b32.xlu0 %v1145, 64
        %v1909 = vpop.permute.xlu0 %1908
        %1910 = vrot.lane.b32.xlu0 %v1146, 64
        %v1911 = vpop.permute.xlu0 %1910
        %1912 = vrot.lane.b32.xlu0 %v1147, 64
        %v1913 = vpop.permute.xlu0 %1912
        %1914 = vrot.lane.b32.xlu0 %v1148, 64
        %v1915 = vpop.permute.xlu0 %1914
        %1916 = vrot.lane.b32.xlu0 %v1149, 64
        %v1917 = vpop.permute.xlu0 %1916
        %1934 = vrot.lane.b32.xlu0 %v1182, 96
        %v1935 = vpop.permute.xlu0 %1934
        %1936 = vrot.lane.b32.xlu0 %v1183, 96
        %v1937 = vpop.permute.xlu0 %1936
        %1938 = vrot.lane.b32.xlu0 %v1184, 96
        %v1939 = vpop.permute.xlu0 %1938
        %1940 = vrot.lane.b32.xlu0 %v1185, 96
        %v1941 = vpop.permute.xlu0 %1940
        %1942 = vrot.lane.b32.xlu0 %v1186, 96
        %v1943 = vpop.permute.xlu0 %1942
        %1944 = vrot.lane.b32.xlu0 %v1187, 96
        %v1945 = vpop.permute.xlu0 %1944
        %1946 = vrot.lane.b32.xlu0 %v1188, 96
        %v1947 = vpop.permute.xlu0 %1946
        %1948 = vrot.lane.b32.xlu0 %v1189, 96
        %v1949 = vpop.permute.xlu0 %1948
        %1950 = vrot.lane.b32.xlu0 %v1190, 96
        %v1951 = vpop.permute.xlu0 %1950
        %1952 = vrot.lane.b32.xlu0 %v1191, 96
        %v1953 = vpop.permute.xlu0 %1952
        %1954 = vrot.lane.b32.xlu0 %v1192, 96
        %v1955 = vpop.permute.xlu0 %1954
        %1956 = vrot.lane.b32.xlu0 %v1193, 96
        %v1957 = vpop.permute.xlu0 %1956
        %1958 = vrot.lane.b32.xlu0 %v1194, 96
        %v1959 = vpop.permute.xlu0 %1958
        %1960 = vrot.lane.b32.xlu0 %v1195, 96
        %v1961 = vpop.permute.xlu0 %1960
        %1962 = vrot.lane.b32.xlu0 %v1196, 96
        %v1963 = vpop.permute.xlu0 %1962
        %1964 = vrot.lane.b32.xlu0 %v1197, 96
        %v1965 = vpop.permute.xlu0 %1964
        %v1982 = vsel %vm1353, %v1887, %v1935
        %v1983 = vsel %vm1353, %v1889, %v1937
        %v1984 = vsel %vm1353, %v1891, %v1939
        %v1985 = vsel %vm1353, %v1893, %v1941
        %v1986 = vsel %vm1353, %v1895, %v1943
        %v1987 = vsel %vm1353, %v1897, %v1945
        %v1988 = vsel %vm1353, %v1899, %v1947
        %v1989 = vsel %vm1353, %v1901, %v1949
        %v1990 = vsel %vm1353, %v1903, %v1951
        %v1991 = vsel %vm1353, %v1905, %v1953
        %v1992 = vsel %vm1353, %v1907, %v1955
        %v1993 = vsel %vm1353, %v1909, %v1957
        %v1994 = vsel %vm1353, %v1911, %v1959
        %v1995 = vsel %vm1353, %v1913, %v1961
        %v1996 = vsel %vm1353, %v1915, %v1963
        %v1997 = vsel %vm1353, %v1917, %v1965
        %v1998 = vld [vmem:[#allocation2 + $0x80] sm:$0xff]
        %v1999 = vld [vmem:[#allocation2 + $0x88] sm:$0xff]
        %v2000 = vld [vmem:[#allocation2 + $0x90] sm:$0xff]
        %v2001 = vld [vmem:[#allocation2 + $0x98] sm:$0xff]
        %v2002 = vld [vmem:[#allocation2 + $0xa0] sm:$0xff]
        %v2003 = vld [vmem:[#allocation2 + $0xa8] sm:$0xff]
        %v2004 = vld [vmem:[#allocation2 + $0xb0] sm:$0xff]
        %v2005 = vld [vmem:[#allocation2 + $0xb8] sm:$0xff]
        %v2007 = vsel %vm1378, %v1982, 0
        %v2010 = vsel %vm1378, %v1983, 0
        %v2013 = vsel %vm1378, %v1984, 0
        %v2016 = vsel %vm1378, %v1985, 0
        %v2019 = vsel %vm1378, %v1986, 0
        %v2022 = vsel %vm1378, %v1987, 0
        %v2025 = vsel %vm1378, %v1988, 0
        %v2028 = vsel %vm1378, %v1989, 0
        %v2031 = vsel %vm1378, %v1990, 0
        %v2034 = vsel %vm1378, %v1991, 0
        %v2037 = vsel %vm1378, %v1992, 0
        %v2040 = vsel %vm1378, %v1993, 0
        %v2043 = vsel %vm1378, %v1994, 0
        %v2046 = vsel %vm1378, %v1995, 0
        %v2049 = vsel %vm1378, %v1996, 0
        %v2052 = vsel %vm1378, %v1997, 0
        %2054 = vmatprep.subr.mxu0 0.0
        %2055 = vmatpush1.msra.mxu0 0.0
        %2056 = vmatprep.subr.mxu0 0.0
        %2057 = vmatpush1.msra.mxu0 0.0
        %2058 = vmatprep.subr.mxu0 0.0
        %2059 = vmatpush1.msra.mxu0 0.0
        %2060 = vmatprep.subr.mxu0 0.0
        %2061 = vmatpush1.msra.mxu0 0.0
        %2062 = vmatprep.subr.mxu0 0.0
        %2063 = vmatpush1.msra.mxu0 0.0
        %2064 = vmatprep.subr.mxu0 0.0
        %2065 = vmatpush1.msra.mxu0 0.0
        %2066 = vmatprep.subr.mxu0 0.0
        %2067 = vmatpush1.msra.mxu0 0.0
        %2068 = vmatprep.subr.mxu0 0.0
        %2069 = vmatpush1.msra.mxu0 0.0
        %2070 = vmatprep.subr.mxu0 0.0
        %2071 = vmatpush1.msra.mxu0 %v2005
        %2072 = vmatprep.subr.mxu0 0.0
        %2073 = vmatpush1.msra.mxu0 %v2004
        %2074 = vmatprep.subr.mxu0 0.0
        %2075 = vmatpush1.msra.mxu0 %v2003
        %2076 = vmatprep.subr.mxu0 0.0
        %2077 = vmatpush1.msra.mxu0 %v2002
        %2078 = vmatprep.subr.mxu0 0.0
        %2079 = vmatpush1.msra.mxu0 %v2001
        %2080 = vmatprep.subr.mxu0 0.0
        %2081 = vmatpush1.msra.mxu0 %v2000
        %2082 = vmatprep.subr.mxu0 0.0
        %2083 = vmatpush1.msra.mxu0 %v1999
        %2084 = vmatprep.subr.mxu0 0.0
        %2085 = vmatpush1.msra.mxu0 %v1998
        %2086 = vmatprep.subr.mxu0 0.0
        %2087 = vmatpush2.msra.mxu0 0.0
        %2088 = vmatprep.subr.mxu0 0.0
        %2089 = vmatpush2.msra.mxu0 0.0
        %2090 = vmatprep.subr.mxu0 0.0
        %2091 = vmatpush2.msra.mxu0 0.0
        %2092 = vmatprep.subr.mxu0 0.0
        %2093 = vmatpush2.msra.mxu0 0.0
        %2094 = vmatprep.subr.mxu0 0.0
        %2095 = vmatpush2.msra.mxu0 0.0
        %2096 = vmatprep.subr.mxu0 0.0
        %2097 = vmatpush2.msra.mxu0 0.0
        %2098 = vmatprep.subr.mxu0 0.0
        %2099 = vmatpush2.msra.mxu0 0.0
        %2100 = vmatprep.subr.mxu0 0.0
        %2101 = vmatpush2.msra.mxu0 0.0
        %2102 = vmatprep.subr.mxu0 0.0
        %2103 = vmatpush2.msra.mxu0 0.0
        %2104 = vmatprep.subr.mxu0 0.0
        %2105 = vmatpush2.msra.mxu0 0.0
        %2106 = vmatprep.subr.mxu0 0.0
        %2107 = vmatpush2.msra.mxu0 0.0
        %2108 = vmatprep.subr.mxu0 0.0
        %2109 = vmatpush2.msra.mxu0 0.0
        %2110 = vmatprep.subr.mxu0 0.0
        %2111 = vmatpush2.msra.mxu0 0.0
        %2112 = vmatprep.subr.mxu0 0.0
        %2113 = vmatpush2.msra.mxu0 0.0
        %2114 = vmatprep.subr.mxu0 0.0
        %2115 = vmatpush2.msra.mxu0 0.0
        %2116 = vmatprep.subr.mxu0 0.0
        %2117 = vmatpush2.msra.mxu0 0.0
        %2118 = vmatprep.mubr.f32.mxu0 0.0
        %2119 = vmatmul.mubr.f32.gmra.mxu0 %v2007
        %v2120 = vpop.f32.mrf.mxu0
        %v2121 = vadd.f32 %v1273, %v2120
        %v2122 = vpop.f32.mrf.mxu0
        %2123 = vmatprep.mubr.f32.mxu0 0.0
        %2124 = vmatmul.mubr.f32.gmra.mxu0 %v2010
        %v2125 = vpop.f32.mrf.mxu0
        %v2126 = vadd.f32 %v1274, %v2125
        %v2127 = vpop.f32.mrf.mxu0
        %2128 = vmatprep.mubr.f32.mxu0 0.0
        %2129 = vmatmul.mubr.f32.gmra.mxu0 %v2013
        %v2130 = vpop.f32.mrf.mxu0
        %v2131 = vadd.f32 %v1275, %v2130
        %v2132 = vpop.f32.mrf.mxu0
        %2133 = vmatprep.mubr.f32.mxu0 0.0
        %2134 = vmatmul.mubr.f32.gmra.mxu0 %v2016
        %v2135 = vpop.f32.mrf.mxu0
        %v2136 = vadd.f32 %v1276, %v2135
        %v2137 = vpop.f32.mrf.mxu0
        %2138 = vmatprep.mubr.f32.mxu0 0.0
        %2139 = vmatmul.mubr.f32.gmra.mxu0 %v2019
        %v2140 = vpop.f32.mrf.mxu0
        %v2141 = vadd.f32 %v1277, %v2140
        %v2142 = vpop.f32.mrf.mxu0
        %2143 = vmatprep.mubr.f32.mxu0 0.0
        %2144 = vmatmul.mubr.f32.gmra.mxu0 %v2022
        %v2145 = vpop.f32.mrf.mxu0
        %v2146 = vadd.f32 %v1278, %v2145
        %v2147 = vpop.f32.mrf.mxu0
        %2148 = vmatprep.mubr.f32.mxu0 0.0
        %2149 = vmatmul.mubr.f32.gmra.mxu0 %v2025
        %v2150 = vpop.f32.mrf.mxu0
        %v2151 = vadd.f32 %v1279, %v2150
        %v2152 = vpop.f32.mrf.mxu0
        %2153 = vmatprep.mubr.f32.mxu0 0.0
        %2154 = vmatmul.mubr.f32.gmra.mxu0 %v2028
        %v2155 = vpop.f32.mrf.mxu0
        %v2156 = vadd.f32 %v1280, %v2155
        %v2157 = vpop.f32.mrf.mxu0
        %2158 = vmatprep.mubr.f32.mxu0 0.0
        %2159 = vmatmul.mubr.f32.gmra.mxu0 %v2031
        %v2160 = vpop.f32.mrf.mxu0
        %v2161 = vadd.f32 %v1281, %v2160
        %v2162 = vpop.f32.mrf.mxu0
        %2163 = vmatprep.mubr.f32.mxu0 0.0
        %2164 = vmatmul.mubr.f32.gmra.mxu0 %v2034
        %v2165 = vpop.f32.mrf.mxu0
        %v2166 = vadd.f32 %v1282, %v2165
        %v2167 = vpop.f32.mrf.mxu0
        %2168 = vmatprep.mubr.f32.mxu0 0.0
        %2169 = vmatmul.mubr.f32.gmra.mxu0 %v2037
        %v2170 = vpop.f32.mrf.mxu0
        %v2171 = vadd.f32 %v1283, %v2170
        %v2172 = vpop.f32.mrf.mxu0
        %2173 = vmatprep.mubr.f32.mxu0 0.0
        %2174 = vmatmul.mubr.f32.gmra.mxu0 %v2040
        %v2175 = vpop.f32.mrf.mxu0
        %v2176 = vadd.f32 %v1284, %v2175
        %v2177 = vpop.f32.mrf.mxu0
        %2178 = vmatprep.mubr.f32.mxu0 0.0
        %2179 = vmatmul.mubr.f32.gmra.mxu0 %v2043
        %v2180 = vpop.f32.mrf.mxu0
        %v2181 = vadd.f32 %v1285, %v2180
        %v2182 = vpop.f32.mrf.mxu0
        %2183 = vmatprep.mubr.f32.mxu0 0.0
        %2184 = vmatmul.mubr.f32.gmra.mxu0 %v2046
        %v2185 = vpop.f32.mrf.mxu0
        %v2186 = vadd.f32 %v1286, %v2185
        %v2187 = vpop.f32.mrf.mxu0
        %2188 = vmatprep.mubr.f32.mxu0 0.0
        %2189 = vmatmul.mubr.f32.gmra.mxu0 %v2049
        %v2190 = vpop.f32.mrf.mxu0
        %v2191 = vadd.f32 %v1287, %v2190
        %v2192 = vpop.f32.mrf.mxu0
        %2193 = vmatprep.mubr.f32.mxu0 0.0
        %2194 = vmatmul.mubr.f32.gmra.mxu0 %v2052
        %v2195 = vpop.f32.mrf.mxu0
        %v2196 = vadd.f32 %v1288, %v2195
        %v2197 = vpop.f32.mrf.mxu0
        %2198 = vdwg.mxu0
        %s2199 = scalar_lea.vmem %s350, 256 [#allocation12]
        %2200 = vst [vmem:[%s2199] sm:$0xff] %v2121
        %2201 = vst [vmem:[%s2199 + $0x8] sm:$0xff] %v2126
        %2202 = vst [vmem:[%s2199 + $0x10] sm:$0xff] %v2131
        %2203 = vst [vmem:[%s2199 + $0x18] sm:$0xff] %v2136
        %2204 = vst [vmem:[%s2199 + $0x20] sm:$0xff] %v2141
        %2205 = vst [vmem:[%s2199 + $0x28] sm:$0xff] %v2146
        %2206 = vst [vmem:[%s2199 + $0x30] sm:$0xff] %v2151
        %2207 = vst [vmem:[%s2199 + $0x38] sm:$0xff] %v2156
        %2208 = vst [vmem:[%s2199 + $0x40] sm:$0xff] %v2161
        %2209 = vst [vmem:[%s2199 + $0x48] sm:$0xff] %v2166
        %2210 = vst [vmem:[%s2199 + $0x50] sm:$0xff] %v2171
        %2211 = vst [vmem:[%s2199 + $0x58] sm:$0xff] %v2176
        %2212 = vst [vmem:[%s2199 + $0x60] sm:$0xff] %v2181
        %2213 = vst [vmem:[%s2199 + $0x68] sm:$0xff] %v2186
        %2214 = vst [vmem:[%s2199 + $0x70] sm:$0xff] %v2191
        %2215 = vst [vmem:[%s2199 + $0x78] sm:$0xff] %v2196
        %2216 = vrot.lane.b32.xlu0 %v1134, 32
        %v2217 = vpop.permute.xlu0 %2216
        %2218 = vrot.lane.b32.xlu0 %v1135, 32
        %v2219 = vpop.permute.xlu0 %2218
        %2220 = vrot.lane.b32.xlu0 %v1136, 32
        %v2221 = vpop.permute.xlu0 %2220
        %2222 = vrot.lane.b32.xlu0 %v1137, 32
        %v2223 = vpop.permute.xlu0 %2222
        %2224 = vrot.lane.b32.xlu0 %v1138, 32
        %v2225 = vpop.permute.xlu0 %2224
        %2226 = vrot.lane.b32.xlu0 %v1139, 32
        %v2227 = vpop.permute.xlu0 %2226
        %2228 = vrot.lane.b32.xlu0 %v1140, 32
        %v2229 = vpop.permute.xlu0 %2228
        %2230 = vrot.lane.b32.xlu0 %v1141, 32
        %v2231 = vpop.permute.xlu0 %2230
        %2232 = vrot.lane.b32.xlu0 %v1142, 32
        %v2233 = vpop.permute.xlu0 %2232
        %2234 = vrot.lane.b32.xlu0 %v1143, 32
        %v2235 = vpop.permute.xlu0 %2234
        %2236 = vrot.lane.b32.xlu0 %v1144, 32
        %v2237 = vpop.permute.xlu0 %2236
        %2238 = vrot.lane.b32.xlu0 %v1145, 32
        %v2239 = vpop.permute.xlu0 %2238
        %2240 = vrot.lane.b32.xlu0 %v1146, 32
        %v2241 = vpop.permute.xlu0 %2240
        %2242 = vrot.lane.b32.xlu0 %v1147, 32
        %v2243 = vpop.permute.xlu0 %2242
        %2244 = vrot.lane.b32.xlu0 %v1148, 32
        %v2245 = vpop.permute.xlu0 %2244
        %2246 = vrot.lane.b32.xlu0 %v1149, 32
        %v2247 = vpop.permute.xlu0 %2246
        %2264 = vrot.lane.b32.xlu0 %v1182, 64
        %v2265 = vpop.permute.xlu0 %2264
        %2266 = vrot.lane.b32.xlu0 %v1183, 64
        %v2267 = vpop.permute.xlu0 %2266
        %2268 = vrot.lane.b32.xlu0 %v1184, 64
        %v2269 = vpop.permute.xlu0 %2268
        %2270 = vrot.lane.b32.xlu0 %v1185, 64
        %v2271 = vpop.permute.xlu0 %2270
        %2272 = vrot.lane.b32.xlu0 %v1186, 64
        %v2273 = vpop.permute.xlu0 %2272
        %2274 = vrot.lane.b32.xlu0 %v1187, 64
        %v2275 = vpop.permute.xlu0 %2274
        %2276 = vrot.lane.b32.xlu0 %v1188, 64
        %v2277 = vpop.permute.xlu0 %2276
        %2278 = vrot.lane.b32.xlu0 %v1189, 64
        %v2279 = vpop.permute.xlu0 %2278
        %2280 = vrot.lane.b32.xlu0 %v1190, 64
        %v2281 = vpop.permute.xlu0 %2280
        %2282 = vrot.lane.b32.xlu0 %v1191, 64
        %v2283 = vpop.permute.xlu0 %2282
        %2284 = vrot.lane.b32.xlu0 %v1192, 64
        %v2285 = vpop.permute.xlu0 %2284
        %2286 = vrot.lane.b32.xlu0 %v1193, 64
        %v2287 = vpop.permute.xlu0 %2286
        %2288 = vrot.lane.b32.xlu0 %v1194, 64
        %v2289 = vpop.permute.xlu0 %2288
        %2290 = vrot.lane.b32.xlu0 %v1195, 64
        %v2291 = vpop.permute.xlu0 %2290
        %2292 = vrot.lane.b32.xlu0 %v1196, 64
        %v2293 = vpop.permute.xlu0 %2292
        %2294 = vrot.lane.b32.xlu0 %v1197, 64
        %v2295 = vpop.permute.xlu0 %2294
        %v2312 = vsel %vm1353, %v2217, %v2265
        %v2313 = vsel %vm1353, %v2219, %v2267
        %v2314 = vsel %vm1353, %v2221, %v2269
        %v2315 = vsel %vm1353, %v2223, %v2271
        %v2316 = vsel %vm1353, %v2225, %v2273
        %v2317 = vsel %vm1353, %v2227, %v2275
        %v2318 = vsel %vm1353, %v2229, %v2277
        %v2319 = vsel %vm1353, %v2231, %v2279
        %v2320 = vsel %vm1353, %v2233, %v2281
        %v2321 = vsel %vm1353, %v2235, %v2283
        %v2322 = vsel %vm1353, %v2237, %v2285
        %v2323 = vsel %vm1353, %v2239, %v2287
        %v2324 = vsel %vm1353, %v2241, %v2289
        %v2325 = vsel %vm1353, %v2243, %v2291
        %v2326 = vsel %vm1353, %v2245, %v2293
        %v2327 = vsel %vm1353, %v2247, %v2295
        %v2328 = vld [vmem:[#allocation2 + $0xc0] sm:$0xff]
        %v2329 = vld [vmem:[#allocation2 + $0xc8] sm:$0xff]
        %v2330 = vld [vmem:[#allocation2 + $0xd0] sm:$0xff]
        %v2331 = vld [vmem:[#allocation2 + $0xd8] sm:$0xff]
        %v2332 = vld [vmem:[#allocation2 + $0xe0] sm:$0xff]
        %v2333 = vld [vmem:[#allocation2 + $0xe8] sm:$0xff]
        %v2334 = vld [vmem:[#allocation2 + $0xf0] sm:$0xff]
        %v2335 = vld [vmem:[#allocation2 + $0xf8] sm:$0xff]
        %v2337 = vsel %vm1378, %v2312, 0
        %v2340 = vsel %vm1378, %v2313, 0
        %v2343 = vsel %vm1378, %v2314, 0
        %v2346 = vsel %vm1378, %v2315, 0
        %v2349 = vsel %vm1378, %v2316, 0
        %v2352 = vsel %vm1378, %v2317, 0
        %v2355 = vsel %vm1378, %v2318, 0
        %v2358 = vsel %vm1378, %v2319, 0
        %v2361 = vsel %vm1378, %v2320, 0
        %v2364 = vsel %vm1378, %v2321, 0
        %v2367 = vsel %vm1378, %v2322, 0
        %v2370 = vsel %vm1378, %v2323, 0
        %v2373 = vsel %vm1378, %v2324, 0
        %v2376 = vsel %vm1378, %v2325, 0
        %v2379 = vsel %vm1378, %v2326, 0
        %v2382 = vsel %vm1378, %v2327, 0
        %2384 = vmatprep.subr.mxu0 0.0
        %2385 = vmatpush1.msra.mxu0 0.0
        %2386 = vmatprep.subr.mxu0 0.0
        %2387 = vmatpush1.msra.mxu0 0.0
        %2388 = vmatprep.subr.mxu0 0.0
        %2389 = vmatpush1.msra.mxu0 0.0
        %2390 = vmatprep.subr.mxu0 0.0
        %2391 = vmatpush1.msra.mxu0 0.0
        %2392 = vmatprep.subr.mxu0 0.0
        %2393 = vmatpush1.msra.mxu0 0.0
        %2394 = vmatprep.subr.mxu0 0.0
        %2395 = vmatpush1.msra.mxu0 0.0
        %2396 = vmatprep.subr.mxu0 0.0
        %2397 = vmatpush1.msra.mxu0 0.0
        %2398 = vmatprep.subr.mxu0 0.0
        %2399 = vmatpush1.msra.mxu0 0.0
        %2400 = vmatprep.subr.mxu0 0.0
        %2401 = vmatpush1.msra.mxu0 %v2335
        %2402 = vmatprep.subr.mxu0 0.0
        %2403 = vmatpush1.msra.mxu0 %v2334
        %2404 = vmatprep.subr.mxu0 0.0
        %2405 = vmatpush1.msra.mxu0 %v2333
        %2406 = vmatprep.subr.mxu0 0.0
        %2407 = vmatpush1.msra.mxu0 %v2332
        %2408 = vmatprep.subr.mxu0 0.0
        %2409 = vmatpush1.msra.mxu0 %v2331
        %2410 = vmatprep.subr.mxu0 0.0
        %2411 = vmatpush1.msra.mxu0 %v2330
        %2412 = vmatprep.subr.mxu0 0.0
        %2413 = vmatpush1.msra.mxu0 %v2329
        %2414 = vmatprep.subr.mxu0 0.0
        %2415 = vmatpush1.msra.mxu0 %v2328
        %2416 = vmatprep.subr.mxu0 0.0
        %2417 = vmatpush2.msra.mxu0 0.0
        %2418 = vmatprep.subr.mxu0 0.0
        %2419 = vmatpush2.msra.mxu0 0.0
        %2420 = vmatprep.subr.mxu0 0.0
        %2421 = vmatpush2.msra.mxu0 0.0
        %2422 = vmatprep.subr.mxu0 0.0
        %2423 = vmatpush2.msra.mxu0 0.0
        %2424 = vmatprep.subr.mxu0 0.0
        %2425 = vmatpush2.msra.mxu0 0.0
        %2426 = vmatprep.subr.mxu0 0.0
        %2427 = vmatpush2.msra.mxu0 0.0
        %2428 = vmatprep.subr.mxu0 0.0
        %2429 = vmatpush2.msra.mxu0 0.0
        %2430 = vmatprep.subr.mxu0 0.0
        %2431 = vmatpush2.msra.mxu0 0.0
        %2432 = vmatprep.subr.mxu0 0.0
        %2433 = vmatpush2.msra.mxu0 0.0
        %2434 = vmatprep.subr.mxu0 0.0
        %2435 = vmatpush2.msra.mxu0 0.0
        %2436 = vmatprep.subr.mxu0 0.0
        %2437 = vmatpush2.msra.mxu0 0.0
        %2438 = vmatprep.subr.mxu0 0.0
        %2439 = vmatpush2.msra.mxu0 0.0
        %2440 = vmatprep.subr.mxu0 0.0
        %2441 = vmatpush2.msra.mxu0 0.0
        %2442 = vmatprep.subr.mxu0 0.0
        %2443 = vmatpush2.msra.mxu0 0.0
        %2444 = vmatprep.subr.mxu0 0.0
        %2445 = vmatpush2.msra.mxu0 0.0
        %2446 = vmatprep.subr.mxu0 0.0
        %2447 = vmatpush2.msra.mxu0 0.0
        %2448 = vmatprep.mubr.f32.mxu0 0.0
        %2449 = vmatmul.mubr.f32.gmra.mxu0 %v2337
        %v2450 = vpop.f32.mrf.mxu0
        %v2451 = vadd.f32 %v1273, %v2450
        %v2452 = vpop.f32.mrf.mxu0
        %2453 = vmatprep.mubr.f32.mxu0 0.0
        %2454 = vmatmul.mubr.f32.gmra.mxu0 %v2340
        %v2455 = vpop.f32.mrf.mxu0
        %v2456 = vadd.f32 %v1274, %v2455
        %v2457 = vpop.f32.mrf.mxu0
        %2458 = vmatprep.mubr.f32.mxu0 0.0
        %2459 = vmatmul.mubr.f32.gmra.mxu0 %v2343
        %v2460 = vpop.f32.mrf.mxu0
        %v2461 = vadd.f32 %v1275, %v2460
        %v2462 = vpop.f32.mrf.mxu0
        %2463 = vmatprep.mubr.f32.mxu0 0.0
        %2464 = vmatmul.mubr.f32.gmra.mxu0 %v2346
        %v2465 = vpop.f32.mrf.mxu0
        %v2466 = vadd.f32 %v1276, %v2465
        %v2467 = vpop.f32.mrf.mxu0
        %2468 = vmatprep.mubr.f32.mxu0 0.0
        %2469 = vmatmul.mubr.f32.gmra.mxu0 %v2349
        %v2470 = vpop.f32.mrf.mxu0
        %v2471 = vadd.f32 %v1277, %v2470
        %v2472 = vpop.f32.mrf.mxu0
        %2473 = vmatprep.mubr.f32.mxu0 0.0
        %2474 = vmatmul.mubr.f32.gmra.mxu0 %v2352
        %v2475 = vpop.f32.mrf.mxu0
        %v2476 = vadd.f32 %v1278, %v2475
        %v2477 = vpop.f32.mrf.mxu0
        %2478 = vmatprep.mubr.f32.mxu0 0.0
        %2479 = vmatmul.mubr.f32.gmra.mxu0 %v2355
        %v2480 = vpop.f32.mrf.mxu0
        %v2481 = vadd.f32 %v1279, %v2480
        %v2482 = vpop.f32.mrf.mxu0
        %2483 = vmatprep.mubr.f32.mxu0 0.0
        %2484 = vmatmul.mubr.f32.gmra.mxu0 %v2358
        %v2485 = vpop.f32.mrf.mxu0
        %v2486 = vadd.f32 %v1280, %v2485
        %v2487 = vpop.f32.mrf.mxu0
        %2488 = vmatprep.mubr.f32.mxu0 0.0
        %2489 = vmatmul.mubr.f32.gmra.mxu0 %v2361
        %v2490 = vpop.f32.mrf.mxu0
        %v2491 = vadd.f32 %v1281, %v2490
        %v2492 = vpop.f32.mrf.mxu0
        %2493 = vmatprep.mubr.f32.mxu0 0.0
        %2494 = vmatmul.mubr.f32.gmra.mxu0 %v2364
        %v2495 = vpop.f32.mrf.mxu0
        %v2496 = vadd.f32 %v1282, %v2495
        %v2497 = vpop.f32.mrf.mxu0
        %2498 = vmatprep.mubr.f32.mxu0 0.0
        %2499 = vmatmul.mubr.f32.gmra.mxu0 %v2367
        %v2500 = vpop.f32.mrf.mxu0
        %v2501 = vadd.f32 %v1283, %v2500
        %v2502 = vpop.f32.mrf.mxu0
        %2503 = vmatprep.mubr.f32.mxu0 0.0
        %2504 = vmatmul.mubr.f32.gmra.mxu0 %v2370
        %v2505 = vpop.f32.mrf.mxu0
        %v2506 = vadd.f32 %v1284, %v2505
        %v2507 = vpop.f32.mrf.mxu0
        %2508 = vmatprep.mubr.f32.mxu0 0.0
        %2509 = vmatmul.mubr.f32.gmra.mxu0 %v2373
        %v2510 = vpop.f32.mrf.mxu0
        %v2511 = vadd.f32 %v1285, %v2510
        %v2512 = vpop.f32.mrf.mxu0
        %2513 = vmatprep.mubr.f32.mxu0 0.0
        %2514 = vmatmul.mubr.f32.gmra.mxu0 %v2376
        %v2515 = vpop.f32.mrf.mxu0
        %v2516 = vadd.f32 %v1286, %v2515
        %v2517 = vpop.f32.mrf.mxu0
        %2518 = vmatprep.mubr.f32.mxu0 0.0
        %2519 = vmatmul.mubr.f32.gmra.mxu0 %v2379
        %v2520 = vpop.f32.mrf.mxu0
        %v2521 = vadd.f32 %v1287, %v2520
        %v2522 = vpop.f32.mrf.mxu0
        %2523 = vmatprep.mubr.f32.mxu0 0.0
        %2524 = vmatmul.mubr.f32.gmra.mxu0 %v2382
        %v2525 = vpop.f32.mrf.mxu0
        %v2526 = vadd.f32 %v1288, %v2525
        %v2527 = vpop.f32.mrf.mxu0
        %2528 = vdwg.mxu0
        %s2529 = scalar_lea.vmem %s350, 384 [#allocation12]
        %2530 = vst [vmem:[%s2529] sm:$0xff] %v2451
        %2531 = vst [vmem:[%s2529 + $0x8] sm:$0xff] %v2456
        %2532 = vst [vmem:[%s2529 + $0x10] sm:$0xff] %v2461
        %2533 = vst [vmem:[%s2529 + $0x18] sm:$0xff] %v2466
        %2534 = vst [vmem:[%s2529 + $0x20] sm:$0xff] %v2471
        %2535 = vst [vmem:[%s2529 + $0x28] sm:$0xff] %v2476
        %2536 = vst [vmem:[%s2529 + $0x30] sm:$0xff] %v2481
        %2537 = vst [vmem:[%s2529 + $0x38] sm:$0xff] %v2486
        %2538 = vst [vmem:[%s2529 + $0x40] sm:$0xff] %v2491
        %2539 = vst [vmem:[%s2529 + $0x48] sm:$0xff] %v2496
        %2540 = vst [vmem:[%s2529 + $0x50] sm:$0xff] %v2501
        %2541 = vst [vmem:[%s2529 + $0x58] sm:$0xff] %v2506
        %2542 = vst [vmem:[%s2529 + $0x60] sm:$0xff] %v2511
        %2543 = vst [vmem:[%s2529 + $0x68] sm:$0xff] %v2516
        %2544 = vst [vmem:[%s2529 + $0x70] sm:$0xff] %v2521
        %2545 = vst [vmem:[%s2529 + $0x78] sm:$0xff] %v2526
        %s2546 = sand.u32 %s183, 1
        %s2547 = scalar_lea.sflag [#allocation5], %s2546
        %s2548 = sand.u32 %s183, 1
        %s2549 = smul.addr %s2548, 512
        %s2550 = scalar_lea.vmem [#allocation12], %s2549
        // Predicated region
        $region69: #{tpu_custom_call.1} parent=43 // pred_check
          %p2551 = pneg %p193
        $region70: #{tpu_custom_call.1} parent=43 // pred_check_branch
          %2553 = sbr.rel (%p2551) target = $region72
        $region71: #{tpu_custom_call.1} parent=43 // pred_region
          %s2554 = smul.u32 16, %s30
          %s2556 = ssub.s32 8192, 8192
          %2557 = vsyncadd %s2547, %s2556
          %s2558 = smul.addr %s29, 64
          %s2559 = sadd.s32 %s2554, %s2558
          %s2560 = smul.addr %s2559, 128
          %s2561 = scalar_lea.hbm %s6, %s2560
          %s2562 = sshll.u32 %s2550, 4
          %s2563 = int_to_ptr.vmem [resolvable:$true] %s2562
          %2568 = dma.vmem_to_hbm [thread:$0]  %s2563, 8192, %s2561, %s2547, 128, 128, 8
        $region72: #{tpu_custom_call.1} parent=43 // pred_fallthru
          _
      $region44: #{tpu_custom_call.1} parent=5 // pred_fallthru
        _
      %p2569 = scmp.le.s32.totalorder 2, %s20
      // Predicated region
      $region73: #{tpu_custom_call.1} parent=5 // pred_check
        %p2570 = pneg %p2569
      $region74: #{tpu_custom_call.1} parent=5 // pred_check_branch
        %2572 = sbr.rel (%p2570) target = $region76
      $region75: #{tpu_custom_call.1} parent=5 // pred_region
        %s2573 = ssub.s32 %s20, 2
        // Predicated region
        $region77: #{tpu_custom_call.1} parent=75 // pred_check
          %p2574 = pneg %p199
        $region78: #{tpu_custom_call.1} parent=75 // pred_check_branch
          %2576 = sbr.rel (%p2574) target = $region80
        $region79: #{tpu_custom_call.1} parent=75 // pred_region
          %s2577 = sand.u32 %s184, 1
          %s2578 = scalar_lea.sflag [#allocation5], %s2577
          %s2579 = sand.u32 %s184, 1
          %s2580 = smul.addr %s2579, 512
          %s2581 = scalar_lea.vmem [#allocation12], %s2580
          %2582 = dma.done %s2578, 8192
        $region80: #{tpu_custom_call.1} parent=75 // pred_fallthru
          _
      $region76: #{tpu_custom_call.1} parent=5 // pred_fallthru
        _
    $region6: #{tpu_custom_call.1} parent=1 // loop_footer
      %s24 = sadd.s32 1, %s20
    $region7: #{tpu_custom_call.1} parent=1 // loop_footer_branch
      %19 = sbr.rel target = $region3
    $region8: #{tpu_custom_call.1} parent=1 // loop_exit
      _
    %2583 = vsyncpa [#allocation4], 1
    %s2584 = scalar_lea.sflag [#allocation4], 1
    %2585 = vsyncpa %s2584, 1
    %2586 = vsyncpa [#allocation7], 1
    %2587 = vsyncpa [#allocation10], 1
    %2588 = vsyncpa [#allocation5], 1
    %s2589 = scalar_lea.sflag [#allocation5], 1
    %2590 = vsyncpa %s2589, 1

</llo_original>
